<compile_context>
chip_gen: v6e
topology: v6e:2x2x1
jax: 0.10.0
libtpu: 0.0.40
codegen_flags: <defaults>
</compile_context>

<pallas_src>
import jax
import jax.numpy as jnp
from jax.experimental import pallas as pl
from jax.experimental.pallas import tpu as pltpu

# ----- synthetic small Roberta config (deterministic init, no checkpoint) -----
BATCH = 2
SEQ = 8
HIDDEN = 32
NUM_HEADS = 4
HEAD_DIM = HIDDEN // NUM_HEADS
INTERMEDIATE = 64
NUM_LAYERS = 2
VOCAB = 64
MAX_POS = 32
PAD_ID = 1          # Roberta padding_idx
MASK_ID = 4         # synthetic tokenizer.mask_token_id
LN_EPS = 1e-12
INIT_RANGE = 0.02
ATTN_SCALE = 1.0 / (HEAD_DIM ** 0.5)
ROWS = SEQ * SEQ    # S masked variants x S positions = 64
NEG = -1e9


# --------------------------- in-kernel helpers --------------------------------
def _ln(x, g, b):
    mu = jnp.mean(x, axis=-1, keepdims=True)
    var = jnp.mean(jnp.square(x - mu), axis=-1, keepdims=True)
    return (x - mu) * jax.lax.rsqrt(var + LN_EPS) * g + b


def _gelu(x):
    # tanh-approx GELU (EUP-friendly inside the kernel)
    return 0.5 * x * (1.0 + jnp.tanh(0.7978845608028654 * (x + 0.044715 * x * x * x)))


def _bf16(x):
    return x.astype(jnp.bfloat16)


# ------------------------- single fused forward kernel -------------------------
def _fused_forward_kernel(
        x_in_ref, bias_ref, emb_g_ref, emb_b_ref,
        wqkv_ref, bqkv_ref, wo_ref, bo_ref, ln1_g_ref, ln1_b_ref,
        wi_ref, bi_ref, wo2_ref, bo2_ref, ln2_g_ref, ln2_b_ref,
        sel_ref, head_w_ref, head_b_ref, head_g_ref, head_beta_ref,
        dec_w_ref, dec_b_ref, tgt_ref, mw_ref,
        o_ref):
    bias = bias_ref[...]                                        # (ROWS, ROWS) f32

    # embedding layernorm
    x = _ln(x_in_ref[...], emb_g_ref[...], emb_b_ref[...])      # (ROWS, H) f32

    # ---- transformer stack, fully unrolled in-kernel (no per-layer grid steps)
    for l in range(NUM_LAYERS):
        # fused QKV projection: one bf16 MXU pass, lane width 3H
        qkv = jnp.dot(_bf16(x), wqkv_ref[l],
                      preferred_element_type=jnp.float32) + bqkv_ref[l]   # (ROWS, 3H)

        ctx_heads = []
        for h in range(NUM_HEADS):
            q = qkv[:, h * HEAD_DIM:(h + 1) * HEAD_DIM] * ATTN_SCALE
            k = qkv[:, HIDDEN + h * HEAD_DIM:HIDDEN + (h + 1) * HEAD_DIM]
            v = qkv[:, 2 * HIDDEN + h * HEAD_DIM:2 * HIDDEN + (h + 1) * HEAD_DIM]
            # single (ROWS,D)x(ROWS,D)^T score matmul; cross-variant and padded
            # keys are killed by the precomputed block-diagonal additive bias
            s = jax.lax.dot_general(_bf16(q), _bf16(k),
                                    (((1,), (1,)), ((), ())),
                                    preferred_element_type=jnp.float32) + bias
            m = jnp.max(s, axis=-1, keepdims=True)
            e = jnp.exp(s - m)
            p = e * pl.reciprocal(jnp.sum(e, axis=-1, keepdims=True), approx=True)
            ctx_heads.append(jnp.dot(_bf16(p), _bf16(v),
                                     preferred_element_type=jnp.float32))  # (ROWS, D)
        # cheap lane concat -> one fused (ROWS,H)@(H,H) output projection
        ctx = jnp.concatenate(ctx_heads, axis=-1)               # (ROWS, H)
        attn_out = jnp.dot(_bf16(ctx), wo_ref[l],
                           preferred_element_type=jnp.float32) + bo_ref[l]

        x = _ln(attn_out + x, ln1_g_ref[l], ln1_b_ref[l])

        hdn = _gelu(jnp.dot(_bf16(x), wi_ref[l],
                            preferred_element_type=jnp.float32) + bi_ref[l])
        ffn = jnp.dot(_bf16(hdn), wo2_ref[l],
                      preferred_element_type=jnp.float32) + bo2_ref[l]
        x = _ln(ffn + x, ln2_g_ref[l], ln2_b_ref[l])

    # ---- LM head on the S masked rows only (variant p, position p),
    #      selected in-kernel with an exact f32 one-hot matmul
    x_sel = jnp.dot(sel_ref[...], x, preferred_element_type=jnp.float32)   # (S, H)

    hh = jnp.dot(_bf16(x_sel), head_w_ref[...],
                 preferred_element_type=jnp.float32) + head_b_ref[...]
    hh = _ln(_gelu(hh), head_g_ref[...], head_beta_ref[...])
    logits = jnp.dot(_bf16(hh), dec_w_ref[...],
                     preferred_element_type=jnp.float32) + dec_b_ref[...]  # (S, V)

    m = jnp.max(logits, axis=-1, keepdims=True)
    e = jnp.exp(logits - m)
    p = e * pl.reciprocal(jnp.sum(e, axis=-1, keepdims=True), approx=True)  # (S, V)

    # gather original-token probability via in-kernel iota compare
    cols = jax.lax.broadcasted_iota(jnp.int32, (SEQ, VOCAB), 1)
    onehot = (cols == tgt_ref[...]).astype(jnp.float32)         # (S, V)
    p_t = jnp.sum(p * onehot, axis=-1, keepdims=True)           # (S, 1)

    # zero-weight positions with attention_mask == 0 (the PyTorch `continue`)
    o_ref[...] = jnp.sum(p_t * mw_ref[...], axis=0, keepdims=True)   # (1, 1)


# --------------------------- pallas_call wrapper -------------------------------
def _const_spec(shape):
    n = len(shape)
    return pl.BlockSpec(shape, lambda l: (0,) * n)


def fused_forward(args):
    in_specs = [_const_spec(a.shape) for a in args]
    return pl.pallas_call(
        _fused_forward_kernel,
        grid=(1,),
        out_shape=jax.ShapeDtypeStruct((1, 1), jnp.float32),
        in_specs=in_specs,
        out_specs=pl.BlockSpec((1, 1), lambda l: (0, 0)),
        compiler_params=pltpu.CompilerParams(dimension_semantics=("arbitrary",)),
    )(*args)


# --------------------------- model parameters --------------------------------
def init_params(key):
    def nrm(k, shape):
        return INIT_RANGE * jax.random.normal(k, shape, jnp.float32)

    keys = iter(jax.random.split(key, 64))
    p = {
        "word_emb": nrm(next(keys), (VOCAB, HIDDEN)),
        "pos_emb": nrm(next(keys), (MAX_POS, HIDDEN)),
        "type_emb": nrm(next(keys), (1, HIDDEN)),
        "emb_ln_g": jnp.ones((1, HIDDEN), jnp.float32),
        "emb_ln_b": jnp.zeros((1, HIDDEN), jnp.float32),
    }
    acc = {k: [] for k in ["wqkv", "bqkv", "wo", "bo", "ln1_g", "ln1_b",
                           "wi", "bi", "wo2", "bo2", "ln2_g", "ln2_b"]}
    for _ in range(NUM_LAYERS):
        wq = nrm(next(keys), (HIDDEN, HIDDEN))
        wk = nrm(next(keys), (HIDDEN, HIDDEN))
        wv = nrm(next(keys), (HIDDEN, HIDDEN))
        acc["wqkv"].append(jnp.concatenate([wq, wk, wv], axis=1))
        acc["bqkv"].append(jnp.zeros((1, 3 * HIDDEN), jnp.float32))
        acc["wo"].append(nrm(next(keys), (HIDDEN, HIDDEN)))
        acc["bo"].append(jnp.zeros((1, HIDDEN), jnp.float32))
        acc["ln1_g"].append(jnp.ones((1, HIDDEN), jnp.float32))
        acc["ln1_b"].append(jnp.zeros((1, HIDDEN), jnp.float32))
        acc["wi"].append(nrm(next(keys), (HIDDEN, INTERMEDIATE)))
        acc["bi"].append(jnp.zeros((1, INTERMEDIATE), jnp.float32))
        acc["wo2"].append(nrm(next(keys), (INTERMEDIATE, HIDDEN)))
        acc["bo2"].append(jnp.zeros((1, HIDDEN), jnp.float32))
        acc["ln2_g"].append(jnp.ones((1, HIDDEN), jnp.float32))
        acc["ln2_b"].append(jnp.zeros((1, HIDDEN), jnp.float32))
    p["layers"] = {k: jnp.stack(v) for k, v in acc.items()}
    p["head_w"] = nrm(next(keys), (HIDDEN, HIDDEN))
    p["head_b"] = jnp.zeros((1, HIDDEN), jnp.float32)
    p["head_ln_g"] = jnp.ones((1, HIDDEN), jnp.float32)
    p["head_ln_b"] = jnp.zeros((1, HIDDEN), jnp.float32)
    p["dec_w"] = nrm(next(keys), (HIDDEN, VOCAB))
    p["dec_b"] = jnp.zeros((1, VOCAB), jnp.float32)
    return p


# --------------------------- SequenceProbabilityModel.forward -----------------
def sequence_probability(params, input_ids, attention_mask):
    B, S = input_ids.shape
    row0 = input_ids[0]                                           # (S,)

    # Build all S masked variants of sample 0 at once: variant p masks position p.
    # (Only sample 0's row influences the output, exactly as in the PyTorch loop.)
    eye = jnp.eye(S, dtype=bool)
    variants = jnp.where(eye, MASK_ID, row0[None, :]).astype(jnp.int32)   # (S, S)

    # Roberta position ids per variant: cumsum over non-pad tokens + padding_idx
    ne = (variants != PAD_ID).astype(jnp.int32)
    pos_ids = jnp.cumsum(ne, axis=1) * ne + PAD_ID

    # embedding table gathers stay in XLA (tiny, data-dependent)
    x0 = (params["word_emb"][variants]
          + params["pos_emb"][pos_ids]
          + params["type_emb"][0]).astype(jnp.float32).reshape(ROWS, HIDDEN)

    # block-diagonal additive attention bias over the flattened (variant, pos)
    # rows: same-variant keys get the pad-mask bias, cross-variant keys get NEG
    mask0 = attention_mask[0].astype(jnp.float32)                 # (S,)
    pad_bias = (1.0 - mask0) * NEG                                # (S,)
    same_variant = jnp.kron(jnp.eye(S, dtype=jnp.float32),
                            jnp.ones((S, S), jnp.float32))        # (ROWS, ROWS)
    pad_cols = jnp.tile(pad_bias, S)                              # (ROWS,)
    attn_bias = jnp.where(same_variant > 0.5, pad_cols[None, :], NEG)  # (ROWS, ROWS)

    # one-hot selector for the masked rows (variant p, position p -> row p*S+p)
    sel_diag = jax.nn.one_hot(jnp.arange(S) * S + jnp.arange(S), ROWS,
                              dtype=jnp.float32)                  # (S, ROWS)

    target_ids = row0.reshape(S, 1).astype(jnp.int32)
    mask_w = mask0.reshape(S, 1)

    L = params["layers"]
    args = [
        x0, attn_bias, params["emb_ln_g"], params["emb_ln_b"],
        L["wqkv"].astype(jnp.bfloat16), L["bqkv"],
        L["wo"].astype(jnp.bfloat16), L["bo"], L["ln1_g"], L["ln1_b"],
        L["wi"].astype(jnp.bfloat16), L["bi"],
        L["wo2"].astype(jnp.bfloat16), L["bo2"], L["ln2_g"], L["ln2_b"],
        sel_diag, params["head_w"].astype(jnp.bfloat16), params["head_b"],
        params["head_ln_g"], params["head_ln_b"],
        params["dec_w"].astype(jnp.bfloat16), params["dec_b"],
        target_ids, mask_w,
    ]

    # single fused pallas_call: embeddings-LN + all layers + LM head + score
    total = fused_forward(args)[0, 0]

    # total_score is a (B,) vector with identical entries; /seq_len, unsqueeze(-1)
    return jnp.full((B, 1), total / S, dtype=jnp.float32)


# --------------------------------- main ---------------------------------------
if __name__ == "__main__":
    key = jax.random.PRNGKey(0)
    pkey, dkey = jax.random.split(key)
    params = init_params(pkey)

    input_ids = jax.random.randint(dkey, (BATCH, SEQ), 5, VOCAB, dtype=jnp.int32)
    # pad the tail of row 0 to exercise the attention_mask == 0 skip path
    input_ids = input_ids.at[0, SEQ - 2:].set(PAD_ID)
    attention_mask = jnp.ones((BATCH, SEQ), jnp.int32).at[0, SEQ - 2:].set(0)

    out = jax.jit(sequence_probability)(params, input_ids, attention_mask)
    out = jax.block_until_ready(out)

    assert out.shape == (BATCH, 1), out.shape
    assert bool(jnp.all(jnp.isfinite(out)))
    print("KERNEL_OK")
</pallas_src>

<mosaic_0001>
module attributes {stable_mosaic.version = 11 : i64} {
  func.func @_fused_forward_kernel(%arg0: i32, %arg1: memref<64x32xf32, #tpu.memory_space<vmem>>, %arg2: memref<64x64xf32, #tpu.memory_space<vmem>>, %arg3: memref<1x32xf32, #tpu.memory_space<vmem>>, %arg4: memref<1x32xf32, #tpu.memory_space<vmem>>, %arg5: memref<2x32x96xbf16, #tpu.memory_space<vmem>>, %arg6: memref<2x1x96xf32, #tpu.memory_space<vmem>>, %arg7: memref<2x32x32xbf16, #tpu.memory_space<vmem>>, %arg8: memref<2x1x32xf32, #tpu.memory_space<vmem>>, %arg9: memref<2x1x32xf32, #tpu.memory_space<vmem>>, %arg10: memref<2x1x32xf32, #tpu.memory_space<vmem>>, %arg11: memref<2x32x64xbf16, #tpu.memory_space<vmem>>, %arg12: memref<2x1x64xf32, #tpu.memory_space<vmem>>, %arg13: memref<2x64x32xbf16, #tpu.memory_space<vmem>>, %arg14: memref<2x1x32xf32, #tpu.memory_space<vmem>>, %arg15: memref<2x1x32xf32, #tpu.memory_space<vmem>>, %arg16: memref<2x1x32xf32, #tpu.memory_space<vmem>>, %arg17: memref<8x64xf32, #tpu.memory_space<vmem>>, %arg18: memref<32x32xbf16, #tpu.memory_space<vmem>>, %arg19: memref<1x32xf32, #tpu.memory_space<vmem>>, %arg20: memref<1x32xf32, #tpu.memory_space<vmem>>, %arg21: memref<1x32xf32, #tpu.memory_space<vmem>>, %arg22: memref<32x64xbf16, #tpu.memory_space<vmem>>, %arg23: memref<1x64xf32, #tpu.memory_space<vmem>>, %arg24: memref<8x1xi32, #tpu.memory_space<vmem>>, %arg25: memref<8x1xf32, #tpu.memory_space<vmem>>, %arg26: memref<1x1xf32, #tpu.memory_space<vmem>>) attributes {dimension_semantics = [#tpu.dimension_semantics<arbitrary>], iteration_bounds = array<i64: 1>, scalar_prefetch = 0 : i64, scratch_operands = 0 : i64, tpu.core_type = #tpu.core_type<tc>, window_params = [{pipeline_mode = #tpu.pipeline_mode<synchronous>, transform_indices = @transform_0, window_bounds = array<i64: 64, 32>}, {pipeline_mode = #tpu.pipeline_mode<synchronous>, transform_indices = @transform_1, window_bounds = array<i64: 64, 64>}, {pipeline_mode = #tpu.pipeline_mode<synchronous>, transform_indices = @transform_2, window_bounds = array<i64: 1, 32>}, {pipeline_mode = #tpu.pipeline_mode<synchronous>, transform_indices = @transform_3, window_bounds = array<i64: 1, 32>}, {pipeline_mode = #tpu.pipeline_mode<synchronous>, transform_indices = @transform_4, window_bounds = array<i64: 2, 32, 96>}, {pipeline_mode = #tpu.pipeline_mode<synchronous>, transform_indices = @transform_5, window_bounds = array<i64: 2, 1, 96>}, {pipeline_mode = #tpu.pipeline_mode<synchronous>, transform_indices = @transform_6, window_bounds = array<i64: 2, 32, 32>}, {pipeline_mode = #tpu.pipeline_mode<synchronous>, transform_indices = @transform_7, window_bounds = array<i64: 2, 1, 32>}, {pipeline_mode = #tpu.pipeline_mode<synchronous>, transform_indices = @transform_8, window_bounds = array<i64: 2, 1, 32>}, {pipeline_mode = #tpu.pipeline_mode<synchronous>, transform_indices = @transform_9, window_bounds = array<i64: 2, 1, 32>}, {pipeline_mode = #tpu.pipeline_mode<synchronous>, transform_indices = @transform_10, window_bounds = array<i64: 2, 32, 64>}, {pipeline_mode = #tpu.pipeline_mode<synchronous>, transform_indices = @transform_11, window_bounds = array<i64: 2, 1, 64>}, {pipeline_mode = #tpu.pipeline_mode<synchronous>, transform_indices = @transform_12, window_bounds = array<i64: 2, 64, 32>}, {pipeline_mode = #tpu.pipeline_mode<synchronous>, transform_indices = @transform_13, window_bounds = array<i64: 2, 1, 32>}, {pipeline_mode = #tpu.pipeline_mode<synchronous>, transform_indices = @transform_14, window_bounds = array<i64: 2, 1, 32>}, {pipeline_mode = #tpu.pipeline_mode<synchronous>, transform_indices = @transform_15, window_bounds = array<i64: 2, 1, 32>}, {pipeline_mode = #tpu.pipeline_mode<synchronous>, transform_indices = @transform_16, window_bounds = array<i64: 8, 64>}, {pipeline_mode = #tpu.pipeline_mode<synchronous>, transform_indices = @transform_17, window_bounds = array<i64: 32, 32>}, {pipeline_mode = #tpu.pipeline_mode<synchronous>, transform_indices = @transform_18, window_bounds = array<i64: 1, 32>}, {pipeline_mode = #tpu.pipeline_mode<synchronous>, transform_indices = @transform_19, window_bounds = array<i64: 1, 32>}, {pipeline_mode = #tpu.pipeline_mode<synchronous>, transform_indices = @transform_20, window_bounds = array<i64: 1, 32>}, {pipeline_mode = #tpu.pipeline_mode<synchronous>, transform_indices = @transform_21, window_bounds = array<i64: 32, 64>}, {pipeline_mode = #tpu.pipeline_mode<synchronous>, transform_indices = @transform_22, window_bounds = array<i64: 1, 64>}, {pipeline_mode = #tpu.pipeline_mode<synchronous>, transform_indices = @transform_23, window_bounds = array<i64: 8, 1>}, {pipeline_mode = #tpu.pipeline_mode<synchronous>, transform_indices = @transform_24, window_bounds = array<i64: 8, 1>}, {pipeline_mode = #tpu.pipeline_mode<synchronous>, transform_indices = @transform_25, window_bounds = array<i64: 1, 1>}]} {
    %c0 = arith.constant 0 : index
    %c0_0 = arith.constant 0 : index
    %0 = vector.load %arg2[%c0, %c0_0] : memref<64x64xf32, #tpu.memory_space<vmem>>, vector<64x64xf32>
    %c0_1 = arith.constant 0 : index
    %c0_2 = arith.constant 0 : index
    %1 = vector.load %arg1[%c0_1, %c0_2] : memref<64x32xf32, #tpu.memory_space<vmem>>, vector<64x32xf32>
    %c0_3 = arith.constant 0 : index
    %c0_4 = arith.constant 0 : index
    %2 = vector.load %arg3[%c0_3, %c0_4] : memref<1x32xf32, #tpu.memory_space<vmem>>, vector<1x32xf32>
    %c0_5 = arith.constant 0 : index
    %c0_6 = arith.constant 0 : index
    %3 = vector.load %arg4[%c0_5, %c0_6] : memref<1x32xf32, #tpu.memory_space<vmem>>, vector<1x32xf32>
    %cst = arith.constant dense<0.000000e+00> : vector<64xf32>
    %4 = vector.multi_reduction <add>, %1, %cst [1] : vector<64x32xf32> to vector<64xf32>
    %5 = vector.shape_cast %4 : vector<64xf32> to vector<64x1xf32>
    %cst_7 = arith.constant 3.200000e+01 : f32
    %6 = vector.broadcast %cst_7 : f32 to vector<64x1xf32>
    %7 = arith.divf %5, %6 : vector<64x1xf32>
    %8 = vector.broadcast %7 : vector<64x1xf32> to vector<64x32xf32>
    %9 = arith.subf %1, %8 : vector<64x32xf32>
    %10 = arith.mulf %9, %9 : vector<64x32xf32>
    %cst_8 = arith.constant dense<0.000000e+00> : vector<64xf32>
    %11 = vector.multi_reduction <add>, %10, %cst_8 [1] : vector<64x32xf32> to vector<64xf32>
    %12 = vector.shape_cast %11 : vector<64xf32> to vector<64x1xf32>
    %cst_9 = arith.constant 3.200000e+01 : f32
    %13 = vector.broadcast %cst_9 : f32 to vector<64x1xf32>
    %14 = arith.divf %12, %13 : vector<64x1xf32>
    %15 = vector.broadcast %7 : vector<64x1xf32> to vector<64x32xf32>
    %16 = arith.subf %1, %15 : vector<64x32xf32>
    %cst_10 = arith.constant 9.99999996E-13 : f32
    %17 = vector.broadcast %cst_10 : f32 to vector<64x1xf32>
    %18 = arith.addf %14, %17 : vector<64x1xf32>
    %19 = math.rsqrt %18 : vector<64x1xf32>
    %20 = vector.broadcast %19 : vector<64x1xf32> to vector<64x32xf32>
    %21 = arith.mulf %16, %20 : vector<64x32xf32>
    %22 = vector.broadcast %2 : vector<1x32xf32> to vector<64x32xf32>
    %23 = arith.mulf %21, %22 : vector<64x32xf32>
    %24 = vector.broadcast %3 : vector<1x32xf32> to vector<64x32xf32>
    %25 = arith.addf %23, %24 : vector<64x32xf32>
    %26 = arith.truncf %25 : vector<64x32xf32> to vector<64x32xbf16>
    %c0_11 = arith.constant 0 : index
    %c0_12 = arith.constant 0 : index
    %c0_13 = arith.constant 0 : index
    %27 = vector.load %arg5[%c0_11, %c0_12, %c0_13] : memref<2x32x96xbf16, #tpu.memory_space<vmem>>, vector<1x32x96xbf16>
    %28 = vector.shape_cast %27 : vector<1x32x96xbf16> to vector<32x96xbf16>
    %cst_14 = arith.constant dense<0.000000e+00> : vector<64x96xf32>
    %29 = tpu.matmul %26, %28, %cst_14 {dimension_numbers = #tpu.dot_dimension_numbers<[1], [0], [0], [1], [0, 0, 1, 1], [], []>} : vector<64x32xbf16>, vector<32x96xbf16>, vector<64x96xf32> -> vector<64x96xf32>
    %c0_15 = arith.constant 0 : index
    %c0_16 = arith.constant 0 : index
    %c0_17 = arith.constant 0 : index
    %30 = vector.load %arg6[%c0_15, %c0_16, %c0_17] : memref<2x1x96xf32, #tpu.memory_space<vmem>>, vector<1x1x96xf32>
    %31 = vector.shape_cast %30 : vector<1x1x96xf32> to vector<1x96xf32>
    %32 = vector.broadcast %31 : vector<1x96xf32> to vector<64x96xf32>
    %33 = arith.addf %29, %32 : vector<64x96xf32>
    %34 = vector.extract_strided_slice %33 {offsets = [0, 0], sizes = [64, 8], strides = [1, 1]} : vector<64x96xf32> to vector<64x8xf32>
    %cst_18 = arith.constant 0.353553385 : f32
    %35 = vector.broadcast %cst_18 : f32 to vector<64x8xf32>
    %36 = arith.mulf %34, %35 : vector<64x8xf32>
    %37 = vector.extract_strided_slice %33 {offsets = [0, 32], sizes = [64, 8], strides = [1, 1]} : vector<64x96xf32> to vector<64x8xf32>
    %38 = vector.extract_strided_slice %33 {offsets = [0, 64], sizes = [64, 8], strides = [1, 1]} : vector<64x96xf32> to vector<64x8xf32>
    %39 = arith.truncf %36 : vector<64x8xf32> to vector<64x8xbf16>
    %40 = arith.truncf %37 : vector<64x8xf32> to vector<64x8xbf16>
    %cst_19 = arith.constant dense<0.000000e+00> : vector<64x64xf32>
    %41 = tpu.matmul %39, %40, %cst_19 {dimension_numbers = #tpu.dot_dimension_numbers<[1], [1], [0], [0], [0, 0, 1, 0], [], []>} : vector<64x8xbf16>, vector<64x8xbf16>, vector<64x64xf32> -> vector<64x64xf32>
    %42 = arith.addf %41, %0 : vector<64x64xf32>
    %cst_20 = arith.constant dense<0xFF800000> : vector<64xf32>
    %43 = vector.multi_reduction <maximumf>, %42, %cst_20 [1] : vector<64x64xf32> to vector<64xf32>
    %44 = vector.shape_cast %43 : vector<64xf32> to vector<64x1xf32>
    %45 = vector.broadcast %44 : vector<64x1xf32> to vector<64x64xf32>
    %46 = arith.subf %42, %45 : vector<64x64xf32>
    %47 = math.exp %46 : vector<64x64xf32>
    %cst_21 = arith.constant dense<0.000000e+00> : vector<64xf32>
    %48 = vector.multi_reduction <add>, %47, %cst_21 [1] : vector<64x64xf32> to vector<64xf32>
    %49 = vector.shape_cast %48 : vector<64xf32> to vector<64x1xf32>
    %50 = tpu.reciprocal %49 {approx = true} : vector<64x1xf32> -> vector<64x1xf32>
    %51 = vector.broadcast %50 : vector<64x1xf32> to vector<64x64xf32>
    %52 = arith.mulf %47, %51 : vector<64x64xf32>
    %53 = arith.truncf %52 : vector<64x64xf32> to vector<64x64xbf16>
    %54 = arith.truncf %38 : vector<64x8xf32> to vector<64x8xbf16>
    %cst_22 = arith.constant dense<0.000000e+00> : vector<64x8xf32>
    %55 = tpu.matmul %53, %54, %cst_22 {dimension_numbers = #tpu.dot_dimension_numbers<[1], [0], [0], [1], [0, 0, 1, 1], [], []>} : vector<64x64xbf16>, vector<64x8xbf16>, vector<64x8xf32> -> vector<64x8xf32>
    %56 = vector.extract_strided_slice %33 {offsets = [0, 8], sizes = [64, 8], strides = [1, 1]} : vector<64x96xf32> to vector<64x8xf32>
    %cst_23 = arith.constant 0.353553385 : f32
    %57 = vector.broadcast %cst_23 : f32 to vector<64x8xf32>
    %58 = arith.mulf %56, %57 : vector<64x8xf32>
    %59 = vector.extract_strided_slice %33 {offsets = [0, 40], sizes = [64, 8], strides = [1, 1]} : vector<64x96xf32> to vector<64x8xf32>
    %60 = vector.extract_strided_slice %33 {offsets = [0, 72], sizes = [64, 8], strides = [1, 1]} : vector<64x96xf32> to vector<64x8xf32>
    %61 = arith.truncf %58 : vector<64x8xf32> to vector<64x8xbf16>
    %62 = arith.truncf %59 : vector<64x8xf32> to vector<64x8xbf16>
    %cst_24 = arith.constant dense<0.000000e+00> : vector<64x64xf32>
    %63 = tpu.matmul %61, %62, %cst_24 {dimension_numbers = #tpu.dot_dimension_numbers<[1], [1], [0], [0], [0, 0, 1, 0], [], []>} : vector<64x8xbf16>, vector<64x8xbf16>, vector<64x64xf32> -> vector<64x64xf32>
    %64 = arith.addf %63, %0 : vector<64x64xf32>
    %cst_25 = arith.constant dense<0xFF800000> : vector<64xf32>
    %65 = vector.multi_reduction <maximumf>, %64, %cst_25 [1] : vector<64x64xf32> to vector<64xf32>
    %66 = vector.shape_cast %65 : vector<64xf32> to vector<64x1xf32>
    %67 = vector.broadcast %66 : vector<64x1xf32> to vector<64x64xf32>
    %68 = arith.subf %64, %67 : vector<64x64xf32>
    %69 = math.exp %68 : vector<64x64xf32>
    %cst_26 = arith.constant dense<0.000000e+00> : vector<64xf32>
    %70 = vector.multi_reduction <add>, %69, %cst_26 [1] : vector<64x64xf32> to vector<64xf32>
    %71 = vector.shape_cast %70 : vector<64xf32> to vector<64x1xf32>
    %72 = tpu.reciprocal %71 {approx = true} : vector<64x1xf32> -> vector<64x1xf32>
    %73 = vector.broadcast %72 : vector<64x1xf32> to vector<64x64xf32>
    %74 = arith.mulf %69, %73 : vector<64x64xf32>
    %75 = arith.truncf %74 : vector<64x64xf32> to vector<64x64xbf16>
    %76 = arith.truncf %60 : vector<64x8xf32> to vector<64x8xbf16>
    %cst_27 = arith.constant dense<0.000000e+00> : vector<64x8xf32>
    %77 = tpu.matmul %75, %76, %cst_27 {dimension_numbers = #tpu.dot_dimension_numbers<[1], [0], [0], [1], [0, 0, 1, 1], [], []>} : vector<64x64xbf16>, vector<64x8xbf16>, vector<64x8xf32> -> vector<64x8xf32>
    %78 = vector.extract_strided_slice %33 {offsets = [0, 16], sizes = [64, 8], strides = [1, 1]} : vector<64x96xf32> to vector<64x8xf32>
    %cst_28 = arith.constant 0.353553385 : f32
    %79 = vector.broadcast %cst_28 : f32 to vector<64x8xf32>
    %80 = arith.mulf %78, %79 : vector<64x8xf32>
    %81 = vector.extract_strided_slice %33 {offsets = [0, 48], sizes = [64, 8], strides = [1, 1]} : vector<64x96xf32> to vector<64x8xf32>
    %82 = vector.extract_strided_slice %33 {offsets = [0, 80], sizes = [64, 8], strides = [1, 1]} : vector<64x96xf32> to vector<64x8xf32>
    %83 = arith.truncf %80 : vector<64x8xf32> to vector<64x8xbf16>
    %84 = arith.truncf %81 : vector<64x8xf32> to vector<64x8xbf16>
    %cst_29 = arith.constant dense<0.000000e+00> : vector<64x64xf32>
    %85 = tpu.matmul %83, %84, %cst_29 {dimension_numbers = #tpu.dot_dimension_numbers<[1], [1], [0], [0], [0, 0, 1, 0], [], []>} : vector<64x8xbf16>, vector<64x8xbf16>, vector<64x64xf32> -> vector<64x64xf32>
    %86 = arith.addf %85, %0 : vector<64x64xf32>
    %cst_30 = arith.constant dense<0xFF800000> : vector<64xf32>
    %87 = vector.multi_reduction <maximumf>, %86, %cst_30 [1] : vector<64x64xf32> to vector<64xf32>
    %88 = vector.shape_cast %87 : vector<64xf32> to vector<64x1xf32>
    %89 = vector.broadcast %88 : vector<64x1xf32> to vector<64x64xf32>
    %90 = arith.subf %86, %89 : vector<64x64xf32>
    %91 = math.exp %90 : vector<64x64xf32>
    %cst_31 = arith.constant dense<0.000000e+00> : vector<64xf32>
    %92 = vector.multi_reduction <add>, %91, %cst_31 [1] : vector<64x64xf32> to vector<64xf32>
    %93 = vector.shape_cast %92 : vector<64xf32> to vector<64x1xf32>
    %94 = tpu.reciprocal %93 {approx = true} : vector<64x1xf32> -> vector<64x1xf32>
    %95 = vector.broadcast %94 : vector<64x1xf32> to vector<64x64xf32>
    %96 = arith.mulf %91, %95 : vector<64x64xf32>
    %97 = arith.truncf %96 : vector<64x64xf32> to vector<64x64xbf16>
    %98 = arith.truncf %82 : vector<64x8xf32> to vector<64x8xbf16>
    %cst_32 = arith.constant dense<0.000000e+00> : vector<64x8xf32>
    %99 = tpu.matmul %97, %98, %cst_32 {dimension_numbers = #tpu.dot_dimension_numbers<[1], [0], [0], [1], [0, 0, 1, 1], [], []>} : vector<64x64xbf16>, vector<64x8xbf16>, vector<64x8xf32> -> vector<64x8xf32>
    %100 = vector.extract_strided_slice %33 {offsets = [0, 24], sizes = [64, 8], strides = [1, 1]} : vector<64x96xf32> to vector<64x8xf32>
    %cst_33 = arith.constant 0.353553385 : f32
    %101 = vector.broadcast %cst_33 : f32 to vector<64x8xf32>
    %102 = arith.mulf %100, %101 : vector<64x8xf32>
    %103 = vector.extract_strided_slice %33 {offsets = [0, 56], sizes = [64, 8], strides = [1, 1]} : vector<64x96xf32> to vector<64x8xf32>
    %104 = vector.extract_strided_slice %33 {offsets = [0, 88], sizes = [64, 8], strides = [1, 1]} : vector<64x96xf32> to vector<64x8xf32>
    %105 = arith.truncf %102 : vector<64x8xf32> to vector<64x8xbf16>
    %106 = arith.truncf %103 : vector<64x8xf32> to vector<64x8xbf16>
    %cst_34 = arith.constant dense<0.000000e+00> : vector<64x64xf32>
    %107 = tpu.matmul %105, %106, %cst_34 {dimension_numbers = #tpu.dot_dimension_numbers<[1], [1], [0], [0], [0, 0, 1, 0], [], []>} : vector<64x8xbf16>, vector<64x8xbf16>, vector<64x64xf32> -> vector<64x64xf32>
    %108 = arith.addf %107, %0 : vector<64x64xf32>
    %cst_35 = arith.constant dense<0xFF800000> : vector<64xf32>
    %109 = vector.multi_reduction <maximumf>, %108, %cst_35 [1] : vector<64x64xf32> to vector<64xf32>
    %110 = vector.shape_cast %109 : vector<64xf32> to vector<64x1xf32>
    %111 = vector.broadcast %110 : vector<64x1xf32> to vector<64x64xf32>
    %112 = arith.subf %108, %111 : vector<64x64xf32>
    %113 = math.exp %112 : vector<64x64xf32>
    %cst_36 = arith.constant dense<0.000000e+00> : vector<64xf32>
    %114 = vector.multi_reduction <add>, %113, %cst_36 [1] : vector<64x64xf32> to vector<64xf32>
    %115 = vector.shape_cast %114 : vector<64xf32> to vector<64x1xf32>
    %116 = tpu.reciprocal %115 {approx = true} : vector<64x1xf32> -> vector<64x1xf32>
    %117 = vector.broadcast %116 : vector<64x1xf32> to vector<64x64xf32>
    %118 = arith.mulf %113, %117 : vector<64x64xf32>
    %119 = arith.truncf %118 : vector<64x64xf32> to vector<64x64xbf16>
    %120 = arith.truncf %104 : vector<64x8xf32> to vector<64x8xbf16>
    %cst_37 = arith.constant dense<0.000000e+00> : vector<64x8xf32>
    %121 = tpu.matmul %119, %120, %cst_37 {dimension_numbers = #tpu.dot_dimension_numbers<[1], [0], [0], [1], [0, 0, 1, 1], [], []>} : vector<64x64xbf16>, vector<64x8xbf16>, vector<64x8xf32> -> vector<64x8xf32>
    %122 = tpu.concatenate %55, %77, %99, %121 in 1 : vector<64x8xf32>, vector<64x8xf32>, vector<64x8xf32>, vector<64x8xf32> -> vector<64x32xf32>
    %123 = arith.truncf %122 : vector<64x32xf32> to vector<64x32xbf16>
    %c0_38 = arith.constant 0 : index
    %c0_39 = arith.constant 0 : index
    %c0_40 = arith.constant 0 : index
    %124 = vector.load %arg7[%c0_38, %c0_39, %c0_40] : memref<2x32x32xbf16, #tpu.memory_space<vmem>>, vector<1x32x32xbf16>
    %125 = vector.shape_cast %124 : vector<1x32x32xbf16> to vector<32x32xbf16>
    %cst_41 = arith.constant dense<0.000000e+00> : vector<64x32xf32>
    %126 = tpu.matmul %123, %125, %cst_41 {dimension_numbers = #tpu.dot_dimension_numbers<[1], [0], [0], [1], [0, 0, 1, 1], [], []>} : vector<64x32xbf16>, vector<32x32xbf16>, vector<64x32xf32> -> vector<64x32xf32>
    %c0_42 = arith.constant 0 : index
    %c0_43 = arith.constant 0 : index
    %c0_44 = arith.constant 0 : index
    %127 = vector.load %arg8[%c0_42, %c0_43, %c0_44] : memref<2x1x32xf32, #tpu.memory_space<vmem>>, vector<1x1x32xf32>
    %128 = vector.shape_cast %127 : vector<1x1x32xf32> to vector<1x32xf32>
    %129 = vector.broadcast %128 : vector<1x32xf32> to vector<64x32xf32>
    %130 = arith.addf %126, %129 : vector<64x32xf32>
    %131 = arith.addf %130, %25 : vector<64x32xf32>
    %c0_45 = arith.constant 0 : index
    %c0_46 = arith.constant 0 : index
    %c0_47 = arith.constant 0 : index
    %132 = vector.load %arg9[%c0_45, %c0_46, %c0_47] : memref<2x1x32xf32, #tpu.memory_space<vmem>>, vector<1x1x32xf32>
    %133 = vector.shape_cast %132 : vector<1x1x32xf32> to vector<1x32xf32>
    %c0_48 = arith.constant 0 : index
    %c0_49 = arith.constant 0 : index
    %c0_50 = arith.constant 0 : index
    %134 = vector.load %arg10[%c0_48, %c0_49, %c0_50] : memref<2x1x32xf32, #tpu.memory_space<vmem>>, vector<1x1x32xf32>
    %135 = vector.shape_cast %134 : vector<1x1x32xf32> to vector<1x32xf32>
    %cst_51 = arith.constant dense<0.000000e+00> : vector<64xf32>
    %136 = vector.multi_reduction <add>, %131, %cst_51 [1] : vector<64x32xf32> to vector<64xf32>
    %137 = vector.shape_cast %136 : vector<64xf32> to vector<64x1xf32>
    %cst_52 = arith.constant 3.200000e+01 : f32
    %138 = vector.broadcast %cst_52 : f32 to vector<64x1xf32>
    %139 = arith.divf %137, %138 : vector<64x1xf32>
    %140 = vector.broadcast %139 : vector<64x1xf32> to vector<64x32xf32>
    %141 = arith.subf %131, %140 : vector<64x32xf32>
    %142 = arith.mulf %141, %141 : vector<64x32xf32>
    %cst_53 = arith.constant dense<0.000000e+00> : vector<64xf32>
    %143 = vector.multi_reduction <add>, %142, %cst_53 [1] : vector<64x32xf32> to vector<64xf32>
    %144 = vector.shape_cast %143 : vector<64xf32> to vector<64x1xf32>
    %cst_54 = arith.constant 3.200000e+01 : f32
    %145 = vector.broadcast %cst_54 : f32 to vector<64x1xf32>
    %146 = arith.divf %144, %145 : vector<64x1xf32>
    %147 = vector.broadcast %139 : vector<64x1xf32> to vector<64x32xf32>
    %148 = arith.subf %131, %147 : vector<64x32xf32>
    %cst_55 = arith.constant 9.99999996E-13 : f32
    %149 = vector.broadcast %cst_55 : f32 to vector<64x1xf32>
    %150 = arith.addf %146, %149 : vector<64x1xf32>
    %151 = math.rsqrt %150 : vector<64x1xf32>
    %152 = vector.broadcast %151 : vector<64x1xf32> to vector<64x32xf32>
    %153 = arith.mulf %148, %152 : vector<64x32xf32>
    %154 = vector.broadcast %133 : vector<1x32xf32> to vector<64x32xf32>
    %155 = arith.mulf %153, %154 : vector<64x32xf32>
    %156 = vector.broadcast %135 : vector<1x32xf32> to vector<64x32xf32>
    %157 = arith.addf %155, %156 : vector<64x32xf32>
    %158 = arith.truncf %157 : vector<64x32xf32> to vector<64x32xbf16>
    %c0_56 = arith.constant 0 : index
    %c0_57 = arith.constant 0 : index
    %c0_58 = arith.constant 0 : index
    %159 = vector.load %arg11[%c0_56, %c0_57, %c0_58] : memref<2x32x64xbf16, #tpu.memory_space<vmem>>, vector<1x32x64xbf16>
    %160 = vector.shape_cast %159 : vector<1x32x64xbf16> to vector<32x64xbf16>
    %cst_59 = arith.constant dense<0.000000e+00> : vector<64x64xf32>
    %161 = tpu.matmul %158, %160, %cst_59 {dimension_numbers = #tpu.dot_dimension_numbers<[1], [0], [0], [1], [0, 0, 1, 1], [], []>} : vector<64x32xbf16>, vector<32x64xbf16>, vector<64x64xf32> -> vector<64x64xf32>
    %c0_60 = arith.constant 0 : index
    %c0_61 = arith.constant 0 : index
    %c0_62 = arith.constant 0 : index
    %162 = vector.load %arg12[%c0_60, %c0_61, %c0_62] : memref<2x1x64xf32, #tpu.memory_space<vmem>>, vector<1x1x64xf32>
    %163 = vector.shape_cast %162 : vector<1x1x64xf32> to vector<1x64xf32>
    %164 = vector.broadcast %163 : vector<1x64xf32> to vector<64x64xf32>
    %165 = arith.addf %161, %164 : vector<64x64xf32>
    %cst_63 = arith.constant 5.000000e-01 : f32
    %166 = vector.broadcast %cst_63 : f32 to vector<64x64xf32>
    %167 = arith.mulf %166, %165 : vector<64x64xf32>
    %cst_64 = arith.constant 4.471500e-02 : f32
    %168 = vector.broadcast %cst_64 : f32 to vector<64x64xf32>
    %169 = arith.mulf %168, %165 : vector<64x64xf32>
    %170 = arith.mulf %169, %165 : vector<64x64xf32>
    %171 = arith.mulf %170, %165 : vector<64x64xf32>
    %172 = arith.addf %165, %171 : vector<64x64xf32>
    %cst_65 = arith.constant 0.797884583 : f32
    %173 = vector.broadcast %cst_65 : f32 to vector<64x64xf32>
    %174 = arith.mulf %173, %172 : vector<64x64xf32>
    %175 = math.tanh %174 : vector<64x64xf32>
    %cst_66 = arith.constant 1.000000e+00 : f32
    %176 = vector.broadcast %cst_66 : f32 to vector<64x64xf32>
    %177 = arith.addf %176, %175 : vector<64x64xf32>
    %178 = arith.mulf %167, %177 : vector<64x64xf32>
    %179 = arith.truncf %178 : vector<64x64xf32> to vector<64x64xbf16>
    %c0_67 = arith.constant 0 : index
    %c0_68 = arith.constant 0 : index
    %c0_69 = arith.constant 0 : index
    %180 = vector.load %arg13[%c0_67, %c0_68, %c0_69] : memref<2x64x32xbf16, #tpu.memory_space<vmem>>, vector<1x64x32xbf16>
    %181 = vector.shape_cast %180 : vector<1x64x32xbf16> to vector<64x32xbf16>
    %cst_70 = arith.constant dense<0.000000e+00> : vector<64x32xf32>
    %182 = tpu.matmul %179, %181, %cst_70 {dimension_numbers = #tpu.dot_dimension_numbers<[1], [0], [0], [1], [0, 0, 1, 1], [], []>} : vector<64x64xbf16>, vector<64x32xbf16>, vector<64x32xf32> -> vector<64x32xf32>
    %c0_71 = arith.constant 0 : index
    %c0_72 = arith.constant 0 : index
    %c0_73 = arith.constant 0 : index
    %183 = vector.load %arg14[%c0_71, %c0_72, %c0_73] : memref<2x1x32xf32, #tpu.memory_space<vmem>>, vector<1x1x32xf32>
    %184 = vector.shape_cast %183 : vector<1x1x32xf32> to vector<1x32xf32>
    %185 = vector.broadcast %184 : vector<1x32xf32> to vector<64x32xf32>
    %186 = arith.addf %182, %185 : vector<64x32xf32>
    %187 = arith.addf %186, %157 : vector<64x32xf32>
    %c0_74 = arith.constant 0 : index
    %c0_75 = arith.constant 0 : index
    %c0_76 = arith.constant 0 : index
    %188 = vector.load %arg15[%c0_74, %c0_75, %c0_76] : memref<2x1x32xf32, #tpu.memory_space<vmem>>, vector<1x1x32xf32>
    %189 = vector.shape_cast %188 : vector<1x1x32xf32> to vector<1x32xf32>
    %c0_77 = arith.constant 0 : index
    %c0_78 = arith.constant 0 : index
    %c0_79 = arith.constant 0 : index
    %190 = vector.load %arg16[%c0_77, %c0_78, %c0_79] : memref<2x1x32xf32, #tpu.memory_space<vmem>>, vector<1x1x32xf32>
    %191 = vector.shape_cast %190 : vector<1x1x32xf32> to vector<1x32xf32>
    %cst_80 = arith.constant dense<0.000000e+00> : vector<64xf32>
    %192 = vector.multi_reduction <add>, %187, %cst_80 [1] : vector<64x32xf32> to vector<64xf32>
    %193 = vector.shape_cast %192 : vector<64xf32> to vector<64x1xf32>
    %cst_81 = arith.constant 3.200000e+01 : f32
    %194 = vector.broadcast %cst_81 : f32 to vector<64x1xf32>
    %195 = arith.divf %193, %194 : vector<64x1xf32>
    %196 = vector.broadcast %195 : vector<64x1xf32> to vector<64x32xf32>
    %197 = arith.subf %187, %196 : vector<64x32xf32>
    %198 = arith.mulf %197, %197 : vector<64x32xf32>
    %cst_82 = arith.constant dense<0.000000e+00> : vector<64xf32>
    %199 = vector.multi_reduction <add>, %198, %cst_82 [1] : vector<64x32xf32> to vector<64xf32>
    %200 = vector.shape_cast %199 : vector<64xf32> to vector<64x1xf32>
    %cst_83 = arith.constant 3.200000e+01 : f32
    %201 = vector.broadcast %cst_83 : f32 to vector<64x1xf32>
    %202 = arith.divf %200, %201 : vector<64x1xf32>
    %203 = vector.broadcast %195 : vector<64x1xf32> to vector<64x32xf32>
    %204 = arith.subf %187, %203 : vector<64x32xf32>
    %cst_84 = arith.constant 9.99999996E-13 : f32
    %205 = vector.broadcast %cst_84 : f32 to vector<64x1xf32>
    %206 = arith.addf %202, %205 : vector<64x1xf32>
    %207 = math.rsqrt %206 : vector<64x1xf32>
    %208 = vector.broadcast %207 : vector<64x1xf32> to vector<64x32xf32>
    %209 = arith.mulf %204, %208 : vector<64x32xf32>
    %210 = vector.broadcast %189 : vector<1x32xf32> to vector<64x32xf32>
    %211 = arith.mulf %209, %210 : vector<64x32xf32>
    %212 = vector.broadcast %191 : vector<1x32xf32> to vector<64x32xf32>
    %213 = arith.addf %211, %212 : vector<64x32xf32>
    %214 = arith.truncf %213 : vector<64x32xf32> to vector<64x32xbf16>
    %c1 = arith.constant 1 : index
    %c0_85 = arith.constant 0 : index
    %c0_86 = arith.constant 0 : index
    %215 = vector.load %arg5[%c1, %c0_85, %c0_86] : memref<2x32x96xbf16, #tpu.memory_space<vmem>>, vector<1x32x96xbf16>
    %216 = vector.shape_cast %215 : vector<1x32x96xbf16> to vector<32x96xbf16>
    %cst_87 = arith.constant dense<0.000000e+00> : vector<64x96xf32>
    %217 = tpu.matmul %214, %216, %cst_87 {dimension_numbers = #tpu.dot_dimension_numbers<[1], [0], [0], [1], [0, 0, 1, 1], [], []>} : vector<64x32xbf16>, vector<32x96xbf16>, vector<64x96xf32> -> vector<64x96xf32>
    %c1_88 = arith.constant 1 : index
    %c0_89 = arith.constant 0 : index
    %c0_90 = arith.constant 0 : index
    %218 = vector.load %arg6[%c1_88, %c0_89, %c0_90] : memref<2x1x96xf32, #tpu.memory_space<vmem>>, vector<1x1x96xf32>
    %219 = vector.shape_cast %218 : vector<1x1x96xf32> to vector<1x96xf32>
    %220 = vector.broadcast %219 : vector<1x96xf32> to vector<64x96xf32>
    %221 = arith.addf %217, %220 : vector<64x96xf32>
    %222 = vector.extract_strided_slice %221 {offsets = [0, 0], sizes = [64, 8], strides = [1, 1]} : vector<64x96xf32> to vector<64x8xf32>
    %cst_91 = arith.constant 0.353553385 : f32
    %223 = vector.broadcast %cst_91 : f32 to vector<64x8xf32>
    %224 = arith.mulf %222, %223 : vector<64x8xf32>
    %225 = vector.extract_strided_slice %221 {offsets = [0, 32], sizes = [64, 8], strides = [1, 1]} : vector<64x96xf32> to vector<64x8xf32>
    %226 = vector.extract_strided_slice %221 {offsets = [0, 64], sizes = [64, 8], strides = [1, 1]} : vector<64x96xf32> to vector<64x8xf32>
    %227 = arith.truncf %224 : vector<64x8xf32> to vector<64x8xbf16>
    %228 = arith.truncf %225 : vector<64x8xf32> to vector<64x8xbf16>
    %cst_92 = arith.constant dense<0.000000e+00> : vector<64x64xf32>
    %229 = tpu.matmul %227, %228, %cst_92 {dimension_numbers = #tpu.dot_dimension_numbers<[1], [1], [0], [0], [0, 0, 1, 0], [], []>} : vector<64x8xbf16>, vector<64x8xbf16>, vector<64x64xf32> -> vector<64x64xf32>
    %230 = arith.addf %229, %0 : vector<64x64xf32>
    %cst_93 = arith.constant dense<0xFF800000> : vector<64xf32>
    %231 = vector.multi_reduction <maximumf>, %230, %cst_93 [1] : vector<64x64xf32> to vector<64xf32>
    %232 = vector.shape_cast %231 : vector<64xf32> to vector<64x1xf32>
    %233 = vector.broadcast %232 : vector<64x1xf32> to vector<64x64xf32>
    %234 = arith.subf %230, %233 : vector<64x64xf32>
    %235 = math.exp %234 : vector<64x64xf32>
    %cst_94 = arith.constant dense<0.000000e+00> : vector<64xf32>
    %236 = vector.multi_reduction <add>, %235, %cst_94 [1] : vector<64x64xf32> to vector<64xf32>
    %237 = vector.shape_cast %236 : vector<64xf32> to vector<64x1xf32>
    %238 = tpu.reciprocal %237 {approx = true} : vector<64x1xf32> -> vector<64x1xf32>
    %239 = vector.broadcast %238 : vector<64x1xf32> to vector<64x64xf32>
    %240 = arith.mulf %235, %239 : vector<64x64xf32>
    %241 = arith.truncf %240 : vector<64x64xf32> to vector<64x64xbf16>
    %242 = arith.truncf %226 : vector<64x8xf32> to vector<64x8xbf16>
    %cst_95 = arith.constant dense<0.000000e+00> : vector<64x8xf32>
    %243 = tpu.matmul %241, %242, %cst_95 {dimension_numbers = #tpu.dot_dimension_numbers<[1], [0], [0], [1], [0, 0, 1, 1], [], []>} : vector<64x64xbf16>, vector<64x8xbf16>, vector<64x8xf32> -> vector<64x8xf32>
    %244 = vector.extract_strided_slice %221 {offsets = [0, 8], sizes = [64, 8], strides = [1, 1]} : vector<64x96xf32> to vector<64x8xf32>
    %cst_96 = arith.constant 0.353553385 : f32
    %245 = vector.broadcast %cst_96 : f32 to vector<64x8xf32>
    %246 = arith.mulf %244, %245 : vector<64x8xf32>
    %247 = vector.extract_strided_slice %221 {offsets = [0, 40], sizes = [64, 8], strides = [1, 1]} : vector<64x96xf32> to vector<64x8xf32>
    %248 = vector.extract_strided_slice %221 {offsets = [0, 72], sizes = [64, 8], strides = [1, 1]} : vector<64x96xf32> to vector<64x8xf32>
    %249 = arith.truncf %246 : vector<64x8xf32> to vector<64x8xbf16>
    %250 = arith.truncf %247 : vector<64x8xf32> to vector<64x8xbf16>
    %cst_97 = arith.constant dense<0.000000e+00> : vector<64x64xf32>
    %251 = tpu.matmul %249, %250, %cst_97 {dimension_numbers = #tpu.dot_dimension_numbers<[1], [1], [0], [0], [0, 0, 1, 0], [], []>} : vector<64x8xbf16>, vector<64x8xbf16>, vector<64x64xf32> -> vector<64x64xf32>
    %252 = arith.addf %251, %0 : vector<64x64xf32>
    %cst_98 = arith.constant dense<0xFF800000> : vector<64xf32>
    %253 = vector.multi_reduction <maximumf>, %252, %cst_98 [1] : vector<64x64xf32> to vector<64xf32>
    %254 = vector.shape_cast %253 : vector<64xf32> to vector<64x1xf32>
    %255 = vector.broadcast %254 : vector<64x1xf32> to vector<64x64xf32>
    %256 = arith.subf %252, %255 : vector<64x64xf32>
    %257 = math.exp %256 : vector<64x64xf32>
    %cst_99 = arith.constant dense<0.000000e+00> : vector<64xf32>
    %258 = vector.multi_reduction <add>, %257, %cst_99 [1] : vector<64x64xf32> to vector<64xf32>
    %259 = vector.shape_cast %258 : vector<64xf32> to vector<64x1xf32>
    %260 = tpu.reciprocal %259 {approx = true} : vector<64x1xf32> -> vector<64x1xf32>
    %261 = vector.broadcast %260 : vector<64x1xf32> to vector<64x64xf32>
    %262 = arith.mulf %257, %261 : vector<64x64xf32>
    %263 = arith.truncf %262 : vector<64x64xf32> to vector<64x64xbf16>
    %264 = arith.truncf %248 : vector<64x8xf32> to vector<64x8xbf16>
    %cst_100 = arith.constant dense<0.000000e+00> : vector<64x8xf32>
    %265 = tpu.matmul %263, %264, %cst_100 {dimension_numbers = #tpu.dot_dimension_numbers<[1], [0], [0], [1], [0, 0, 1, 1], [], []>} : vector<64x64xbf16>, vector<64x8xbf16>, vector<64x8xf32> -> vector<64x8xf32>
    %266 = vector.extract_strided_slice %221 {offsets = [0, 16], sizes = [64, 8], strides = [1, 1]} : vector<64x96xf32> to vector<64x8xf32>
    %cst_101 = arith.constant 0.353553385 : f32
    %267 = vector.broadcast %cst_101 : f32 to vector<64x8xf32>
    %268 = arith.mulf %266, %267 : vector<64x8xf32>
    %269 = vector.extract_strided_slice %221 {offsets = [0, 48], sizes = [64, 8], strides = [1, 1]} : vector<64x96xf32> to vector<64x8xf32>
    %270 = vector.extract_strided_slice %221 {offsets = [0, 80], sizes = [64, 8], strides = [1, 1]} : vector<64x96xf32> to vector<64x8xf32>
    %271 = arith.truncf %268 : vector<64x8xf32> to vector<64x8xbf16>
    %272 = arith.truncf %269 : vector<64x8xf32> to vector<64x8xbf16>
    %cst_102 = arith.constant dense<0.000000e+00> : vector<64x64xf32>
    %273 = tpu.matmul %271, %272, %cst_102 {dimension_numbers = #tpu.dot_dimension_numbers<[1], [1], [0], [0], [0, 0, 1, 0], [], []>} : vector<64x8xbf16>, vector<64x8xbf16>, vector<64x64xf32> -> vector<64x64xf32>
    %274 = arith.addf %273, %0 : vector<64x64xf32>
    %cst_103 = arith.constant dense<0xFF800000> : vector<64xf32>
    %275 = vector.multi_reduction <maximumf>, %274, %cst_103 [1] : vector<64x64xf32> to vector<64xf32>
    %276 = vector.shape_cast %275 : vector<64xf32> to vector<64x1xf32>
    %277 = vector.broadcast %276 : vector<64x1xf32> to vector<64x64xf32>
    %278 = arith.subf %274, %277 : vector<64x64xf32>
    %279 = math.exp %278 : vector<64x64xf32>
    %cst_104 = arith.constant dense<0.000000e+00> : vector<64xf32>
    %280 = vector.multi_reduction <add>, %279, %cst_104 [1] : vector<64x64xf32> to vector<64xf32>
    %281 = vector.shape_cast %280 : vector<64xf32> to vector<64x1xf32>
    %282 = tpu.reciprocal %281 {approx = true} : vector<64x1xf32> -> vector<64x1xf32>
    %283 = vector.broadcast %282 : vector<64x1xf32> to vector<64x64xf32>
    %284 = arith.mulf %279, %283 : vector<64x64xf32>
    %285 = arith.truncf %284 : vector<64x64xf32> to vector<64x64xbf16>
    %286 = arith.truncf %270 : vector<64x8xf32> to vector<64x8xbf16>
    %cst_105 = arith.constant dense<0.000000e+00> : vector<64x8xf32>
    %287 = tpu.matmul %285, %286, %cst_105 {dimension_numbers = #tpu.dot_dimension_numbers<[1], [0], [0], [1], [0, 0, 1, 1], [], []>} : vector<64x64xbf16>, vector<64x8xbf16>, vector<64x8xf32> -> vector<64x8xf32>
    %288 = vector.extract_strided_slice %221 {offsets = [0, 24], sizes = [64, 8], strides = [1, 1]} : vector<64x96xf32> to vector<64x8xf32>
    %cst_106 = arith.constant 0.353553385 : f32
    %289 = vector.broadcast %cst_106 : f32 to vector<64x8xf32>
    %290 = arith.mulf %288, %289 : vector<64x8xf32>
    %291 = vector.extract_strided_slice %221 {offsets = [0, 56], sizes = [64, 8], strides = [1, 1]} : vector<64x96xf32> to vector<64x8xf32>
    %292 = vector.extract_strided_slice %221 {offsets = [0, 88], sizes = [64, 8], strides = [1, 1]} : vector<64x96xf32> to vector<64x8xf32>
    %293 = arith.truncf %290 : vector<64x8xf32> to vector<64x8xbf16>
    %294 = arith.truncf %291 : vector<64x8xf32> to vector<64x8xbf16>
    %cst_107 = arith.constant dense<0.000000e+00> : vector<64x64xf32>
    %295 = tpu.matmul %293, %294, %cst_107 {dimension_numbers = #tpu.dot_dimension_numbers<[1], [1], [0], [0], [0, 0, 1, 0], [], []>} : vector<64x8xbf16>, vector<64x8xbf16>, vector<64x64xf32> -> vector<64x64xf32>
    %296 = arith.addf %295, %0 : vector<64x64xf32>
    %cst_108 = arith.constant dense<0xFF800000> : vector<64xf32>
    %297 = vector.multi_reduction <maximumf>, %296, %cst_108 [1] : vector<64x64xf32> to vector<64xf32>
    %298 = vector.shape_cast %297 : vector<64xf32> to vector<64x1xf32>
    %299 = vector.broadcast %298 : vector<64x1xf32> to vector<64x64xf32>
    %300 = arith.subf %296, %299 : vector<64x64xf32>
    %301 = math.exp %300 : vector<64x64xf32>
    %cst_109 = arith.constant dense<0.000000e+00> : vector<64xf32>
    %302 = vector.multi_reduction <add>, %301, %cst_109 [1] : vector<64x64xf32> to vector<64xf32>
    %303 = vector.shape_cast %302 : vector<64xf32> to vector<64x1xf32>
    %304 = tpu.reciprocal %303 {approx = true} : vector<64x1xf32> -> vector<64x1xf32>
    %305 = vector.broadcast %304 : vector<64x1xf32> to vector<64x64xf32>
    %306 = arith.mulf %301, %305 : vector<64x64xf32>
    %307 = arith.truncf %306 : vector<64x64xf32> to vector<64x64xbf16>
    %308 = arith.truncf %292 : vector<64x8xf32> to vector<64x8xbf16>
    %cst_110 = arith.constant dense<0.000000e+00> : vector<64x8xf32>
    %309 = tpu.matmul %307, %308, %cst_110 {dimension_numbers = #tpu.dot_dimension_numbers<[1], [0], [0], [1], [0, 0, 1, 1], [], []>} : vector<64x64xbf16>, vector<64x8xbf16>, vector<64x8xf32> -> vector<64x8xf32>
    %310 = tpu.concatenate %243, %265, %287, %309 in 1 : vector<64x8xf32>, vector<64x8xf32>, vector<64x8xf32>, vector<64x8xf32> -> vector<64x32xf32>
    %311 = arith.truncf %310 : vector<64x32xf32> to vector<64x32xbf16>
    %c1_111 = arith.constant 1 : index
    %c0_112 = arith.constant 0 : index
    %c0_113 = arith.constant 0 : index
    %312 = vector.load %arg7[%c1_111, %c0_112, %c0_113] : memref<2x32x32xbf16, #tpu.memory_space<vmem>>, vector<1x32x32xbf16>
    %313 = vector.shape_cast %312 : vector<1x32x32xbf16> to vector<32x32xbf16>
    %cst_114 = arith.constant dense<0.000000e+00> : vector<64x32xf32>
    %314 = tpu.matmul %311, %313, %cst_114 {dimension_numbers = #tpu.dot_dimension_numbers<[1], [0], [0], [1], [0, 0, 1, 1], [], []>} : vector<64x32xbf16>, vector<32x32xbf16>, vector<64x32xf32> -> vector<64x32xf32>
    %c1_115 = arith.constant 1 : index
    %c0_116 = arith.constant 0 : index
    %c0_117 = arith.constant 0 : index
    %315 = vector.load %arg8[%c1_115, %c0_116, %c0_117] : memref<2x1x32xf32, #tpu.memory_space<vmem>>, vector<1x1x32xf32>
    %316 = vector.shape_cast %315 : vector<1x1x32xf32> to vector<1x32xf32>
    %317 = vector.broadcast %316 : vector<1x32xf32> to vector<64x32xf32>
    %318 = arith.addf %314, %317 : vector<64x32xf32>
    %319 = arith.addf %318, %213 : vector<64x32xf32>
    %c1_118 = arith.constant 1 : index
    %c0_119 = arith.constant 0 : index
    %c0_120 = arith.constant 0 : index
    %320 = vector.load %arg9[%c1_118, %c0_119, %c0_120] : memref<2x1x32xf32, #tpu.memory_space<vmem>>, vector<1x1x32xf32>
    %321 = vector.shape_cast %320 : vector<1x1x32xf32> to vector<1x32xf32>
    %c1_121 = arith.constant 1 : index
    %c0_122 = arith.constant 0 : index
    %c0_123 = arith.constant 0 : index
    %322 = vector.load %arg10[%c1_121, %c0_122, %c0_123] : memref<2x1x32xf32, #tpu.memory_space<vmem>>, vector<1x1x32xf32>
    %323 = vector.shape_cast %322 : vector<1x1x32xf32> to vector<1x32xf32>
    %cst_124 = arith.constant dense<0.000000e+00> : vector<64xf32>
    %324 = vector.multi_reduction <add>, %319, %cst_124 [1] : vector<64x32xf32> to vector<64xf32>
    %325 = vector.shape_cast %324 : vector<64xf32> to vector<64x1xf32>
    %cst_125 = arith.constant 3.200000e+01 : f32
    %326 = vector.broadcast %cst_125 : f32 to vector<64x1xf32>
    %327 = arith.divf %325, %326 : vector<64x1xf32>
    %328 = vector.broadcast %327 : vector<64x1xf32> to vector<64x32xf32>
    %329 = arith.subf %319, %328 : vector<64x32xf32>
    %330 = arith.mulf %329, %329 : vector<64x32xf32>
    %cst_126 = arith.constant dense<0.000000e+00> : vector<64xf32>
    %331 = vector.multi_reduction <add>, %330, %cst_126 [1] : vector<64x32xf32> to vector<64xf32>
    %332 = vector.shape_cast %331 : vector<64xf32> to vector<64x1xf32>
    %cst_127 = arith.constant 3.200000e+01 : f32
    %333 = vector.broadcast %cst_127 : f32 to vector<64x1xf32>
    %334 = arith.divf %332, %333 : vector<64x1xf32>
    %335 = vector.broadcast %327 : vector<64x1xf32> to vector<64x32xf32>
    %336 = arith.subf %319, %335 : vector<64x32xf32>
    %cst_128 = arith.constant 9.99999996E-13 : f32
    %337 = vector.broadcast %cst_128 : f32 to vector<64x1xf32>
    %338 = arith.addf %334, %337 : vector<64x1xf32>
    %339 = math.rsqrt %338 : vector<64x1xf32>
    %340 = vector.broadcast %339 : vector<64x1xf32> to vector<64x32xf32>
    %341 = arith.mulf %336, %340 : vector<64x32xf32>
    %342 = vector.broadcast %321 : vector<1x32xf32> to vector<64x32xf32>
    %343 = arith.mulf %341, %342 : vector<64x32xf32>
    %344 = vector.broadcast %323 : vector<1x32xf32> to vector<64x32xf32>
    %345 = arith.addf %343, %344 : vector<64x32xf32>
    %346 = arith.truncf %345 : vector<64x32xf32> to vector<64x32xbf16>
    %c1_129 = arith.constant 1 : index
    %c0_130 = arith.constant 0 : index
    %c0_131 = arith.constant 0 : index
    %347 = vector.load %arg11[%c1_129, %c0_130, %c0_131] : memref<2x32x64xbf16, #tpu.memory_space<vmem>>, vector<1x32x64xbf16>
    %348 = vector.shape_cast %347 : vector<1x32x64xbf16> to vector<32x64xbf16>
    %cst_132 = arith.constant dense<0.000000e+00> : vector<64x64xf32>
    %349 = tpu.matmul %346, %348, %cst_132 {dimension_numbers = #tpu.dot_dimension_numbers<[1], [0], [0], [1], [0, 0, 1, 1], [], []>} : vector<64x32xbf16>, vector<32x64xbf16>, vector<64x64xf32> -> vector<64x64xf32>
    %c1_133 = arith.constant 1 : index
    %c0_134 = arith.constant 0 : index
    %c0_135 = arith.constant 0 : index
    %350 = vector.load %arg12[%c1_133, %c0_134, %c0_135] : memref<2x1x64xf32, #tpu.memory_space<vmem>>, vector<1x1x64xf32>
    %351 = vector.shape_cast %350 : vector<1x1x64xf32> to vector<1x64xf32>
    %352 = vector.broadcast %351 : vector<1x64xf32> to vector<64x64xf32>
    %353 = arith.addf %349, %352 : vector<64x64xf32>
    %cst_136 = arith.constant 5.000000e-01 : f32
    %354 = vector.broadcast %cst_136 : f32 to vector<64x64xf32>
    %355 = arith.mulf %354, %353 : vector<64x64xf32>
    %cst_137 = arith.constant 4.471500e-02 : f32
    %356 = vector.broadcast %cst_137 : f32 to vector<64x64xf32>
    %357 = arith.mulf %356, %353 : vector<64x64xf32>
    %358 = arith.mulf %357, %353 : vector<64x64xf32>
    %359 = arith.mulf %358, %353 : vector<64x64xf32>
    %360 = arith.addf %353, %359 : vector<64x64xf32>
    %cst_138 = arith.constant 0.797884583 : f32
    %361 = vector.broadcast %cst_138 : f32 to vector<64x64xf32>
    %362 = arith.mulf %361, %360 : vector<64x64xf32>
    %363 = math.tanh %362 : vector<64x64xf32>
    %cst_139 = arith.constant 1.000000e+00 : f32
    %364 = vector.broadcast %cst_139 : f32 to vector<64x64xf32>
    %365 = arith.addf %364, %363 : vector<64x64xf32>
    %366 = arith.mulf %355, %365 : vector<64x64xf32>
    %367 = arith.truncf %366 : vector<64x64xf32> to vector<64x64xbf16>
    %c1_140 = arith.constant 1 : index
    %c0_141 = arith.constant 0 : index
    %c0_142 = arith.constant 0 : index
    %368 = vector.load %arg13[%c1_140, %c0_141, %c0_142] : memref<2x64x32xbf16, #tpu.memory_space<vmem>>, vector<1x64x32xbf16>
    %369 = vector.shape_cast %368 : vector<1x64x32xbf16> to vector<64x32xbf16>
    %cst_143 = arith.constant dense<0.000000e+00> : vector<64x32xf32>
    %370 = tpu.matmul %367, %369, %cst_143 {dimension_numbers = #tpu.dot_dimension_numbers<[1], [0], [0], [1], [0, 0, 1, 1], [], []>} : vector<64x64xbf16>, vector<64x32xbf16>, vector<64x32xf32> -> vector<64x32xf32>
    %c1_144 = arith.constant 1 : index
    %c0_145 = arith.constant 0 : index
    %c0_146 = arith.constant 0 : index
    %371 = vector.load %arg14[%c1_144, %c0_145, %c0_146] : memref<2x1x32xf32, #tpu.memory_space<vmem>>, vector<1x1x32xf32>
    %372 = vector.shape_cast %371 : vector<1x1x32xf32> to vector<1x32xf32>
    %373 = vector.broadcast %372 : vector<1x32xf32> to vector<64x32xf32>
    %374 = arith.addf %370, %373 : vector<64x32xf32>
    %375 = arith.addf %374, %345 : vector<64x32xf32>
    %c1_147 = arith.constant 1 : index
    %c0_148 = arith.constant 0 : index
    %c0_149 = arith.constant 0 : index
    %376 = vector.load %arg15[%c1_147, %c0_148, %c0_149] : memref<2x1x32xf32, #tpu.memory_space<vmem>>, vector<1x1x32xf32>
    %377 = vector.shape_cast %376 : vector<1x1x32xf32> to vector<1x32xf32>
    %c1_150 = arith.constant 1 : index
    %c0_151 = arith.constant 0 : index
    %c0_152 = arith.constant 0 : index
    %378 = vector.load %arg16[%c1_150, %c0_151, %c0_152] : memref<2x1x32xf32, #tpu.memory_space<vmem>>, vector<1x1x32xf32>
    %379 = vector.shape_cast %378 : vector<1x1x32xf32> to vector<1x32xf32>
    %cst_153 = arith.constant dense<0.000000e+00> : vector<64xf32>
    %380 = vector.multi_reduction <add>, %375, %cst_153 [1] : vector<64x32xf32> to vector<64xf32>
    %381 = vector.shape_cast %380 : vector<64xf32> to vector<64x1xf32>
    %cst_154 = arith.constant 3.200000e+01 : f32
    %382 = vector.broadcast %cst_154 : f32 to vector<64x1xf32>
    %383 = arith.divf %381, %382 : vector<64x1xf32>
    %384 = vector.broadcast %383 : vector<64x1xf32> to vector<64x32xf32>
    %385 = arith.subf %375, %384 : vector<64x32xf32>
    %386 = arith.mulf %385, %385 : vector<64x32xf32>
    %cst_155 = arith.constant dense<0.000000e+00> : vector<64xf32>
    %387 = vector.multi_reduction <add>, %386, %cst_155 [1] : vector<64x32xf32> to vector<64xf32>
    %388 = vector.shape_cast %387 : vector<64xf32> to vector<64x1xf32>
    %cst_156 = arith.constant 3.200000e+01 : f32
    %389 = vector.broadcast %cst_156 : f32 to vector<64x1xf32>
    %390 = arith.divf %388, %389 : vector<64x1xf32>
    %391 = vector.broadcast %383 : vector<64x1xf32> to vector<64x32xf32>
    %392 = arith.subf %375, %391 : vector<64x32xf32>
    %cst_157 = arith.constant 9.99999996E-13 : f32
    %393 = vector.broadcast %cst_157 : f32 to vector<64x1xf32>
    %394 = arith.addf %390, %393 : vector<64x1xf32>
    %395 = math.rsqrt %394 : vector<64x1xf32>
    %396 = vector.broadcast %395 : vector<64x1xf32> to vector<64x32xf32>
    %397 = arith.mulf %392, %396 : vector<64x32xf32>
    %398 = vector.broadcast %377 : vector<1x32xf32> to vector<64x32xf32>
    %399 = arith.mulf %397, %398 : vector<64x32xf32>
    %400 = vector.broadcast %379 : vector<1x32xf32> to vector<64x32xf32>
    %401 = arith.addf %399, %400 : vector<64x32xf32>
    %c0_158 = arith.constant 0 : index
    %c0_159 = arith.constant 0 : index
    %402 = vector.load %arg17[%c0_158, %c0_159] : memref<8x64xf32, #tpu.memory_space<vmem>>, vector<8x64xf32>
    %cst_160 = arith.constant dense<0.000000e+00> : vector<8x32xf32>
    %403 = tpu.matmul %402, %401, %cst_160 {dimension_numbers = #tpu.dot_dimension_numbers<[1], [0], [0], [1], [0, 0, 1, 1], [], []>} : vector<8x64xf32>, vector<64x32xf32>, vector<8x32xf32> -> vector<8x32xf32>
    %404 = arith.truncf %403 : vector<8x32xf32> to vector<8x32xbf16>
    %c0_161 = arith.constant 0 : index
    %c0_162 = arith.constant 0 : index
    %405 = vector.load %arg18[%c0_161, %c0_162] : memref<32x32xbf16, #tpu.memory_space<vmem>>, vector<32x32xbf16>
    %cst_163 = arith.constant dense<0.000000e+00> : vector<8x32xf32>
    %406 = tpu.matmul %404, %405, %cst_163 {dimension_numbers = #tpu.dot_dimension_numbers<[1], [0], [0], [1], [0, 0, 1, 1], [], []>} : vector<8x32xbf16>, vector<32x32xbf16>, vector<8x32xf32> -> vector<8x32xf32>
    %c0_164 = arith.constant 0 : index
    %c0_165 = arith.constant 0 : index
    %407 = vector.load %arg19[%c0_164, %c0_165] : memref<1x32xf32, #tpu.memory_space<vmem>>, vector<1x32xf32>
    %408 = vector.broadcast %407 : vector<1x32xf32> to vector<8x32xf32>
    %409 = arith.addf %406, %408 : vector<8x32xf32>
    %cst_166 = arith.constant 5.000000e-01 : f32
    %410 = vector.broadcast %cst_166 : f32 to vector<8x32xf32>
    %411 = arith.mulf %410, %409 : vector<8x32xf32>
    %cst_167 = arith.constant 4.471500e-02 : f32
    %412 = vector.broadcast %cst_167 : f32 to vector<8x32xf32>
    %413 = arith.mulf %412, %409 : vector<8x32xf32>
    %414 = arith.mulf %413, %409 : vector<8x32xf32>
    %415 = arith.mulf %414, %409 : vector<8x32xf32>
    %416 = arith.addf %409, %415 : vector<8x32xf32>
    %cst_168 = arith.constant 0.797884583 : f32
    %417 = vector.broadcast %cst_168 : f32 to vector<8x32xf32>
    %418 = arith.mulf %417, %416 : vector<8x32xf32>
    %419 = math.tanh %418 : vector<8x32xf32>
    %cst_169 = arith.constant 1.000000e+00 : f32
    %420 = vector.broadcast %cst_169 : f32 to vector<8x32xf32>
    %421 = arith.addf %420, %419 : vector<8x32xf32>
    %422 = arith.mulf %411, %421 : vector<8x32xf32>
    %c0_170 = arith.constant 0 : index
    %c0_171 = arith.constant 0 : index
    %423 = vector.load %arg20[%c0_170, %c0_171] : memref<1x32xf32, #tpu.memory_space<vmem>>, vector<1x32xf32>
    %c0_172 = arith.constant 0 : index
    %c0_173 = arith.constant 0 : index
    %424 = vector.load %arg21[%c0_172, %c0_173] : memref<1x32xf32, #tpu.memory_space<vmem>>, vector<1x32xf32>
    %cst_174 = arith.constant dense<0.000000e+00> : vector<8xf32>
    %425 = vector.multi_reduction <add>, %422, %cst_174 [1] : vector<8x32xf32> to vector<8xf32>
    %426 = vector.shape_cast %425 : vector<8xf32> to vector<8x1xf32>
    %cst_175 = arith.constant 3.200000e+01 : f32
    %427 = vector.broadcast %cst_175 : f32 to vector<8x1xf32>
    %428 = arith.divf %426, %427 : vector<8x1xf32>
    %429 = vector.broadcast %428 : vector<8x1xf32> to vector<8x32xf32>
    %430 = arith.subf %422, %429 : vector<8x32xf32>
    %431 = arith.mulf %430, %430 : vector<8x32xf32>
    %cst_176 = arith.constant dense<0.000000e+00> : vector<8xf32>
    %432 = vector.multi_reduction <add>, %431, %cst_176 [1] : vector<8x32xf32> to vector<8xf32>
    %433 = vector.shape_cast %432 : vector<8xf32> to vector<8x1xf32>
    %cst_177 = arith.constant 3.200000e+01 : f32
    %434 = vector.broadcast %cst_177 : f32 to vector<8x1xf32>
    %435 = arith.divf %433, %434 : vector<8x1xf32>
    %436 = vector.broadcast %428 : vector<8x1xf32> to vector<8x32xf32>
    %437 = arith.subf %422, %436 : vector<8x32xf32>
    %cst_178 = arith.constant 9.99999996E-13 : f32
    %438 = vector.broadcast %cst_178 : f32 to vector<8x1xf32>
    %439 = arith.addf %435, %438 : vector<8x1xf32>
    %440 = math.rsqrt %439 : vector<8x1xf32>
    %441 = vector.broadcast %440 : vector<8x1xf32> to vector<8x32xf32>
    %442 = arith.mulf %437, %441 : vector<8x32xf32>
    %443 = vector.broadcast %423 : vector<1x32xf32> to vector<8x32xf32>
    %444 = arith.mulf %442, %443 : vector<8x32xf32>
    %445 = vector.broadcast %424 : vector<1x32xf32> to vector<8x32xf32>
    %446 = arith.addf %444, %445 : vector<8x32xf32>
    %447 = arith.truncf %446 : vector<8x32xf32> to vector<8x32xbf16>
    %c0_179 = arith.constant 0 : index
    %c0_180 = arith.constant 0 : index
    %448 = vector.load %arg22[%c0_179, %c0_180] : memref<32x64xbf16, #tpu.memory_space<vmem>>, vector<32x64xbf16>
    %cst_181 = arith.constant dense<0.000000e+00> : vector<8x64xf32>
    %449 = tpu.matmul %447, %448, %cst_181 {dimension_numbers = #tpu.dot_dimension_numbers<[1], [0], [0], [1], [0, 0, 1, 1], [], []>} : vector<8x32xbf16>, vector<32x64xbf16>, vector<8x64xf32> -> vector<8x64xf32>
    %c0_182 = arith.constant 0 : index
    %c0_183 = arith.constant 0 : index
    %450 = vector.load %arg23[%c0_182, %c0_183] : memref<1x64xf32, #tpu.memory_space<vmem>>, vector<1x64xf32>
    %451 = vector.broadcast %450 : vector<1x64xf32> to vector<8x64xf32>
    %452 = arith.addf %449, %451 : vector<8x64xf32>
    %cst_184 = arith.constant dense<0xFF800000> : vector<8xf32>
    %453 = vector.multi_reduction <maximumf>, %452, %cst_184 [1] : vector<8x64xf32> to vector<8xf32>
    %454 = vector.shape_cast %453 : vector<8xf32> to vector<8x1xf32>
    %455 = vector.broadcast %454 : vector<8x1xf32> to vector<8x64xf32>
    %456 = arith.subf %452, %455 : vector<8x64xf32>
    %457 = math.exp %456 : vector<8x64xf32>
    %cst_185 = arith.constant dense<0.000000e+00> : vector<8xf32>
    %458 = vector.multi_reduction <add>, %457, %cst_185 [1] : vector<8x64xf32> to vector<8xf32>
    %459 = vector.shape_cast %458 : vector<8xf32> to vector<8x1xf32>
    %460 = tpu.reciprocal %459 {approx = true} : vector<8x1xf32> -> vector<8x1xf32>
    %461 = vector.broadcast %460 : vector<8x1xf32> to vector<8x64xf32>
    %462 = arith.mulf %457, %461 : vector<8x64xf32>
    %463 = tpu.iota {dimensions = array<i32: 1>} : vector<8x64xi32>
    %c0_186 = arith.constant 0 : index
    %c0_187 = arith.constant 0 : index
    %464 = vector.load %arg24[%c0_186, %c0_187] : memref<8x1xi32, #tpu.memory_space<vmem>>, vector<8x1xi32>
    %465 = vector.broadcast %464 : vector<8x1xi32> to vector<8x64xi32>
    %466 = arith.cmpi eq, %463, %465 : vector<8x64xi32>
    %467 = arith.extui %466 : vector<8x64xi1> to vector<8x64xi32>
    %468 = arith.sitofp %467 : vector<8x64xi32> to vector<8x64xf32>
    %469 = arith.mulf %462, %468 : vector<8x64xf32>
    %cst_188 = arith.constant dense<0.000000e+00> : vector<8xf32>
    %470 = vector.multi_reduction <add>, %469, %cst_188 [1] : vector<8x64xf32> to vector<8xf32>
    %471 = vector.shape_cast %470 : vector<8xf32> to vector<8x1xf32>
    %c0_189 = arith.constant 0 : index
    %c0_190 = arith.constant 0 : index
    %472 = vector.load %arg25[%c0_189, %c0_190] : memref<8x1xf32, #tpu.memory_space<vmem>>, vector<8x1xf32>
    %473 = arith.mulf %471, %472 : vector<8x1xf32>
    %cst_191 = arith.constant dense<0.000000e+00> : vector<1xf32>
    %474 = vector.multi_reduction <add>, %473, %cst_191 [0] : vector<8x1xf32> to vector<1xf32>
    %475 = vector.shape_cast %474 : vector<1xf32> to vector<1x1xf32>
    %c0_192 = arith.constant 0 : index
    %c0_193 = arith.constant 0 : index
    %476 = vector.load %arg26[%c0_192, %c0_193] : memref<1x1xf32, #tpu.memory_space<vmem>>, vector<1x1xf32>
    tpu.vector_store %arg26[%c0_192, %c0_193], %475 {strides = array<i32>} : memref<1x1xf32, #tpu.memory_space<vmem>>, vector<1x1xf32>,
    return
  }
  func.func @transform_0(%arg0: i32) -> (i32, i32) {
    %c0_i32 = arith.constant 0 : i32
    %c0_i32_0 = arith.constant 0 : i32
    %c0_i32_1 = arith.constant 0 : i32
    return %c0_i32, %c0_i32_0 : i32, i32
  }
  func.func @transform_1(%arg0: i32) -> (i32, i32) {
    %c0_i32 = arith.constant 0 : i32
    %c0_i32_0 = arith.constant 0 : i32
    %c0_i32_1 = arith.constant 0 : i32
    return %c0_i32, %c0_i32_0 : i32, i32
  }
  func.func @transform_2(%arg0: i32) -> (i32, i32) {
    %c0_i32 = arith.constant 0 : i32
    %c0_i32_0 = arith.constant 0 : i32
    %c0_i32_1 = arith.constant 0 : i32
    return %c0_i32, %c0_i32_0 : i32, i32
  }
  func.func @transform_3(%arg0: i32) -> (i32, i32) {
    %c0_i32 = arith.constant 0 : i32
    %c0_i32_0 = arith.constant 0 : i32
    %c0_i32_1 = arith.constant 0 : i32
    return %c0_i32, %c0_i32_0 : i32, i32
  }
  func.func @transform_4(%arg0: i32) -> (i32, i32, i32) {
    %c0_i32 = arith.constant 0 : i32
    %c0_i32_0 = arith.constant 0 : i32
    %c0_i32_1 = arith.constant 0 : i32
    %c0_i32_2 = arith.constant 0 : i32
    return %c0_i32, %c0_i32_0, %c0_i32_1 : i32, i32, i32
  }
  func.func @transform_5(%arg0: i32) -> (i32, i32, i32) {
    %c0_i32 = arith.constant 0 : i32
    %c0_i32_0 = arith.constant 0 : i32
    %c0_i32_1 = arith.constant 0 : i32
    %c0_i32_2 = arith.constant 0 : i32
    return %c0_i32, %c0_i32_0, %c0_i32_1 : i32, i32, i32
  }
  func.func @transform_6(%arg0: i32) -> (i32, i32, i32) {
    %c0_i32 = arith.constant 0 : i32
    %c0_i32_0 = arith.constant 0 : i32
    %c0_i32_1 = arith.constant 0 : i32
    %c0_i32_2 = arith.constant 0 : i32
    return %c0_i32, %c0_i32_0, %c0_i32_1 : i32, i32, i32
  }
  func.func @transform_7(%arg0: i32) -> (i32, i32, i32) {
    %c0_i32 = arith.constant 0 : i32
    %c0_i32_0 = arith.constant 0 : i32
    %c0_i32_1 = arith.constant 0 : i32
    %c0_i32_2 = arith.constant 0 : i32
    return %c0_i32, %c0_i32_0, %c0_i32_1 : i32, i32, i32
  }
  func.func @transform_8(%arg0: i32) -> (i32, i32, i32) {
    %c0_i32 = arith.constant 0 : i32
    %c0_i32_0 = arith.constant 0 : i32
    %c0_i32_1 = arith.constant 0 : i32
    %c0_i32_2 = arith.constant 0 : i32
    return %c0_i32, %c0_i32_0, %c0_i32_1 : i32, i32, i32
  }
  func.func @transform_9(%arg0: i32) -> (i32, i32, i32) {
    %c0_i32 = arith.constant 0 : i32
    %c0_i32_0 = arith.constant 0 : i32
    %c0_i32_1 = arith.constant 0 : i32
    %c0_i32_2 = arith.constant 0 : i32
    return %c0_i32, %c0_i32_0, %c0_i32_1 : i32, i32, i32
  }
  func.func @transform_10(%arg0: i32) -> (i32, i32, i32) {
    %c0_i32 = arith.constant 0 : i32
    %c0_i32_0 = arith.constant 0 : i32
    %c0_i32_1 = arith.constant 0 : i32
    %c0_i32_2 = arith.constant 0 : i32
    return %c0_i32, %c0_i32_0, %c0_i32_1 : i32, i32, i32
  }
  func.func @transform_11(%arg0: i32) -> (i32, i32, i32) {
    %c0_i32 = arith.constant 0 : i32
    %c0_i32_0 = arith.constant 0 : i32
    %c0_i32_1 = arith.constant 0 : i32
    %c0_i32_2 = arith.constant 0 : i32
    return %c0_i32, %c0_i32_0, %c0_i32_1 : i32, i32, i32
  }
  func.func @transform_12(%arg0: i32) -> (i32, i32, i32) {
    %c0_i32 = arith.constant 0 : i32
    %c0_i32_0 = arith.constant 0 : i32
    %c0_i32_1 = arith.constant 0 : i32
    %c0_i32_2 = arith.constant 0 : i32
    return %c0_i32, %c0_i32_0, %c0_i32_1 : i32, i32, i32
  }
  func.func @transform_13(%arg0: i32) -> (i32, i32, i32) {
    %c0_i32 = arith.constant 0 : i32
    %c0_i32_0 = arith.constant 0 : i32
    %c0_i32_1 = arith.constant 0 : i32
    %c0_i32_2 = arith.constant 0 : i32
    return %c0_i32, %c0_i32_0, %c0_i32_1 : i32, i32, i32
  }
  func.func @transform_14(%arg0: i32) -> (i32, i32, i32) {
    %c0_i32 = arith.constant 0 : i32
    %c0_i32_0 = arith.constant 0 : i32
    %c0_i32_1 = arith.constant 0 : i32
    %c0_i32_2 = arith.constant 0 : i32
    return %c0_i32, %c0_i32_0, %c0_i32_1 : i32, i32, i32
  }
  func.func @transform_15(%arg0: i32) -> (i32, i32, i32) {
    %c0_i32 = arith.constant 0 : i32
    %c0_i32_0 = arith.constant 0 : i32
    %c0_i32_1 = arith.constant 0 : i32
    %c0_i32_2 = arith.constant 0 : i32
    return %c0_i32, %c0_i32_0, %c0_i32_1 : i32, i32, i32
  }
  func.func @transform_16(%arg0: i32) -> (i32, i32) {
    %c0_i32 = arith.constant 0 : i32
    %c0_i32_0 = arith.constant 0 : i32
    %c0_i32_1 = arith.constant 0 : i32
    return %c0_i32, %c0_i32_0 : i32, i32
  }
  func.func @transform_17(%arg0: i32) -> (i32, i32) {
    %c0_i32 = arith.constant 0 : i32
    %c0_i32_0 = arith.constant 0 : i32
    %c0_i32_1 = arith.constant 0 : i32
    return %c0_i32, %c0_i32_0 : i32, i32
  }
  func.func @transform_18(%arg0: i32) -> (i32, i32) {
    %c0_i32 = arith.constant 0 : i32
    %c0_i32_0 = arith.constant 0 : i32
    %c0_i32_1 = arith.constant 0 : i32
    return %c0_i32, %c0_i32_0 : i32, i32
  }
  func.func @transform_19(%arg0: i32) -> (i32, i32) {
    %c0_i32 = arith.constant 0 : i32
    %c0_i32_0 = arith.constant 0 : i32
    %c0_i32_1 = arith.constant 0 : i32
    return %c0_i32, %c0_i32_0 : i32, i32
  }
  func.func @transform_20(%arg0: i32) -> (i32, i32) {
    %c0_i32 = arith.constant 0 : i32
    %c0_i32_0 = arith.constant 0 : i32
    %c0_i32_1 = arith.constant 0 : i32
    return %c0_i32, %c0_i32_0 : i32, i32
  }
  func.func @transform_21(%arg0: i32) -> (i32, i32) {
    %c0_i32 = arith.constant 0 : i32
    %c0_i32_0 = arith.constant 0 : i32
    %c0_i32_1 = arith.constant 0 : i32
    return %c0_i32, %c0_i32_0 : i32, i32
  }
  func.func @transform_22(%arg0: i32) -> (i32, i32) {
    %c0_i32 = arith.constant 0 : i32
    %c0_i32_0 = arith.constant 0 : i32
    %c0_i32_1 = arith.constant 0 : i32
    return %c0_i32, %c0_i32_0 : i32, i32
  }
  func.func @transform_23(%arg0: i32) -> (i32, i32) {
    %c0_i32 = arith.constant 0 : i32
    %c0_i32_0 = arith.constant 0 : i32
    %c0_i32_1 = arith.constant 0 : i32
    return %c0_i32, %c0_i32_0 : i32, i32
  }
  func.func @transform_24(%arg0: i32) -> (i32, i32) {
    %c0_i32 = arith.constant 0 : i32
    %c0_i32_0 = arith.constant 0 : i32
    %c0_i32_1 = arith.constant 0 : i32
    return %c0_i32, %c0_i32_0 : i32, i32
  }
  func.func @transform_25(%arg0: i32) -> (i32, i32) {
    %c0_i32 = arith.constant 0 : i32
    %c0_i32_0 = arith.constant 0 : i32
    %c0_i32_1 = arith.constant 0 : i32
    return %c0_i32, %c0_i32_0 : i32, i32
  }
}

</mosaic_0001>

<llo_original>
// kernel: tile.8
$region0: #{tile.8}
  #allocation0 [shape = 's32[1]{0}', space=sflag, size = 0x4, scoped, tag = 'scoped memory for tile.8']
  %s0 = inlined_call_operand.vmem [shape: f32[8], index: 0, kind: input, shape index: {}]
  %s1 = inlined_call_operand.vmem [shape: f32[8,8], index: 1, kind: output, shape index: {}]
  // Predicated region
  $region2: #{tile.8} parent=0 // pred_check
    _
  $region3: #{tile.8} parent=0 // pred_check_branch
    %3 = sbr.rel (0) target = $region5
  $region4: #{tile.8} parent=0 // pred_region
    _
  $region5: #{tile.8} parent=0 // pred_fallthru
    _
  %v4 = vld [vmem:[%s0] ss:$0 sm:$0xff]
  %5 = vst [vmem:[%s1] sm:$0xff] %v4

// kernel: sequence_probability.1
$region0: #{sequence_probability.1}
  #allocation0 [shape = 'u32[]', space=smem, size = 0x4, offset = 0x4, fixed_abs, tag = 'smem constant byte address 0x4 - core index']
  #allocation1 [shape = 'u32[144,128]{1,0:T(1,128)}', space=vmem, size = 0x12000, scoped, tag = 'internal scratch']
  %s0 = inlined_call_operand.vmem [shape: f32[64,32], index: 0, kind: input, shape index: {}]
  %s1 = inlined_call_operand.vmem [shape: f32[64,64], index: 1, kind: input, shape index: {}]
  %s2 = inlined_call_operand.vmem [shape: f32[1,32], index: 2, kind: input, shape index: {}]
  %s3 = inlined_call_operand.vmem [shape: f32[1,32], index: 3, kind: input, shape index: {}]
  %s4 = inlined_call_operand.vmem [shape: bf16[2,32,96], index: 4, kind: input, shape index: {}]
  %s5 = inlined_call_operand.vmem [shape: f32[2,1,96], index: 5, kind: input, shape index: {}]
  %s6 = inlined_call_operand.vmem [shape: bf16[2,32,32], index: 6, kind: input, shape index: {}]
  %s7 = inlined_call_operand.vmem [shape: f32[2,1,32], index: 7, kind: input, shape index: {}]
  %s8 = inlined_call_operand.vmem [shape: f32[2,1,32], index: 8, kind: input, shape index: {}]
  %s9 = inlined_call_operand.vmem [shape: f32[2,1,32], index: 9, kind: input, shape index: {}]
  %s10 = inlined_call_operand.vmem [shape: bf16[2,32,64], index: 10, kind: input, shape index: {}]
  %s11 = inlined_call_operand.vmem [shape: f32[2,1,64], index: 11, kind: input, shape index: {}]
  %s12 = inlined_call_operand.vmem [shape: bf16[2,64,32], index: 12, kind: input, shape index: {}]
  %s13 = inlined_call_operand.vmem [shape: f32[2,1,32], index: 13, kind: input, shape index: {}]
  %s14 = inlined_call_operand.vmem [shape: f32[2,1,32], index: 14, kind: input, shape index: {}]
  %s15 = inlined_call_operand.vmem [shape: f32[2,1,32], index: 15, kind: input, shape index: {}]
  %s16 = inlined_call_operand.vmem [shape: f32[8,64], index: 16, kind: input, shape index: {}]
  %s17 = inlined_call_operand.vmem [shape: bf16[32,32], index: 17, kind: input, shape index: {}]
  %s18 = inlined_call_operand.vmem [shape: f32[1,32], index: 18, kind: input, shape index: {}]
  %s19 = inlined_call_operand.vmem [shape: f32[1,32], index: 19, kind: input, shape index: {}]
  %s20 = inlined_call_operand.vmem [shape: f32[1,32], index: 20, kind: input, shape index: {}]
  %s21 = inlined_call_operand.vmem [shape: bf16[32,64], index: 21, kind: input, shape index: {}]
  %s22 = inlined_call_operand.vmem [shape: f32[1,64], index: 22, kind: input, shape index: {}]
  %s23 = inlined_call_operand.vmem [shape: s32[8,1], index: 23, kind: input, shape index: {}]
  %s24 = inlined_call_operand.vmem [shape: f32[8,1], index: 24, kind: input, shape index: {}]
  %s25 = inlined_call_operand.hbm [shape: f32[1,1], index: 25, kind: output, shape index: {}]
  %s26 = sld [smem:[#allocation0]]
  $region110: #{sequence_probability.1} parent=0
    _
  %s28 = ssub.s32 1, %s26
  %s29 = scalar_select 0, %s28, %s26
  $region1: #{sequence_probability.1} parent=0
    #allocation2 [shape = 'u8[512]{0}', space=vmem, size = 0x400, scoped, tag = 'output window, operand 0, single buffered']
    #allocation3 [shape = 's32[1]{0}', space=sflag, size = 0x4, scoped, tag = 'scoped memory for sequence_probability.1']
    %30 = vsyncpa [#allocation3], 0
    // Predicated region
    $region2: #{sequence_probability.1} parent=1 // pred_check
      _
    $region3: #{sequence_probability.1} parent=1 // pred_check_branch
      %32 = sbr.rel (0) target = $region5
    $region4: #{sequence_probability.1} parent=1 // pred_region
      _
    $region5: #{sequence_probability.1} parent=1 // pred_fallthru
      _
    // Predicated region
    $region6: #{sequence_probability.1} parent=1 // pred_check
      _
    $region7: #{sequence_probability.1} parent=1 // pred_check_branch
      %34 = sbr.rel (0) target = $region9
    $region8: #{sequence_probability.1} parent=1 // pred_region
      _
    $region9: #{sequence_probability.1} parent=1 // pred_fallthru
      _
    // Predicated region
    $region10: #{sequence_probability.1} parent=1 // pred_check
      _
    $region11: #{sequence_probability.1} parent=1 // pred_check_branch
      %36 = sbr.rel (0) target = $region13
    $region12: #{sequence_probability.1} parent=1 // pred_region
      _
    $region13: #{sequence_probability.1} parent=1 // pred_fallthru
      _
    // Predicated region
    $region14: #{sequence_probability.1} parent=1 // pred_check
      _
    $region15: #{sequence_probability.1} parent=1 // pred_check_branch
      %38 = sbr.rel (0) target = $region17
    $region16: #{sequence_probability.1} parent=1 // pred_region
      _
    $region17: #{sequence_probability.1} parent=1 // pred_fallthru
      _
    // Predicated region
    $region18: #{sequence_probability.1} parent=1 // pred_check
      _
    $region19: #{sequence_probability.1} parent=1 // pred_check_branch
      %40 = sbr.rel (0) target = $region21
    $region20: #{sequence_probability.1} parent=1 // pred_region
      _
    $region21: #{sequence_probability.1} parent=1 // pred_fallthru
      _
    // Predicated region
    $region22: #{sequence_probability.1} parent=1 // pred_check
      _
    $region23: #{sequence_probability.1} parent=1 // pred_check_branch
      %42 = sbr.rel (0) target = $region25
    $region24: #{sequence_probability.1} parent=1 // pred_region
      _
    $region25: #{sequence_probability.1} parent=1 // pred_fallthru
      _
    // Predicated region
    $region26: #{sequence_probability.1} parent=1 // pred_check
      _
    $region27: #{sequence_probability.1} parent=1 // pred_check_branch
      %44 = sbr.rel (0) target = $region29
    $region28: #{sequence_probability.1} parent=1 // pred_region
      _
    $region29: #{sequence_probability.1} parent=1 // pred_fallthru
      _
    // Predicated region
    $region30: #{sequence_probability.1} parent=1 // pred_check
      _
    $region31: #{sequence_probability.1} parent=1 // pred_check_branch
      %46 = sbr.rel (0) target = $region33
    $region32: #{sequence_probability.1} parent=1 // pred_region
      _
    $region33: #{sequence_probability.1} parent=1 // pred_fallthru
      _
    // Predicated region
    $region34: #{sequence_probability.1} parent=1 // pred_check
      _
    $region35: #{sequence_probability.1} parent=1 // pred_check_branch
      %48 = sbr.rel (0) target = $region37
    $region36: #{sequence_probability.1} parent=1 // pred_region
      _
    $region37: #{sequence_probability.1} parent=1 // pred_fallthru
      _
    // Predicated region
    $region38: #{sequence_probability.1} parent=1 // pred_check
      _
    $region39: #{sequence_probability.1} parent=1 // pred_check_branch
      %50 = sbr.rel (0) target = $region41
    $region40: #{sequence_probability.1} parent=1 // pred_region
      _
    $region41: #{sequence_probability.1} parent=1 // pred_fallthru
      _
    // Predicated region
    $region42: #{sequence_probability.1} parent=1 // pred_check
      _
    $region43: #{sequence_probability.1} parent=1 // pred_check_branch
      %52 = sbr.rel (0) target = $region45
    $region44: #{sequence_probability.1} parent=1 // pred_region
      _
    $region45: #{sequence_probability.1} parent=1 // pred_fallthru
      _
    // Predicated region
    $region46: #{sequence_probability.1} parent=1 // pred_check
      _
    $region47: #{sequence_probability.1} parent=1 // pred_check_branch
      %54 = sbr.rel (0) target = $region49
    $region48: #{sequence_probability.1} parent=1 // pred_region
      _
    $region49: #{sequence_probability.1} parent=1 // pred_fallthru
      _
    // Predicated region
    $region50: #{sequence_probability.1} parent=1 // pred_check
      _
    $region51: #{sequence_probability.1} parent=1 // pred_check_branch
      %56 = sbr.rel (0) target = $region53
    $region52: #{sequence_probability.1} parent=1 // pred_region
      _
    $region53: #{sequence_probability.1} parent=1 // pred_fallthru
      _
    // Predicated region
    $region54: #{sequence_probability.1} parent=1 // pred_check
      _
    $region55: #{sequence_probability.1} parent=1 // pred_check_branch
      %58 = sbr.rel (0) target = $region57
    $region56: #{sequence_probability.1} parent=1 // pred_region
      _
    $region57: #{sequence_probability.1} parent=1 // pred_fallthru
      _
    // Predicated region
    $region58: #{sequence_probability.1} parent=1 // pred_check
      _
    $region59: #{sequence_probability.1} parent=1 // pred_check_branch
      %60 = sbr.rel (0) target = $region61
    $region60: #{sequence_probability.1} parent=1 // pred_region
      _
    $region61: #{sequence_probability.1} parent=1 // pred_fallthru
      _
    // Predicated region
    $region62: #{sequence_probability.1} parent=1 // pred_check
      _
    $region63: #{sequence_probability.1} parent=1 // pred_check_branch
      %62 = sbr.rel (0) target = $region65
    $region64: #{sequence_probability.1} parent=1 // pred_region
      _
    $region65: #{sequence_probability.1} parent=1 // pred_fallthru
      _
    // Predicated region
    $region66: #{sequence_probability.1} parent=1 // pred_check
      _
    $region67: #{sequence_probability.1} parent=1 // pred_check_branch
      %64 = sbr.rel (0) target = $region69
    $region68: #{sequence_probability.1} parent=1 // pred_region
      _
    $region69: #{sequence_probability.1} parent=1 // pred_fallthru
      _
    // Predicated region
    $region70: #{sequence_probability.1} parent=1 // pred_check
      _
    $region71: #{sequence_probability.1} parent=1 // pred_check_branch
      %66 = sbr.rel (0) target = $region73
    $region72: #{sequence_probability.1} parent=1 // pred_region
      _
    $region73: #{sequence_probability.1} parent=1 // pred_fallthru
      _
    // Predicated region
    $region74: #{sequence_probability.1} parent=1 // pred_check
      _
    $region75: #{sequence_probability.1} parent=1 // pred_check_branch
      %68 = sbr.rel (0) target = $region77
    $region76: #{sequence_probability.1} parent=1 // pred_region
      _
    $region77: #{sequence_probability.1} parent=1 // pred_fallthru
      _
    // Predicated region
    $region78: #{sequence_probability.1} parent=1 // pred_check
      _
    $region79: #{sequence_probability.1} parent=1 // pred_check_branch
      %70 = sbr.rel (0) target = $region81
    $region80: #{sequence_probability.1} parent=1 // pred_region
      _
    $region81: #{sequence_probability.1} parent=1 // pred_fallthru
      _
    // Predicated region
    $region82: #{sequence_probability.1} parent=1 // pred_check
      _
    $region83: #{sequence_probability.1} parent=1 // pred_check_branch
      %72 = sbr.rel (0) target = $region85
    $region84: #{sequence_probability.1} parent=1 // pred_region
      _
    $region85: #{sequence_probability.1} parent=1 // pred_fallthru
      _
    // Predicated region
    $region86: #{sequence_probability.1} parent=1 // pred_check
      _
    $region87: #{sequence_probability.1} parent=1 // pred_check_branch
      %74 = sbr.rel (0) target = $region89
    $region88: #{sequence_probability.1} parent=1 // pred_region
      _
    $region89: #{sequence_probability.1} parent=1 // pred_fallthru
      _
    // Predicated region
    $region90: #{sequence_probability.1} parent=1 // pred_check
      _
    $region91: #{sequence_probability.1} parent=1 // pred_check_branch
      %76 = sbr.rel (0) target = $region93
    $region92: #{sequence_probability.1} parent=1 // pred_region
      _
    $region93: #{sequence_probability.1} parent=1 // pred_fallthru
      _
    // Predicated region
    $region94: #{sequence_probability.1} parent=1 // pred_check
      _
    $region95: #{sequence_probability.1} parent=1 // pred_check_branch
      %78 = sbr.rel (0) target = $region97
    $region96: #{sequence_probability.1} parent=1 // pred_region
      _
    $region97: #{sequence_probability.1} parent=1 // pred_fallthru
      _
    // Predicated region
    $region98: #{sequence_probability.1} parent=1 // pred_check
      _
    $region99: #{sequence_probability.1} parent=1 // pred_check_branch
      %80 = sbr.rel (0) target = $region101
    $region100: #{sequence_probability.1} parent=1 // pred_region
      _
    $region101: #{sequence_probability.1} parent=1 // pred_fallthru
      _
    %v82 = vld [vmem:[%s1] sm:$0xff]
    %v83 = vld [vmem:[%s1 + $0x8] sm:$0xff]
    %v84 = vld [vmem:[%s1 + $0x10] sm:$0xff]
    %v85 = vld [vmem:[%s1 + $0x18] sm:$0xff]
    %v86 = vld [vmem:[%s1 + $0x20] sm:$0xff]
    %v87 = vld [vmem:[%s1 + $0x28] sm:$0xff]
    %v88 = vld [vmem:[%s1 + $0x30] sm:$0xff]
    %v89 = vld [vmem:[%s1 + $0x38] sm:$0xff]
    %v90 = vld [vmem:[%s0] sm:$0xff]
    %v91 = vld [vmem:[%s0 + $0x8] sm:$0xff]
    %v92 = vld [vmem:[%s0 + $0x10] sm:$0xff]
    %v93 = vld [vmem:[%s0 + $0x18] sm:$0xff]
    %v94 = vld [vmem:[%s0 + $0x20] sm:$0xff]
    %v95 = vld [vmem:[%s0 + $0x28] sm:$0xff]
    %v96 = vld [vmem:[%s0 + $0x30] sm:$0xff]
    %v97 = vld [vmem:[%s0 + $0x38] sm:$0xff]
    %v98 = vld [vmem:[%s2] sm:$0x1]
    %v99 = vld [vmem:[%s3] sm:$0x1]
    %vm100 = vcmask 261120
    %v101 = vsel %vm100, %v90, 0.0
    %102 = vadd.xlane.f32.xlu0 %v101
    %v103 = vpop.xlane.xlu0 %102
    %v104 = vsel %vm100, %v91, 0.0
    %105 = vadd.xlane.f32.xlu0 %v104
    %v106 = vpop.xlane.xlu0 %105
    %v107 = vsel %vm100, %v92, 0.0
    %108 = vadd.xlane.f32.xlu0 %v107
    %v109 = vpop.xlane.xlu0 %108
    %v110 = vsel %vm100, %v93, 0.0
    %111 = vadd.xlane.f32.xlu0 %v110
    %v112 = vpop.xlane.xlu0 %111
    %v113 = vsel %vm100, %v94, 0.0
    %114 = vadd.xlane.f32.xlu0 %v113
    %v115 = vpop.xlane.xlu0 %114
    %v116 = vsel %vm100, %v95, 0.0
    %117 = vadd.xlane.f32.xlu0 %v116
    %v118 = vpop.xlane.xlu0 %117
    %v119 = vsel %vm100, %v96, 0.0
    %120 = vadd.xlane.f32.xlu0 %v119
    %v121 = vpop.xlane.xlu0 %120
    %v122 = vsel %vm100, %v97, 0.0
    %123 = vadd.xlane.f32.xlu0 %v122
    %v124 = vpop.xlane.xlu0 %123
    %v125 = vrcp.pop 32.0
    %v126 = vmul.f32 %v103, %v125
    %v127 = vmul.f32 %v106, %v125
    %v128 = vmul.f32 %v109, %v125
    %v129 = vmul.f32 %v112, %v125
    %v130 = vmul.f32 %v115, %v125
    %v131 = vmul.f32 %v118, %v125
    %v132 = vmul.f32 %v121, %v125
    %v133 = vmul.f32 %v124, %v125
    %v134 = vsub.f32 %v90, %v126
    %v135 = vsub.f32 %v91, %v127
    %v136 = vsub.f32 %v92, %v128
    %v137 = vsub.f32 %v93, %v129
    %v138 = vsub.f32 %v94, %v130
    %v139 = vsub.f32 %v95, %v131
    %v140 = vsub.f32 %v96, %v132
    %v141 = vsub.f32 %v97, %v133
    %v142 = vmul.f32 %v134, %v134
    %v143 = vmul.f32 %v135, %v135
    %v144 = vmul.f32 %v136, %v136
    %v145 = vmul.f32 %v137, %v137
    %v146 = vmul.f32 %v138, %v138
    %v147 = vmul.f32 %v139, %v139
    %v148 = vmul.f32 %v140, %v140
    %v149 = vmul.f32 %v141, %v141
    %v150 = vsel %vm100, %v142, 0.0
    %151 = vadd.xlane.f32.xlu0 %v150
    %v152 = vpop.xlane.xlu0 %151
    %v153 = vsel %vm100, %v143, 0.0
    %154 = vadd.xlane.f32.xlu0 %v153
    %v155 = vpop.xlane.xlu0 %154
    %v156 = vsel %vm100, %v144, 0.0
    %157 = vadd.xlane.f32.xlu0 %v156
    %v158 = vpop.xlane.xlu0 %157
    %v159 = vsel %vm100, %v145, 0.0
    %160 = vadd.xlane.f32.xlu0 %v159
    %v161 = vpop.xlane.xlu0 %160
    %v162 = vsel %vm100, %v146, 0.0
    %163 = vadd.xlane.f32.xlu0 %v162
    %v164 = vpop.xlane.xlu0 %163
    %v165 = vsel %vm100, %v147, 0.0
    %166 = vadd.xlane.f32.xlu0 %v165
    %v167 = vpop.xlane.xlu0 %166
    %v168 = vsel %vm100, %v148, 0.0
    %169 = vadd.xlane.f32.xlu0 %v168
    %v170 = vpop.xlane.xlu0 %169
    %v171 = vsel %vm100, %v149, 0.0
    %172 = vadd.xlane.f32.xlu0 %v171
    %v173 = vpop.xlane.xlu0 %172
    %v174 = vmul.f32 %v152, %v125
    %v175 = vmul.f32 %v155, %v125
    %v176 = vmul.f32 %v158, %v125
    %v177 = vmul.f32 %v161, %v125
    %v178 = vmul.f32 %v164, %v125
    %v179 = vmul.f32 %v167, %v125
    %v180 = vmul.f32 %v170, %v125
    %v181 = vmul.f32 %v173, %v125
    %v182 = vadd.f32 %v174, 1e-12
    %v183 = vadd.f32 %v175, 1e-12
    %v184 = vadd.f32 %v176, 1e-12
    %v185 = vadd.f32 %v177, 1e-12
    %v186 = vadd.f32 %v178, 1e-12
    %v187 = vadd.f32 %v179, 1e-12
    %v188 = vadd.f32 %v180, 1e-12
    %v189 = vadd.f32 %v181, 1e-12
    %v190 = vrsqrt.pop %v182
    %v191 = vrsqrt.pop %v183
    %v192 = vrsqrt.pop %v184
    %v193 = vrsqrt.pop %v185
    %v194 = vrsqrt.pop %v186
    %v195 = vrsqrt.pop %v187
    %v196 = vrsqrt.pop %v188
    %v197 = vrsqrt.pop %v189
    %v198 = vmul.f32 %v134, %v190
    %v199 = vmul.f32 %v135, %v191
    %v200 = vmul.f32 %v136, %v192
    %v201 = vmul.f32 %v137, %v193
    %v202 = vmul.f32 %v138, %v194
    %v203 = vmul.f32 %v139, %v195
    %v204 = vmul.f32 %v140, %v196
    %v205 = vmul.f32 %v141, %v197
    %v207 = vlaneseq
    %v208 = vshrl.u32 %v207, 7
    %v209 = vsub.s32 0, %v208
    %v210 = vrot.slane %v98, %v209
    %v212 = vmul.f32 %v198, %v210
    %v213 = vmul.f32 %v199, %v210
    %v214 = vmul.f32 %v200, %v210
    %v215 = vmul.f32 %v201, %v210
    %v216 = vmul.f32 %v202, %v210
    %v217 = vmul.f32 %v203, %v210
    %v218 = vmul.f32 %v204, %v210
    %v219 = vmul.f32 %v205, %v210
    %v221 = vlaneseq
    %v222 = vshrl.u32 %v221, 7
    %v223 = vsub.s32 0, %v222
    %v224 = vrot.slane %v99, %v223
    %v226 = vadd.f32 %v212, %v224
    %v227 = vadd.f32 %v213, %v224
    %v228 = vadd.f32 %v214, %v224
    %v229 = vadd.f32 %v215, %v224
    %v230 = vadd.f32 %v216, %v224
    %v231 = vadd.f32 %v217, %v224
    %v232 = vadd.f32 %v218, %v224
    %v233 = vadd.f32 %v219, %v224
    %v234 = vpack.c.bf16 %v227, %v226
    %v235 = vpack.c.bf16 %v229, %v228
    %v236 = vpack.c.bf16 %v231, %v230
    %v237 = vpack.c.bf16 %v233, %v232
    %v238 = vld [vmem:[%s4] sm:$0xf]
    %v239 = vld [vmem:[%s4 + $0x4] sm:$0xf]
    %v240 = vld [vmem:[%s4 + $0x8] sm:$0xf]
    %v241 = vld [vmem:[%s4 + $0xc] sm:$0xf]
    %v242 = vld [vmem:[%s5] sm:$0x1]
    %v244 = vlaneseq
    %v245 = vshrl.u32 %v244, 7
    %v246 = vsub.s32 0, %v245
    %v247 = vrot.slane %v242, %v246
    %v253 = vunpack.c.l.b16 %v238
    %v254 = vunpack.c.l.b16 %v239
    %v255 = vunpack.c.l.b16 %v240
    %v256 = vunpack.c.l.b16 %v241
    %v257 = vpack.c.b16 %v254, %v253
    %v258 = vpack.c.b16 %v256, %v255
    %v262 = vsel %vm100, %v234, 0
    %v265 = vsel %vm100, %v235, 0
    %v268 = vsel %vm100, %v236, 0
    %v271 = vsel %vm100, %v237, 0
    %273 = vmatprep.subr.bf16.mxu0 0
    %274 = vmatpush1.bf16.msra.mxu0 0
    %275 = vmatprep.subr.bf16.mxu0 0
    %276 = vmatpush1.bf16.msra.mxu0 0
    %277 = vmatprep.subr.bf16.mxu0 0
    %278 = vmatpush1.bf16.msra.mxu0 0
    %279 = vmatprep.subr.bf16.mxu0 0
    %280 = vmatpush1.bf16.msra.mxu0 0
    %281 = vmatprep.subr.bf16.mxu0 0
    %282 = vmatpush1.bf16.msra.mxu0 0
    %283 = vmatprep.subr.bf16.mxu0 0
    %284 = vmatpush1.bf16.msra.mxu0 0
    %285 = vmatprep.subr.bf16.mxu0 0
    %286 = vmatpush1.bf16.msra.mxu0 %v258
    %287 = vmatprep.subr.bf16.mxu0 0
    %288 = vmatpush1.bf16.msra.mxu0 %v257
    %289 = vmatprep.subr.bf16.mxu0 0
    %290 = vmatpush2.bf16.msra.mxu0 0
    %291 = vmatprep.subr.bf16.mxu0 0
    %292 = vmatpush2.bf16.msra.mxu0 0
    %293 = vmatprep.subr.bf16.mxu0 0
    %294 = vmatpush2.bf16.msra.mxu0 0
    %295 = vmatprep.subr.bf16.mxu0 0
    %296 = vmatpush2.bf16.msra.mxu0 0
    %297 = vmatprep.subr.bf16.mxu0 0
    %298 = vmatpush2.bf16.msra.mxu0 0
    %299 = vmatprep.subr.bf16.mxu0 0
    %300 = vmatpush2.bf16.msra.mxu0 0
    %301 = vmatprep.subr.bf16.mxu0 0
    %302 = vmatpush2.bf16.msra.mxu0 0
    %303 = vmatprep.subr.bf16.mxu0 0
    %304 = vmatpush2.bf16.msra.mxu0 0
    %305 = vmatprep.mubr.bf16.mxu0 0
    %306 = vmatmul.mubr.bf16.gmra.mxu0 %v262
    %v307 = vpop.f32.mrf.mxu0
    %v308 = vadd.f32 %v247, %v307
    %v309 = vpop.f32.mrf.mxu0
    %v310 = vpop.f32.mrf.mxu0
    %v311 = vadd.f32 %v247, %v310
    %v312 = vpop.f32.mrf.mxu0
    %313 = vmatprep.mubr.bf16.mxu0 0
    %314 = vmatmul.mubr.bf16.gmra.mxu0 %v265
    %v315 = vpop.f32.mrf.mxu0
    %v316 = vadd.f32 %v247, %v315
    %v317 = vpop.f32.mrf.mxu0
    %v318 = vpop.f32.mrf.mxu0
    %v319 = vadd.f32 %v247, %v318
    %v320 = vpop.f32.mrf.mxu0
    %321 = vmatprep.mubr.bf16.mxu0 0
    %322 = vmatmul.mubr.bf16.gmra.mxu0 %v268
    %v323 = vpop.f32.mrf.mxu0
    %v324 = vadd.f32 %v247, %v323
    %v325 = vpop.f32.mrf.mxu0
    %v326 = vpop.f32.mrf.mxu0
    %v327 = vadd.f32 %v247, %v326
    %v328 = vpop.f32.mrf.mxu0
    %329 = vmatprep.mubr.bf16.mxu0 0
    %330 = vmatmul.mubr.bf16.gmra.mxu0 %v271
    %v331 = vpop.f32.mrf.mxu0
    %v332 = vadd.f32 %v247, %v331
    %v333 = vpop.f32.mrf.mxu0
    %v334 = vpop.f32.mrf.mxu0
    %v335 = vadd.f32 %v247, %v334
    %v336 = vpop.f32.mrf.mxu0
    %337 = vdwg.mxu0
    %v338 = vmul.f32 %v308, 0.35355338
    %v339 = vmul.f32 %v311, 0.35355338
    %v340 = vmul.f32 %v316, 0.35355338
    %v341 = vmul.f32 %v319, 0.35355338
    %v342 = vmul.f32 %v324, 0.35355338
    %v343 = vmul.f32 %v327, 0.35355338
    %v344 = vmul.f32 %v332, 0.35355338
    %v345 = vmul.f32 %v335, 0.35355338
    %v346 = vpack.c.bf16 %v339, %v338
    %v347 = vpack.c.bf16 %v341, %v340
    %v348 = vpack.c.bf16 %v343, %v342
    %v349 = vpack.c.bf16 %v345, %v344
    %v350 = vpack.c.bf16 %v311, %v308
    %v351 = vpack.c.bf16 %v319, %v316
    %v352 = vpack.c.bf16 %v327, %v324
    %v353 = vpack.c.bf16 %v335, %v332
    %358 = vrot.lane.b32.xlu0 %v350, 96
    %v359 = vpop.permute.xlu0 %358
    %360 = vrot.lane.b32.xlu0 %v351, 96
    %v361 = vpop.permute.xlu0 %360
    %362 = vrot.lane.b32.xlu0 %v352, 96
    %v363 = vpop.permute.xlu0 %362
    %364 = vrot.lane.b32.xlu0 %v353, 96
    %v365 = vpop.permute.xlu0 %364
    %vm366 = vcmask 64512
    %v368 = vsel %vm366, %v346, 0
    %v371 = vsel %vm366, %v347, 0
    %v374 = vsel %vm366, %v348, 0
    %v377 = vsel %vm366, %v349, 0
    %v380 = vsel %vm366, %v359, 0
    %v383 = vsel %vm366, %v361, 0
    %v386 = vsel %vm366, %v363, 0
    %v389 = vsel %vm366, %v365, 0
    %391 = vmatprep.subr.bf16.mxu0 0
    %392 = vmatpush1.bf16.xpose.msra.mxu0 0
    %393 = vmatprep.subr.bf16.mxu0 0
    %394 = vmatpush1.bf16.xpose.msra.mxu0 0
    %395 = vmatprep.subr.bf16.mxu0 0
    %396 = vmatpush1.bf16.xpose.msra.mxu0 0
    %397 = vmatprep.subr.bf16.mxu0 0
    %398 = vmatpush1.bf16.xpose.msra.mxu0 0
    %399 = vmatprep.subr.bf16.mxu0 0
    %400 = vmatpush1.bf16.xpose.msra.mxu0 %v389
    %401 = vmatprep.subr.bf16.mxu0 0
    %402 = vmatpush1.bf16.xpose.msra.mxu0 %v386
    %403 = vmatprep.subr.bf16.mxu0 0
    %404 = vmatpush1.bf16.xpose.msra.mxu0 %v383
    %405 = vmatprep.subr.bf16.mxu0 0
    %406 = vmatpush1.bf16.xpose.msra.mxu0 %v380
    %407 = vmatprep.subr.bf16.mxu0 0
    %408 = vmatpush2.bf16.xpose.msra.mxu0 0
    %409 = vmatprep.subr.bf16.mxu0 0
    %410 = vmatpush2.bf16.xpose.msra.mxu0 0
    %411 = vmatprep.subr.bf16.mxu0 0
    %412 = vmatpush2.bf16.xpose.msra.mxu0 0
    %413 = vmatprep.subr.bf16.mxu0 0
    %414 = vmatpush2.bf16.xpose.msra.mxu0 0
    %415 = vmatprep.subr.bf16.mxu0 0
    %416 = vmatpush2.bf16.xpose.msra.mxu0 0
    %417 = vmatprep.subr.bf16.mxu0 0
    %418 = vmatpush2.bf16.xpose.msra.mxu0 0
    %419 = vmatprep.subr.bf16.mxu0 0
    %420 = vmatpush2.bf16.xpose.msra.mxu0 0
    %421 = vmatprep.subr.bf16.mxu0 0
    %422 = vmatpush2.bf16.xpose.msra.mxu0 0
    %423 = vmatprep.mubr.bf16.mxu0 0
    %424 = vmatmul.mubr.bf16.gmra.mxu0 %v368
    %v425 = vpop.f32.mrf.mxu0
    %v426 = vadd.f32 %v82, %v425
    %v427 = vpop.f32.mrf.mxu0
    %v428 = vpop.f32.mrf.mxu0
    %v429 = vadd.f32 %v83, %v428
    %v430 = vpop.f32.mrf.mxu0
    %431 = vmatprep.mubr.bf16.mxu0 0
    %432 = vmatmul.mubr.bf16.gmra.mxu0 %v371
    %v433 = vpop.f32.mrf.mxu0
    %v434 = vadd.f32 %v84, %v433
    %v435 = vpop.f32.mrf.mxu0
    %v436 = vpop.f32.mrf.mxu0
    %v437 = vadd.f32 %v85, %v436
    %v438 = vpop.f32.mrf.mxu0
    %439 = vmatprep.mubr.bf16.mxu0 0
    %440 = vmatmul.mubr.bf16.gmra.mxu0 %v374
    %v441 = vpop.f32.mrf.mxu0
    %v442 = vadd.f32 %v86, %v441
    %v443 = vpop.f32.mrf.mxu0
    %v444 = vpop.f32.mrf.mxu0
    %v445 = vadd.f32 %v87, %v444
    %v446 = vpop.f32.mrf.mxu0
    %447 = vmatprep.mubr.bf16.mxu0 0
    %448 = vmatmul.mubr.bf16.gmra.mxu0 %v377
    %v449 = vpop.f32.mrf.mxu0
    %v450 = vadd.f32 %v88, %v449
    %v451 = vpop.f32.mrf.mxu0
    %v452 = vpop.f32.mrf.mxu0
    %v453 = vadd.f32 %v89, %v452
    %v454 = vpop.f32.mrf.mxu0
    %455 = vdwg.mxu0
    %vm456 = vcmask 523264
    %v457 = vsel %vm456, %v426, -inf
    %458 = vmax.xlane.f32.xlu0 %v457
    %v459 = vpop.xlane.xlu0 %458
    %v460 = vsel %vm456, %v429, -inf
    %461 = vmax.xlane.f32.xlu0 %v460
    %v462 = vpop.xlane.xlu0 %461
    %v463 = vsel %vm456, %v434, -inf
    %464 = vmax.xlane.f32.xlu0 %v463
    %v465 = vpop.xlane.xlu0 %464
    %v466 = vsel %vm456, %v437, -inf
    %467 = vmax.xlane.f32.xlu0 %v466
    %v468 = vpop.xlane.xlu0 %467
    %v469 = vsel %vm456, %v442, -inf
    %470 = vmax.xlane.f32.xlu0 %v469
    %v471 = vpop.xlane.xlu0 %470
    %v472 = vsel %vm456, %v445, -inf
    %473 = vmax.xlane.f32.xlu0 %v472
    %v474 = vpop.xlane.xlu0 %473
    %v475 = vsel %vm456, %v450, -inf
    %476 = vmax.xlane.f32.xlu0 %v475
    %v477 = vpop.xlane.xlu0 %476
    %v478 = vsel %vm456, %v453, -inf
    %479 = vmax.xlane.f32.xlu0 %v478
    %v480 = vpop.xlane.xlu0 %479
    %v481 = vsub.f32 %v426, %v459
    %v482 = vsub.f32 %v429, %v462
    %v483 = vsub.f32 %v434, %v465
    %v484 = vsub.f32 %v437, %v468
    %v485 = vsub.f32 %v442, %v471
    %v486 = vsub.f32 %v445, %v474
    %v487 = vsub.f32 %v450, %v477
    %v488 = vsub.f32 %v453, %v480
    %v489 = vmul.f32 %v481, 1.442695
    %v490 = vpow.pop %v489
    %v491 = vmul.f32 %v482, 1.442695
    %v492 = vpow.pop %v491
    %v493 = vmul.f32 %v483, 1.442695
    %v494 = vpow.pop %v493
    %v495 = vmul.f32 %v484, 1.442695
    %v496 = vpow.pop %v495
    %v497 = vmul.f32 %v485, 1.442695
    %v498 = vpow.pop %v497
    %v499 = vmul.f32 %v486, 1.442695
    %v500 = vpow.pop %v499
    %v501 = vmul.f32 %v487, 1.442695
    %v502 = vpow.pop %v501
    %v503 = vmul.f32 %v488, 1.442695
    %v504 = vpow.pop %v503
    %v505 = vsel %vm456, %v490, 0.0
    %506 = vadd.xlane.f32.xlu0 %v505
    %v507 = vpop.xlane.xlu0 %506
    %v508 = vsel %vm456, %v492, 0.0
    %509 = vadd.xlane.f32.xlu0 %v508
    %v510 = vpop.xlane.xlu0 %509
    %v511 = vsel %vm456, %v494, 0.0
    %512 = vadd.xlane.f32.xlu0 %v511
    %v513 = vpop.xlane.xlu0 %512
    %v514 = vsel %vm456, %v496, 0.0
    %515 = vadd.xlane.f32.xlu0 %v514
    %v516 = vpop.xlane.xlu0 %515
    %v517 = vsel %vm456, %v498, 0.0
    %518 = vadd.xlane.f32.xlu0 %v517
    %v519 = vpop.xlane.xlu0 %518
    %v520 = vsel %vm456, %v500, 0.0
    %521 = vadd.xlane.f32.xlu0 %v520
    %v522 = vpop.xlane.xlu0 %521
    %v523 = vsel %vm456, %v502, 0.0
    %524 = vadd.xlane.f32.xlu0 %v523
    %v525 = vpop.xlane.xlu0 %524
    %v526 = vsel %vm456, %v504, 0.0
    %527 = vadd.xlane.f32.xlu0 %v526
    %v528 = vpop.xlane.xlu0 %527
    %v529 = vrcp.pop %v507
    %v530 = vrcp.pop %v510
    %v531 = vrcp.pop %v513
    %v532 = vrcp.pop %v516
    %v533 = vrcp.pop %v519
    %v534 = vrcp.pop %v522
    %v535 = vrcp.pop %v525
    %v536 = vrcp.pop %v528
    %v537 = vmul.f32 %v490, %v529
    %v538 = vmul.f32 %v492, %v530
    %v539 = vmul.f32 %v494, %v531
    %v540 = vmul.f32 %v496, %v532
    %v541 = vmul.f32 %v498, %v533
    %v542 = vmul.f32 %v500, %v534
    %v543 = vmul.f32 %v502, %v535
    %v544 = vmul.f32 %v504, %v536
    %v545 = vpack.c.bf16 %v538, %v537
    %v546 = vpack.c.bf16 %v540, %v539
    %v547 = vpack.c.bf16 %v542, %v541
    %v548 = vpack.c.bf16 %v544, %v543
    %549 = vrot.lane.b32.xlu0 %v350, 64
    %v550 = vpop.permute.xlu0 %549
    %551 = vrot.lane.b32.xlu0 %v351, 64
    %v552 = vpop.permute.xlu0 %551
    %553 = vrot.lane.b32.xlu0 %v352, 64
    %v554 = vpop.permute.xlu0 %553
    %555 = vrot.lane.b32.xlu0 %v353, 64
    %v556 = vpop.permute.xlu0 %555
    %v562 = vsel %vm456, %v545, 0
    %v565 = vsel %vm456, %v546, 0
    %v568 = vsel %vm456, %v547, 0
    %v571 = vsel %vm456, %v548, 0
    %573 = vmatprep.subr.bf16.mxu0 0
    %574 = vmatpush1.bf16.msra.mxu0 0
    %575 = vmatprep.subr.bf16.mxu0 0
    %576 = vmatpush1.bf16.msra.mxu0 0
    %577 = vmatprep.subr.bf16.mxu0 0
    %578 = vmatpush1.bf16.msra.mxu0 0
    %579 = vmatprep.subr.bf16.mxu0 0
    %580 = vmatpush1.bf16.msra.mxu0 0
    %581 = vmatprep.subr.bf16.mxu0 0
    %582 = vmatpush1.bf16.msra.mxu0 %v556
    %583 = vmatprep.subr.bf16.mxu0 0
    %584 = vmatpush1.bf16.msra.mxu0 %v554
    %585 = vmatprep.subr.bf16.mxu0 0
    %586 = vmatpush1.bf16.msra.mxu0 %v552
    %587 = vmatprep.subr.bf16.mxu0 0
    %588 = vmatpush1.bf16.msra.mxu0 %v550
    %589 = vmatprep.subr.bf16.mxu0 0
    %590 = vmatpush2.bf16.msra.mxu0 0
    %591 = vmatprep.subr.bf16.mxu0 0
    %592 = vmatpush2.bf16.msra.mxu0 0
    %593 = vmatprep.subr.bf16.mxu0 0
    %594 = vmatpush2.bf16.msra.mxu0 0
    %595 = vmatprep.subr.bf16.mxu0 0
    %596 = vmatpush2.bf16.msra.mxu0 0
    %597 = vmatprep.subr.bf16.mxu0 0
    %598 = vmatpush2.bf16.msra.mxu0 0
    %599 = vmatprep.subr.bf16.mxu0 0
    %600 = vmatpush2.bf16.msra.mxu0 0
    %601 = vmatprep.subr.bf16.mxu0 0
    %602 = vmatpush2.bf16.msra.mxu0 0
    %603 = vmatprep.subr.bf16.mxu0 0
    %604 = vmatpush2.bf16.msra.mxu0 0
    %605 = vmatprep.mubr.bf16.mxu0 0
    %606 = vmatmul.mubr.bf16.gmra.mxu0 %v562
    %v607 = vpop.f32.mrf.mxu0
    %v608 = vadd.f32 0.0, %v607
    %v609 = vpop.f32.mrf.mxu0
    %v610 = vpop.f32.mrf.mxu0
    %v611 = vadd.f32 0.0, %v610
    %v612 = vpop.f32.mrf.mxu0
    %613 = vmatprep.mubr.bf16.mxu0 0
    %614 = vmatmul.mubr.bf16.gmra.mxu0 %v565
    %v615 = vpop.f32.mrf.mxu0
    %v616 = vadd.f32 0.0, %v615
    %v617 = vpop.f32.mrf.mxu0
    %v618 = vpop.f32.mrf.mxu0
    %v619 = vadd.f32 0.0, %v618
    %v620 = vpop.f32.mrf.mxu0
    %621 = vmatprep.mubr.bf16.mxu0 0
    %622 = vmatmul.mubr.bf16.gmra.mxu0 %v568
    %v623 = vpop.f32.mrf.mxu0
    %v624 = vadd.f32 0.0, %v623
    %v625 = vpop.f32.mrf.mxu0
    %v626 = vpop.f32.mrf.mxu0
    %v627 = vadd.f32 0.0, %v626
    %v628 = vpop.f32.mrf.mxu0
    %629 = vmatprep.mubr.bf16.mxu0 0
    %630 = vmatmul.mubr.bf16.gmra.mxu0 %v571
    %v631 = vpop.f32.mrf.mxu0
    %v632 = vadd.f32 0.0, %v631
    %v633 = vpop.f32.mrf.mxu0
    %v634 = vpop.f32.mrf.mxu0
    %v635 = vadd.f32 0.0, %v634
    %v636 = vpop.f32.mrf.mxu0
    %637 = vdwg.mxu0
    %642 = vrot.lane.b32.xlu0 %v346, 120
    %v643 = vpop.permute.xlu0 %642
    %644 = vrot.lane.b32.xlu0 %v347, 120
    %v645 = vpop.permute.xlu0 %644
    %646 = vrot.lane.b32.xlu0 %v348, 120
    %v647 = vpop.permute.xlu0 %646
    %648 = vrot.lane.b32.xlu0 %v349, 120
    %v649 = vpop.permute.xlu0 %648
    %650 = vrot.lane.b32.xlu0 %v350, 88
    %v651 = vpop.permute.xlu0 %650
    %652 = vrot.lane.b32.xlu0 %v351, 88
    %v653 = vpop.permute.xlu0 %652
    %654 = vrot.lane.b32.xlu0 %v352, 88
    %v655 = vpop.permute.xlu0 %654
    %656 = vrot.lane.b32.xlu0 %v353, 88
    %v657 = vpop.permute.xlu0 %656
    %v659 = vsel %vm366, %v643, 0
    %v662 = vsel %vm366, %v645, 0
    %v665 = vsel %vm366, %v647, 0
    %v668 = vsel %vm366, %v649, 0
    %v671 = vsel %vm366, %v651, 0
    %v674 = vsel %vm366, %v653, 0
    %v677 = vsel %vm366, %v655, 0
    %v680 = vsel %vm366, %v657, 0
    %682 = vmatprep.subr.bf16.mxu0 0
    %683 = vmatpush1.bf16.xpose.msra.mxu0 0
    %684 = vmatprep.subr.bf16.mxu0 0
    %685 = vmatpush1.bf16.xpose.msra.mxu0 0
    %686 = vmatprep.subr.bf16.mxu0 0
    %687 = vmatpush1.bf16.xpose.msra.mxu0 0
    %688 = vmatprep.subr.bf16.mxu0 0
    %689 = vmatpush1.bf16.xpose.msra.mxu0 0
    %690 = vmatprep.subr.bf16.mxu0 0
    %691 = vmatpush1.bf16.xpose.msra.mxu0 %v680
    %692 = vmatprep.subr.bf16.mxu0 0
    %693 = vmatpush1.bf16.xpose.msra.mxu0 %v677
    %694 = vmatprep.subr.bf16.mxu0 0
    %695 = vmatpush1.bf16.xpose.msra.mxu0 %v674
    %696 = vmatprep.subr.bf16.mxu0 0
    %697 = vmatpush1.bf16.xpose.msra.mxu0 %v671
    %698 = vmatprep.subr.bf16.mxu0 0
    %699 = vmatpush2.bf16.xpose.msra.mxu0 0
    %700 = vmatprep.subr.bf16.mxu0 0
    %701 = vmatpush2.bf16.xpose.msra.mxu0 0
    %702 = vmatprep.subr.bf16.mxu0 0
    %703 = vmatpush2.bf16.xpose.msra.mxu0 0
    %704 = vmatprep.subr.bf16.mxu0 0
    %705 = vmatpush2.bf16.xpose.msra.mxu0 0
    %706 = vmatprep.subr.bf16.mxu0 0
    %707 = vmatpush2.bf16.xpose.msra.mxu0 0
    %708 = vmatprep.subr.bf16.mxu0 0
    %709 = vmatpush2.bf16.xpose.msra.mxu0 0
    %710 = vmatprep.subr.bf16.mxu0 0
    %711 = vmatpush2.bf16.xpose.msra.mxu0 0
    %712 = vmatprep.subr.bf16.mxu0 0
    %713 = vmatpush2.bf16.xpose.msra.mxu0 0
    %714 = vmatprep.mubr.bf16.mxu0 0
    %715 = vmatmul.mubr.bf16.gmra.mxu0 %v659
    %v716 = vpop.f32.mrf.mxu0
    %v717 = vadd.f32 %v82, %v716
    %v718 = vpop.f32.mrf.mxu0
    %v719 = vpop.f32.mrf.mxu0
    %v720 = vadd.f32 %v83, %v719
    %v721 = vpop.f32.mrf.mxu0
    %722 = vmatprep.mubr.bf16.mxu0 0
    %723 = vmatmul.mubr.bf16.gmra.mxu0 %v662
    %v724 = vpop.f32.mrf.mxu0
    %v725 = vadd.f32 %v84, %v724
    %v726 = vpop.f32.mrf.mxu0
    %v727 = vpop.f32.mrf.mxu0
    %v728 = vadd.f32 %v85, %v727
    %v729 = vpop.f32.mrf.mxu0
    %730 = vmatprep.mubr.bf16.mxu0 0
    %731 = vmatmul.mubr.bf16.gmra.mxu0 %v665
    %v732 = vpop.f32.mrf.mxu0
    %v733 = vadd.f32 %v86, %v732
    %v734 = vpop.f32.mrf.mxu0
    %v735 = vpop.f32.mrf.mxu0
    %v736 = vadd.f32 %v87, %v735
    %v737 = vpop.f32.mrf.mxu0
    %738 = vmatprep.mubr.bf16.mxu0 0
    %739 = vmatmul.mubr.bf16.gmra.mxu0 %v668
    %v740 = vpop.f32.mrf.mxu0
    %v741 = vadd.f32 %v88, %v740
    %v742 = vpop.f32.mrf.mxu0
    %v743 = vpop.f32.mrf.mxu0
    %v744 = vadd.f32 %v89, %v743
    %v745 = vpop.f32.mrf.mxu0
    %746 = vdwg.mxu0
    %v747 = vsel %vm456, %v717, -inf
    %748 = vmax.xlane.f32.xlu0 %v747
    %v749 = vpop.xlane.xlu0 %748
    %v750 = vsel %vm456, %v720, -inf
    %751 = vmax.xlane.f32.xlu0 %v750
    %v752 = vpop.xlane.xlu0 %751
    %v753 = vsel %vm456, %v725, -inf
    %754 = vmax.xlane.f32.xlu0 %v753
    %v755 = vpop.xlane.xlu0 %754
    %v756 = vsel %vm456, %v728, -inf
    %757 = vmax.xlane.f32.xlu0 %v756
    %v758 = vpop.xlane.xlu0 %757
    %v759 = vsel %vm456, %v733, -inf
    %760 = vmax.xlane.f32.xlu0 %v759
    %v761 = vpop.xlane.xlu0 %760
    %v762 = vsel %vm456, %v736, -inf
    %763 = vmax.xlane.f32.xlu0 %v762
    %v764 = vpop.xlane.xlu0 %763
    %v765 = vsel %vm456, %v741, -inf
    %766 = vmax.xlane.f32.xlu0 %v765
    %v767 = vpop.xlane.xlu0 %766
    %v768 = vsel %vm456, %v744, -inf
    %769 = vmax.xlane.f32.xlu0 %v768
    %v770 = vpop.xlane.xlu0 %769
    %v771 = vsub.f32 %v717, %v749
    %v772 = vsub.f32 %v720, %v752
    %v773 = vsub.f32 %v725, %v755
    %v774 = vsub.f32 %v728, %v758
    %v775 = vsub.f32 %v733, %v761
    %v776 = vsub.f32 %v736, %v764
    %v777 = vsub.f32 %v741, %v767
    %v778 = vsub.f32 %v744, %v770
    %v779 = vmul.f32 %v771, 1.442695
    %v780 = vpow.pop %v779
    %v781 = vmul.f32 %v772, 1.442695
    %v782 = vpow.pop %v781
    %v783 = vmul.f32 %v773, 1.442695
    %v784 = vpow.pop %v783
    %v785 = vmul.f32 %v774, 1.442695
    %v786 = vpow.pop %v785
    %v787 = vmul.f32 %v775, 1.442695
    %v788 = vpow.pop %v787
    %v789 = vmul.f32 %v776, 1.442695
    %v790 = vpow.pop %v789
    %v791 = vmul.f32 %v777, 1.442695
    %v792 = vpow.pop %v791
    %v793 = vmul.f32 %v778, 1.442695
    %v794 = vpow.pop %v793
    %v795 = vsel %vm456, %v780, 0.0
    %796 = vadd.xlane.f32.xlu0 %v795
    %v797 = vpop.xlane.xlu0 %796
    %v798 = vsel %vm456, %v782, 0.0
    %799 = vadd.xlane.f32.xlu0 %v798
    %v800 = vpop.xlane.xlu0 %799
    %v801 = vsel %vm456, %v784, 0.0
    %802 = vadd.xlane.f32.xlu0 %v801
    %v803 = vpop.xlane.xlu0 %802
    %v804 = vsel %vm456, %v786, 0.0
    %805 = vadd.xlane.f32.xlu0 %v804
    %v806 = vpop.xlane.xlu0 %805
    %v807 = vsel %vm456, %v788, 0.0
    %808 = vadd.xlane.f32.xlu0 %v807
    %v809 = vpop.xlane.xlu0 %808
    %v810 = vsel %vm456, %v790, 0.0
    %811 = vadd.xlane.f32.xlu0 %v810
    %v812 = vpop.xlane.xlu0 %811
    %v813 = vsel %vm456, %v792, 0.0
    %814 = vadd.xlane.f32.xlu0 %v813
    %v815 = vpop.xlane.xlu0 %814
    %v816 = vsel %vm456, %v794, 0.0
    %817 = vadd.xlane.f32.xlu0 %v816
    %v818 = vpop.xlane.xlu0 %817
    %v819 = vrcp.pop %v797
    %v820 = vrcp.pop %v800
    %v821 = vrcp.pop %v803
    %v822 = vrcp.pop %v806
    %v823 = vrcp.pop %v809
    %v824 = vrcp.pop %v812
    %v825 = vrcp.pop %v815
    %v826 = vrcp.pop %v818
    %v827 = vmul.f32 %v780, %v819
    %v828 = vmul.f32 %v782, %v820
    %v829 = vmul.f32 %v784, %v821
    %v830 = vmul.f32 %v786, %v822
    %v831 = vmul.f32 %v788, %v823
    %v832 = vmul.f32 %v790, %v824
    %v833 = vmul.f32 %v792, %v825
    %v834 = vmul.f32 %v794, %v826
    %v835 = vpack.c.bf16 %v828, %v827
    %v836 = vpack.c.bf16 %v830, %v829
    %v837 = vpack.c.bf16 %v832, %v831
    %v838 = vpack.c.bf16 %v834, %v833
    %839 = vrot.lane.b32.xlu0 %v350, 56
    %v840 = vpop.permute.xlu0 %839
    %841 = vrot.lane.b32.xlu0 %v351, 56
    %v842 = vpop.permute.xlu0 %841
    %843 = vrot.lane.b32.xlu0 %v352, 56
    %v844 = vpop.permute.xlu0 %843
    %845 = vrot.lane.b32.xlu0 %v353, 56
    %v846 = vpop.permute.xlu0 %845
    %v852 = vsel %vm456, %v835, 0
    %v855 = vsel %vm456, %v836, 0
    %v858 = vsel %vm456, %v837, 0
    %v861 = vsel %vm456, %v838, 0
    %863 = vmatprep.subr.bf16.mxu0 0
    %864 = vmatpush1.bf16.msra.mxu0 0
    %865 = vmatprep.subr.bf16.mxu0 0
    %866 = vmatpush1.bf16.msra.mxu0 0
    %867 = vmatprep.subr.bf16.mxu0 0
    %868 = vmatpush1.bf16.msra.mxu0 0
    %869 = vmatprep.subr.bf16.mxu0 0
    %870 = vmatpush1.bf16.msra.mxu0 0
    %871 = vmatprep.subr.bf16.mxu0 0
    %872 = vmatpush1.bf16.msra.mxu0 %v846
    %873 = vmatprep.subr.bf16.mxu0 0
    %874 = vmatpush1.bf16.msra.mxu0 %v844
    %875 = vmatprep.subr.bf16.mxu0 0
    %876 = vmatpush1.bf16.msra.mxu0 %v842
    %877 = vmatprep.subr.bf16.mxu0 0
    %878 = vmatpush1.bf16.msra.mxu0 %v840
    %879 = vmatprep.subr.bf16.mxu0 0
    %880 = vmatpush2.bf16.msra.mxu0 0
    %881 = vmatprep.subr.bf16.mxu0 0
    %882 = vmatpush2.bf16.msra.mxu0 0
    %883 = vmatprep.subr.bf16.mxu0 0
    %884 = vmatpush2.bf16.msra.mxu0 0
    %885 = vmatprep.subr.bf16.mxu0 0
    %886 = vmatpush2.bf16.msra.mxu0 0
    %887 = vmatprep.subr.bf16.mxu0 0
    %888 = vmatpush2.bf16.msra.mxu0 0
    %889 = vmatprep.subr.bf16.mxu0 0
    %890 = vmatpush2.bf16.msra.mxu0 0
    %891 = vmatprep.subr.bf16.mxu0 0
    %892 = vmatpush2.bf16.msra.mxu0 0
    %893 = vmatprep.subr.bf16.mxu0 0
    %894 = vmatpush2.bf16.msra.mxu0 0
    %895 = vmatprep.mubr.bf16.mxu0 0
    %896 = vmatmul.mubr.bf16.gmra.mxu0 %v852
    %v897 = vpop.f32.mrf.mxu0
    %v898 = vadd.f32 0.0, %v897
    %v899 = vpop.f32.mrf.mxu0
    %v900 = vpop.f32.mrf.mxu0
    %v901 = vadd.f32 0.0, %v900
    %v902 = vpop.f32.mrf.mxu0
    %903 = vmatprep.mubr.bf16.mxu0 0
    %904 = vmatmul.mubr.bf16.gmra.mxu0 %v855
    %v905 = vpop.f32.mrf.mxu0
    %v906 = vadd.f32 0.0, %v905
    %v907 = vpop.f32.mrf.mxu0
    %v908 = vpop.f32.mrf.mxu0
    %v909 = vadd.f32 0.0, %v908
    %v910 = vpop.f32.mrf.mxu0
    %911 = vmatprep.mubr.bf16.mxu0 0
    %912 = vmatmul.mubr.bf16.gmra.mxu0 %v858
    %v913 = vpop.f32.mrf.mxu0
    %v914 = vadd.f32 0.0, %v913
    %v915 = vpop.f32.mrf.mxu0
    %v916 = vpop.f32.mrf.mxu0
    %v917 = vadd.f32 0.0, %v916
    %v918 = vpop.f32.mrf.mxu0
    %919 = vmatprep.mubr.bf16.mxu0 0
    %920 = vmatmul.mubr.bf16.gmra.mxu0 %v861
    %v921 = vpop.f32.mrf.mxu0
    %v922 = vadd.f32 0.0, %v921
    %v923 = vpop.f32.mrf.mxu0
    %v924 = vpop.f32.mrf.mxu0
    %v925 = vadd.f32 0.0, %v924
    %v926 = vpop.f32.mrf.mxu0
    %927 = vdwg.mxu0
    %928 = vrot.lane.b32.xlu0 %v346, 112
    %v929 = vpop.permute.xlu0 %928
    %930 = vrot.lane.b32.xlu0 %v347, 112
    %v931 = vpop.permute.xlu0 %930
    %932 = vrot.lane.b32.xlu0 %v348, 112
    %v933 = vpop.permute.xlu0 %932
    %934 = vrot.lane.b32.xlu0 %v349, 112
    %v935 = vpop.permute.xlu0 %934
    %936 = vrot.lane.b32.xlu0 %v350, 80
    %v937 = vpop.permute.xlu0 %936
    %938 = vrot.lane.b32.xlu0 %v351, 80
    %v939 = vpop.permute.xlu0 %938
    %940 = vrot.lane.b32.xlu0 %v352, 80
    %v941 = vpop.permute.xlu0 %940
    %942 = vrot.lane.b32.xlu0 %v353, 80
    %v943 = vpop.permute.xlu0 %942
    %v945 = vsel %vm366, %v929, 0
    %v948 = vsel %vm366, %v931, 0
    %v951 = vsel %vm366, %v933, 0
    %v954 = vsel %vm366, %v935, 0
    %v957 = vsel %vm366, %v937, 0
    %v960 = vsel %vm366, %v939, 0
    %v963 = vsel %vm366, %v941, 0
    %v966 = vsel %vm366, %v943, 0
    %968 = vmatprep.subr.bf16.mxu0 0
    %969 = vmatpush1.bf16.xpose.msra.mxu0 0
    %970 = vmatprep.subr.bf16.mxu0 0
    %971 = vmatpush1.bf16.xpose.msra.mxu0 0
    %972 = vmatprep.subr.bf16.mxu0 0
    %973 = vmatpush1.bf16.xpose.msra.mxu0 0
    %974 = vmatprep.subr.bf16.mxu0 0
    %975 = vmatpush1.bf16.xpose.msra.mxu0 0
    %976 = vmatprep.subr.bf16.mxu0 0
    %977 = vmatpush1.bf16.xpose.msra.mxu0 %v966
    %978 = vmatprep.subr.bf16.mxu0 0
    %979 = vmatpush1.bf16.xpose.msra.mxu0 %v963
    %980 = vmatprep.subr.bf16.mxu0 0
    %981 = vmatpush1.bf16.xpose.msra.mxu0 %v960
    %982 = vmatprep.subr.bf16.mxu0 0
    %983 = vmatpush1.bf16.xpose.msra.mxu0 %v957
    %984 = vmatprep.subr.bf16.mxu0 0
    %985 = vmatpush2.bf16.xpose.msra.mxu0 0
    %986 = vmatprep.subr.bf16.mxu0 0
    %987 = vmatpush2.bf16.xpose.msra.mxu0 0
    %988 = vmatprep.subr.bf16.mxu0 0
    %989 = vmatpush2.bf16.xpose.msra.mxu0 0
    %990 = vmatprep.subr.bf16.mxu0 0
    %991 = vmatpush2.bf16.xpose.msra.mxu0 0
    %992 = vmatprep.subr.bf16.mxu0 0
    %993 = vmatpush2.bf16.xpose.msra.mxu0 0
    %994 = vmatprep.subr.bf16.mxu0 0
    %995 = vmatpush2.bf16.xpose.msra.mxu0 0
    %996 = vmatprep.subr.bf16.mxu0 0
    %997 = vmatpush2.bf16.xpose.msra.mxu0 0
    %998 = vmatprep.subr.bf16.mxu0 0
    %999 = vmatpush2.bf16.xpose.msra.mxu0 0
    %1000 = vmatprep.mubr.bf16.mxu0 0
    %1001 = vmatmul.mubr.bf16.gmra.mxu0 %v945
    %v1002 = vpop.f32.mrf.mxu0
    %v1003 = vadd.f32 %v82, %v1002
    %v1004 = vpop.f32.mrf.mxu0
    %v1005 = vpop.f32.mrf.mxu0
    %v1006 = vadd.f32 %v83, %v1005
    %v1007 = vpop.f32.mrf.mxu0
    %1008 = vmatprep.mubr.bf16.mxu0 0
    %1009 = vmatmul.mubr.bf16.gmra.mxu0 %v948
    %v1010 = vpop.f32.mrf.mxu0
    %v1011 = vadd.f32 %v84, %v1010
    %v1012 = vpop.f32.mrf.mxu0
    %v1013 = vpop.f32.mrf.mxu0
    %v1014 = vadd.f32 %v85, %v1013
    %v1015 = vpop.f32.mrf.mxu0
    %1016 = vmatprep.mubr.bf16.mxu0 0
    %1017 = vmatmul.mubr.bf16.gmra.mxu0 %v951
    %v1018 = vpop.f32.mrf.mxu0
    %v1019 = vadd.f32 %v86, %v1018
    %v1020 = vpop.f32.mrf.mxu0
    %v1021 = vpop.f32.mrf.mxu0
    %v1022 = vadd.f32 %v87, %v1021
    %v1023 = vpop.f32.mrf.mxu0
    %1024 = vmatprep.mubr.bf16.mxu0 0
    %1025 = vmatmul.mubr.bf16.gmra.mxu0 %v954
    %v1026 = vpop.f32.mrf.mxu0
    %v1027 = vadd.f32 %v88, %v1026
    %v1028 = vpop.f32.mrf.mxu0
    %v1029 = vpop.f32.mrf.mxu0
    %v1030 = vadd.f32 %v89, %v1029
    %v1031 = vpop.f32.mrf.mxu0
    %1032 = vdwg.mxu0
    %v1033 = vsel %vm456, %v1003, -inf
    %1034 = vmax.xlane.f32.xlu0 %v1033
    %v1035 = vpop.xlane.xlu0 %1034
    %v1036 = vsel %vm456, %v1006, -inf
    %1037 = vmax.xlane.f32.xlu0 %v1036
    %v1038 = vpop.xlane.xlu0 %1037
    %v1039 = vsel %vm456, %v1011, -inf
    %1040 = vmax.xlane.f32.xlu0 %v1039
    %v1041 = vpop.xlane.xlu0 %1040
    %v1042 = vsel %vm456, %v1014, -inf
    %1043 = vmax.xlane.f32.xlu0 %v1042
    %v1044 = vpop.xlane.xlu0 %1043
    %v1045 = vsel %vm456, %v1019, -inf
    %1046 = vmax.xlane.f32.xlu0 %v1045
    %v1047 = vpop.xlane.xlu0 %1046
    %v1048 = vsel %vm456, %v1022, -inf
    %1049 = vmax.xlane.f32.xlu0 %v1048
    %v1050 = vpop.xlane.xlu0 %1049
    %v1051 = vsel %vm456, %v1027, -inf
    %1052 = vmax.xlane.f32.xlu0 %v1051
    %v1053 = vpop.xlane.xlu0 %1052
    %v1054 = vsel %vm456, %v1030, -inf
    %1055 = vmax.xlane.f32.xlu0 %v1054
    %v1056 = vpop.xlane.xlu0 %1055
    %v1057 = vsub.f32 %v1003, %v1035
    %v1058 = vsub.f32 %v1006, %v1038
    %v1059 = vsub.f32 %v1011, %v1041
    %v1060 = vsub.f32 %v1014, %v1044
    %v1061 = vsub.f32 %v1019, %v1047
    %v1062 = vsub.f32 %v1022, %v1050
    %v1063 = vsub.f32 %v1027, %v1053
    %v1064 = vsub.f32 %v1030, %v1056
    %v1065 = vmul.f32 %v1057, 1.442695
    %v1066 = vpow.pop %v1065
    %v1067 = vmul.f32 %v1058, 1.442695
    %v1068 = vpow.pop %v1067
    %v1069 = vmul.f32 %v1059, 1.442695
    %v1070 = vpow.pop %v1069
    %v1071 = vmul.f32 %v1060, 1.442695
    %v1072 = vpow.pop %v1071
    %v1073 = vmul.f32 %v1061, 1.442695
    %v1074 = vpow.pop %v1073
    %v1075 = vmul.f32 %v1062, 1.442695
    %v1076 = vpow.pop %v1075
    %v1077 = vmul.f32 %v1063, 1.442695
    %v1078 = vpow.pop %v1077
    %v1079 = vmul.f32 %v1064, 1.442695
    %v1080 = vpow.pop %v1079
    %v1081 = vsel %vm456, %v1066, 0.0
    %1082 = vadd.xlane.f32.xlu0 %v1081
    %v1083 = vpop.xlane.xlu0 %1082
    %v1084 = vsel %vm456, %v1068, 0.0
    %1085 = vadd.xlane.f32.xlu0 %v1084
    %v1086 = vpop.xlane.xlu0 %1085
    %v1087 = vsel %vm456, %v1070, 0.0
    %1088 = vadd.xlane.f32.xlu0 %v1087
    %v1089 = vpop.xlane.xlu0 %1088
    %v1090 = vsel %vm456, %v1072, 0.0
    %1091 = vadd.xlane.f32.xlu0 %v1090
    %v1092 = vpop.xlane.xlu0 %1091
    %v1093 = vsel %vm456, %v1074, 0.0
    %1094 = vadd.xlane.f32.xlu0 %v1093
    %v1095 = vpop.xlane.xlu0 %1094
    %v1096 = vsel %vm456, %v1076, 0.0
    %1097 = vadd.xlane.f32.xlu0 %v1096
    %v1098 = vpop.xlane.xlu0 %1097
    %v1099 = vsel %vm456, %v1078, 0.0
    %1100 = vadd.xlane.f32.xlu0 %v1099
    %v1101 = vpop.xlane.xlu0 %1100
    %v1102 = vsel %vm456, %v1080, 0.0
    %1103 = vadd.xlane.f32.xlu0 %v1102
    %v1104 = vpop.xlane.xlu0 %1103
    %v1105 = vrcp.pop %v1083
    %v1106 = vrcp.pop %v1086
    %v1107 = vrcp.pop %v1089
    %v1108 = vrcp.pop %v1092
    %v1109 = vrcp.pop %v1095
    %v1110 = vrcp.pop %v1098
    %v1111 = vrcp.pop %v1101
    %v1112 = vrcp.pop %v1104
    %v1113 = vmul.f32 %v1066, %v1105
    %v1114 = vmul.f32 %v1068, %v1106
    %v1115 = vmul.f32 %v1070, %v1107
    %v1116 = vmul.f32 %v1072, %v1108
    %v1117 = vmul.f32 %v1074, %v1109
    %v1118 = vmul.f32 %v1076, %v1110
    %v1119 = vmul.f32 %v1078, %v1111
    %v1120 = vmul.f32 %v1080, %v1112
    %v1121 = vpack.c.bf16 %v1114, %v1113
    %v1122 = vpack.c.bf16 %v1116, %v1115
    %v1123 = vpack.c.bf16 %v1118, %v1117
    %v1124 = vpack.c.bf16 %v1120, %v1119
    %1125 = vrot.lane.b32.xlu0 %v350, 48
    %v1126 = vpop.permute.xlu0 %1125
    %1127 = vrot.lane.b32.xlu0 %v351, 48
    %v1128 = vpop.permute.xlu0 %1127
    %1129 = vrot.lane.b32.xlu0 %v352, 48
    %v1130 = vpop.permute.xlu0 %1129
    %1131 = vrot.lane.b32.xlu0 %v353, 48
    %v1132 = vpop.permute.xlu0 %1131
    %v1138 = vsel %vm456, %v1121, 0
    %v1141 = vsel %vm456, %v1122, 0
    %v1144 = vsel %vm456, %v1123, 0
    %v1147 = vsel %vm456, %v1124, 0
    %1149 = vmatprep.subr.bf16.mxu0 0
    %1150 = vmatpush1.bf16.msra.mxu0 0
    %1151 = vmatprep.subr.bf16.mxu0 0
    %1152 = vmatpush1.bf16.msra.mxu0 0
    %1153 = vmatprep.subr.bf16.mxu0 0
    %1154 = vmatpush1.bf16.msra.mxu0 0
    %1155 = vmatprep.subr.bf16.mxu0 0
    %1156 = vmatpush1.bf16.msra.mxu0 0
    %1157 = vmatprep.subr.bf16.mxu0 0
    %1158 = vmatpush1.bf16.msra.mxu0 %v1132
    %1159 = vmatprep.subr.bf16.mxu0 0
    %1160 = vmatpush1.bf16.msra.mxu0 %v1130
    %1161 = vmatprep.subr.bf16.mxu0 0
    %1162 = vmatpush1.bf16.msra.mxu0 %v1128
    %1163 = vmatprep.subr.bf16.mxu0 0
    %1164 = vmatpush1.bf16.msra.mxu0 %v1126
    %1165 = vmatprep.subr.bf16.mxu0 0
    %1166 = vmatpush2.bf16.msra.mxu0 0
    %1167 = vmatprep.subr.bf16.mxu0 0
    %1168 = vmatpush2.bf16.msra.mxu0 0
    %1169 = vmatprep.subr.bf16.mxu0 0
    %1170 = vmatpush2.bf16.msra.mxu0 0
    %1171 = vmatprep.subr.bf16.mxu0 0
    %1172 = vmatpush2.bf16.msra.mxu0 0
    %1173 = vmatprep.subr.bf16.mxu0 0
    %1174 = vmatpush2.bf16.msra.mxu0 0
    %1175 = vmatprep.subr.bf16.mxu0 0
    %1176 = vmatpush2.bf16.msra.mxu0 0
    %1177 = vmatprep.subr.bf16.mxu0 0
    %1178 = vmatpush2.bf16.msra.mxu0 0
    %1179 = vmatprep.subr.bf16.mxu0 0
    %1180 = vmatpush2.bf16.msra.mxu0 0
    %1181 = vmatprep.mubr.bf16.mxu0 0
    %1182 = vmatmul.mubr.bf16.gmra.mxu0 %v1138
    %v1183 = vpop.f32.mrf.mxu0
    %v1184 = vadd.f32 0.0, %v1183
    %v1185 = vpop.f32.mrf.mxu0
    %v1186 = vpop.f32.mrf.mxu0
    %v1187 = vadd.f32 0.0, %v1186
    %v1188 = vpop.f32.mrf.mxu0
    %1189 = vmatprep.mubr.bf16.mxu0 0
    %1190 = vmatmul.mubr.bf16.gmra.mxu0 %v1141
    %v1191 = vpop.f32.mrf.mxu0
    %v1192 = vadd.f32 0.0, %v1191
    %v1193 = vpop.f32.mrf.mxu0
    %v1194 = vpop.f32.mrf.mxu0
    %v1195 = vadd.f32 0.0, %v1194
    %v1196 = vpop.f32.mrf.mxu0
    %1197 = vmatprep.mubr.bf16.mxu0 0
    %1198 = vmatmul.mubr.bf16.gmra.mxu0 %v1144
    %v1199 = vpop.f32.mrf.mxu0
    %v1200 = vadd.f32 0.0, %v1199
    %v1201 = vpop.f32.mrf.mxu0
    %v1202 = vpop.f32.mrf.mxu0
    %v1203 = vadd.f32 0.0, %v1202
    %v1204 = vpop.f32.mrf.mxu0
    %1205 = vmatprep.mubr.bf16.mxu0 0
    %1206 = vmatmul.mubr.bf16.gmra.mxu0 %v1147
    %v1207 = vpop.f32.mrf.mxu0
    %v1208 = vadd.f32 0.0, %v1207
    %v1209 = vpop.f32.mrf.mxu0
    %v1210 = vpop.f32.mrf.mxu0
    %v1211 = vadd.f32 0.0, %v1210
    %v1212 = vpop.f32.mrf.mxu0
    %1213 = vdwg.mxu0
    %1214 = vrot.lane.b32.xlu0 %v346, 104
    %v1215 = vpop.permute.xlu0 %1214
    %1216 = vrot.lane.b32.xlu0 %v347, 104
    %v1217 = vpop.permute.xlu0 %1216
    %1218 = vrot.lane.b32.xlu0 %v348, 104
    %v1219 = vpop.permute.xlu0 %1218
    %1220 = vrot.lane.b32.xlu0 %v349, 104
    %v1221 = vpop.permute.xlu0 %1220
    %1222 = vrot.lane.b32.xlu0 %v350, 72
    %v1223 = vpop.permute.xlu0 %1222
    %1224 = vrot.lane.b32.xlu0 %v351, 72
    %v1225 = vpop.permute.xlu0 %1224
    %1226 = vrot.lane.b32.xlu0 %v352, 72
    %v1227 = vpop.permute.xlu0 %1226
    %1228 = vrot.lane.b32.xlu0 %v353, 72
    %v1229 = vpop.permute.xlu0 %1228
    %v1231 = vsel %vm366, %v1215, 0
    %v1234 = vsel %vm366, %v1217, 0
    %v1237 = vsel %vm366, %v1219, 0
    %v1240 = vsel %vm366, %v1221, 0
    %v1243 = vsel %vm366, %v1223, 0
    %v1246 = vsel %vm366, %v1225, 0
    %v1249 = vsel %vm366, %v1227, 0
    %v1252 = vsel %vm366, %v1229, 0
    %1254 = vmatprep.subr.bf16.mxu0 0
    %1255 = vmatpush1.bf16.xpose.msra.mxu0 0
    %1256 = vmatprep.subr.bf16.mxu0 0
    %1257 = vmatpush1.bf16.xpose.msra.mxu0 0
    %1258 = vmatprep.subr.bf16.mxu0 0
    %1259 = vmatpush1.bf16.xpose.msra.mxu0 0
    %1260 = vmatprep.subr.bf16.mxu0 0
    %1261 = vmatpush1.bf16.xpose.msra.mxu0 0
    %1262 = vmatprep.subr.bf16.mxu0 0
    %1263 = vmatpush1.bf16.xpose.msra.mxu0 %v1252
    %1264 = vmatprep.subr.bf16.mxu0 0
    %1265 = vmatpush1.bf16.xpose.msra.mxu0 %v1249
    %1266 = vmatprep.subr.bf16.mxu0 0
    %1267 = vmatpush1.bf16.xpose.msra.mxu0 %v1246
    %1268 = vmatprep.subr.bf16.mxu0 0
    %1269 = vmatpush1.bf16.xpose.msra.mxu0 %v1243
    %1270 = vmatprep.subr.bf16.mxu0 0
    %1271 = vmatpush2.bf16.xpose.msra.mxu0 0
    %1272 = vmatprep.subr.bf16.mxu0 0
    %1273 = vmatpush2.bf16.xpose.msra.mxu0 0
    %1274 = vmatprep.subr.bf16.mxu0 0
    %1275 = vmatpush2.bf16.xpose.msra.mxu0 0
    %1276 = vmatprep.subr.bf16.mxu0 0
    %1277 = vmatpush2.bf16.xpose.msra.mxu0 0
    %1278 = vmatprep.subr.bf16.mxu0 0
    %1279 = vmatpush2.bf16.xpose.msra.mxu0 0
    %1280 = vmatprep.subr.bf16.mxu0 0
    %1281 = vmatpush2.bf16.xpose.msra.mxu0 0
    %1282 = vmatprep.subr.bf16.mxu0 0
    %1283 = vmatpush2.bf16.xpose.msra.mxu0 0
    %1284 = vmatprep.subr.bf16.mxu0 0
    %1285 = vmatpush2.bf16.xpose.msra.mxu0 0
    %1286 = vmatprep.mubr.bf16.mxu0 0
    %1287 = vmatmul.mubr.bf16.gmra.mxu0 %v1231
    %v1288 = vpop.f32.mrf.mxu0
    %v1289 = vadd.f32 %v82, %v1288
    %v1290 = vpop.f32.mrf.mxu0
    %v1291 = vpop.f32.mrf.mxu0
    %v1292 = vadd.f32 %v83, %v1291
    %v1293 = vpop.f32.mrf.mxu0
    %1294 = vmatprep.mubr.bf16.mxu0 0
    %1295 = vmatmul.mubr.bf16.gmra.mxu0 %v1234
    %v1296 = vpop.f32.mrf.mxu0
    %v1297 = vadd.f32 %v84, %v1296
    %v1298 = vpop.f32.mrf.mxu0
    %v1299 = vpop.f32.mrf.mxu0
    %v1300 = vadd.f32 %v85, %v1299
    %v1301 = vpop.f32.mrf.mxu0
    %1302 = vmatprep.mubr.bf16.mxu0 0
    %1303 = vmatmul.mubr.bf16.gmra.mxu0 %v1237
    %v1304 = vpop.f32.mrf.mxu0
    %v1305 = vadd.f32 %v86, %v1304
    %v1306 = vpop.f32.mrf.mxu0
    %v1307 = vpop.f32.mrf.mxu0
    %v1308 = vadd.f32 %v87, %v1307
    %v1309 = vpop.f32.mrf.mxu0
    %1310 = vmatprep.mubr.bf16.mxu0 0
    %1311 = vmatmul.mubr.bf16.gmra.mxu0 %v1240
    %v1312 = vpop.f32.mrf.mxu0
    %v1313 = vadd.f32 %v88, %v1312
    %v1314 = vpop.f32.mrf.mxu0
    %v1315 = vpop.f32.mrf.mxu0
    %v1316 = vadd.f32 %v89, %v1315
    %v1317 = vpop.f32.mrf.mxu0
    %1318 = vdwg.mxu0
    %v1319 = vsel %vm456, %v1289, -inf
    %1320 = vmax.xlane.f32.xlu0 %v1319
    %v1321 = vpop.xlane.xlu0 %1320
    %v1322 = vsel %vm456, %v1292, -inf
    %1323 = vmax.xlane.f32.xlu0 %v1322
    %v1324 = vpop.xlane.xlu0 %1323
    %v1325 = vsel %vm456, %v1297, -inf
    %1326 = vmax.xlane.f32.xlu0 %v1325
    %v1327 = vpop.xlane.xlu0 %1326
    %v1328 = vsel %vm456, %v1300, -inf
    %1329 = vmax.xlane.f32.xlu0 %v1328
    %v1330 = vpop.xlane.xlu0 %1329
    %v1331 = vsel %vm456, %v1305, -inf
    %1332 = vmax.xlane.f32.xlu0 %v1331
    %v1333 = vpop.xlane.xlu0 %1332
    %v1334 = vsel %vm456, %v1308, -inf
    %1335 = vmax.xlane.f32.xlu0 %v1334
    %v1336 = vpop.xlane.xlu0 %1335
    %v1337 = vsel %vm456, %v1313, -inf
    %1338 = vmax.xlane.f32.xlu0 %v1337
    %v1339 = vpop.xlane.xlu0 %1338
    %v1340 = vsel %vm456, %v1316, -inf
    %1341 = vmax.xlane.f32.xlu0 %v1340
    %v1342 = vpop.xlane.xlu0 %1341
    %v1343 = vsub.f32 %v1289, %v1321
    %v1344 = vsub.f32 %v1292, %v1324
    %v1345 = vsub.f32 %v1297, %v1327
    %v1346 = vsub.f32 %v1300, %v1330
    %v1347 = vsub.f32 %v1305, %v1333
    %v1348 = vsub.f32 %v1308, %v1336
    %v1349 = vsub.f32 %v1313, %v1339
    %v1350 = vsub.f32 %v1316, %v1342
    %v1351 = vmul.f32 %v1343, 1.442695
    %v1352 = vpow.pop %v1351
    %v1353 = vmul.f32 %v1344, 1.442695
    %v1354 = vpow.pop %v1353
    %v1355 = vmul.f32 %v1345, 1.442695
    %v1356 = vpow.pop %v1355
    %v1357 = vmul.f32 %v1346, 1.442695
    %v1358 = vpow.pop %v1357
    %v1359 = vmul.f32 %v1347, 1.442695
    %v1360 = vpow.pop %v1359
    %v1361 = vmul.f32 %v1348, 1.442695
    %v1362 = vpow.pop %v1361
    %v1363 = vmul.f32 %v1349, 1.442695
    %v1364 = vpow.pop %v1363
    %v1365 = vmul.f32 %v1350, 1.442695
    %v1366 = vpow.pop %v1365
    %v1367 = vsel %vm456, %v1352, 0.0
    %1368 = vadd.xlane.f32.xlu0 %v1367
    %v1369 = vpop.xlane.xlu0 %1368
    %v1370 = vsel %vm456, %v1354, 0.0
    %1371 = vadd.xlane.f32.xlu0 %v1370
    %v1372 = vpop.xlane.xlu0 %1371
    %v1373 = vsel %vm456, %v1356, 0.0
    %1374 = vadd.xlane.f32.xlu0 %v1373
    %v1375 = vpop.xlane.xlu0 %1374
    %v1376 = vsel %vm456, %v1358, 0.0
    %1377 = vadd.xlane.f32.xlu0 %v1376
    %v1378 = vpop.xlane.xlu0 %1377
    %v1379 = vsel %vm456, %v1360, 0.0
    %1380 = vadd.xlane.f32.xlu0 %v1379
    %v1381 = vpop.xlane.xlu0 %1380
    %v1382 = vsel %vm456, %v1362, 0.0
    %1383 = vadd.xlane.f32.xlu0 %v1382
    %v1384 = vpop.xlane.xlu0 %1383
    %v1385 = vsel %vm456, %v1364, 0.0
    %1386 = vadd.xlane.f32.xlu0 %v1385
    %v1387 = vpop.xlane.xlu0 %1386
    %v1388 = vsel %vm456, %v1366, 0.0
    %1389 = vadd.xlane.f32.xlu0 %v1388
    %v1390 = vpop.xlane.xlu0 %1389
    %v1391 = vrcp.pop %v1369
    %v1392 = vrcp.pop %v1372
    %v1393 = vrcp.pop %v1375
    %v1394 = vrcp.pop %v1378
    %v1395 = vrcp.pop %v1381
    %v1396 = vrcp.pop %v1384
    %v1397 = vrcp.pop %v1387
    %v1398 = vrcp.pop %v1390
    %v1399 = vmul.f32 %v1352, %v1391
    %v1400 = vmul.f32 %v1354, %v1392
    %v1401 = vmul.f32 %v1356, %v1393
    %v1402 = vmul.f32 %v1358, %v1394
    %v1403 = vmul.f32 %v1360, %v1395
    %v1404 = vmul.f32 %v1362, %v1396
    %v1405 = vmul.f32 %v1364, %v1397
    %v1406 = vmul.f32 %v1366, %v1398
    %v1407 = vpack.c.bf16 %v1400, %v1399
    %v1408 = vpack.c.bf16 %v1402, %v1401
    %v1409 = vpack.c.bf16 %v1404, %v1403
    %v1410 = vpack.c.bf16 %v1406, %v1405
    %1411 = vrot.lane.b32.xlu0 %v350, 40
    %v1412 = vpop.permute.xlu0 %1411
    %1413 = vrot.lane.b32.xlu0 %v351, 40
    %v1414 = vpop.permute.xlu0 %1413
    %1415 = vrot.lane.b32.xlu0 %v352, 40
    %v1416 = vpop.permute.xlu0 %1415
    %1417 = vrot.lane.b32.xlu0 %v353, 40
    %v1418 = vpop.permute.xlu0 %1417
    %v1424 = vsel %vm456, %v1407, 0
    %v1427 = vsel %vm456, %v1408, 0
    %v1430 = vsel %vm456, %v1409, 0
    %v1433 = vsel %vm456, %v1410, 0
    %1435 = vmatprep.subr.bf16.mxu0 0
    %1436 = vmatpush1.bf16.msra.mxu0 0
    %1437 = vmatprep.subr.bf16.mxu0 0
    %1438 = vmatpush1.bf16.msra.mxu0 0
    %1439 = vmatprep.subr.bf16.mxu0 0
    %1440 = vmatpush1.bf16.msra.mxu0 0
    %1441 = vmatprep.subr.bf16.mxu0 0
    %1442 = vmatpush1.bf16.msra.mxu0 0
    %1443 = vmatprep.subr.bf16.mxu0 0
    %1444 = vmatpush1.bf16.msra.mxu0 %v1418
    %1445 = vmatprep.subr.bf16.mxu0 0
    %1446 = vmatpush1.bf16.msra.mxu0 %v1416
    %1447 = vmatprep.subr.bf16.mxu0 0
    %1448 = vmatpush1.bf16.msra.mxu0 %v1414
    %1449 = vmatprep.subr.bf16.mxu0 0
    %1450 = vmatpush1.bf16.msra.mxu0 %v1412
    %1451 = vmatprep.subr.bf16.mxu0 0
    %1452 = vmatpush2.bf16.msra.mxu0 0
    %1453 = vmatprep.subr.bf16.mxu0 0
    %1454 = vmatpush2.bf16.msra.mxu0 0
    %1455 = vmatprep.subr.bf16.mxu0 0
    %1456 = vmatpush2.bf16.msra.mxu0 0
    %1457 = vmatprep.subr.bf16.mxu0 0
    %1458 = vmatpush2.bf16.msra.mxu0 0
    %1459 = vmatprep.subr.bf16.mxu0 0
    %1460 = vmatpush2.bf16.msra.mxu0 0
    %1461 = vmatprep.subr.bf16.mxu0 0
    %1462 = vmatpush2.bf16.msra.mxu0 0
    %1463 = vmatprep.subr.bf16.mxu0 0
    %1464 = vmatpush2.bf16.msra.mxu0 0
    %1465 = vmatprep.subr.bf16.mxu0 0
    %1466 = vmatpush2.bf16.msra.mxu0 0
    %1467 = vmatprep.mubr.bf16.mxu0 0
    %1468 = vmatmul.mubr.bf16.gmra.mxu0 %v1424
    %v1469 = vpop.f32.mrf.mxu0
    %v1470 = vadd.f32 0.0, %v1469
    %v1471 = vpop.f32.mrf.mxu0
    %v1472 = vpop.f32.mrf.mxu0
    %v1473 = vadd.f32 0.0, %v1472
    %v1474 = vpop.f32.mrf.mxu0
    %1475 = vmatprep.mubr.bf16.mxu0 0
    %1476 = vmatmul.mubr.bf16.gmra.mxu0 %v1427
    %v1477 = vpop.f32.mrf.mxu0
    %v1478 = vadd.f32 0.0, %v1477
    %v1479 = vpop.f32.mrf.mxu0
    %v1480 = vpop.f32.mrf.mxu0
    %v1481 = vadd.f32 0.0, %v1480
    %v1482 = vpop.f32.mrf.mxu0
    %1483 = vmatprep.mubr.bf16.mxu0 0
    %1484 = vmatmul.mubr.bf16.gmra.mxu0 %v1430
    %v1485 = vpop.f32.mrf.mxu0
    %v1486 = vadd.f32 0.0, %v1485
    %v1487 = vpop.f32.mrf.mxu0
    %v1488 = vpop.f32.mrf.mxu0
    %v1489 = vadd.f32 0.0, %v1488
    %v1490 = vpop.f32.mrf.mxu0
    %1491 = vmatprep.mubr.bf16.mxu0 0
    %1492 = vmatmul.mubr.bf16.gmra.mxu0 %v1433
    %v1493 = vpop.f32.mrf.mxu0
    %v1494 = vadd.f32 0.0, %v1493
    %v1495 = vpop.f32.mrf.mxu0
    %v1496 = vpop.f32.mrf.mxu0
    %v1497 = vadd.f32 0.0, %v1496
    %v1498 = vpop.f32.mrf.mxu0
    %1499 = vdwg.mxu0
    %1508 = vrot.lane.b32.xlu0 %v898, 8
    %v1509 = vpop.permute.xlu0 %1508
    %1510 = vrot.lane.b32.xlu0 %v901, 8
    %v1511 = vpop.permute.xlu0 %1510
    %1512 = vrot.lane.b32.xlu0 %v906, 8
    %v1513 = vpop.permute.xlu0 %1512
    %1514 = vrot.lane.b32.xlu0 %v909, 8
    %v1515 = vpop.permute.xlu0 %1514
    %1516 = vrot.lane.b32.xlu0 %v914, 8
    %v1517 = vpop.permute.xlu0 %1516
    %1518 = vrot.lane.b32.xlu0 %v917, 8
    %v1519 = vpop.permute.xlu0 %1518
    %1520 = vrot.lane.b32.xlu0 %v922, 8
    %v1521 = vpop.permute.xlu0 %1520
    %1522 = vrot.lane.b32.xlu0 %v925, 8
    %v1523 = vpop.permute.xlu0 %1522
    %1540 = vrot.lane.b32.xlu0 %v1184, 16
    %v1541 = vpop.permute.xlu0 %1540
    %1542 = vrot.lane.b32.xlu0 %v1187, 16
    %v1543 = vpop.permute.xlu0 %1542
    %1544 = vrot.lane.b32.xlu0 %v1192, 16
    %v1545 = vpop.permute.xlu0 %1544
    %1546 = vrot.lane.b32.xlu0 %v1195, 16
    %v1547 = vpop.permute.xlu0 %1546
    %1548 = vrot.lane.b32.xlu0 %v1200, 16
    %v1549 = vpop.permute.xlu0 %1548
    %1550 = vrot.lane.b32.xlu0 %v1203, 16
    %v1551 = vpop.permute.xlu0 %1550
    %1552 = vrot.lane.b32.xlu0 %v1208, 16
    %v1553 = vpop.permute.xlu0 %1552
    %1554 = vrot.lane.b32.xlu0 %v1211, 16
    %v1555 = vpop.permute.xlu0 %1554
    %1572 = vrot.lane.b32.xlu0 %v1470, 24
    %v1573 = vpop.permute.xlu0 %1572
    %1574 = vrot.lane.b32.xlu0 %v1473, 24
    %v1575 = vpop.permute.xlu0 %1574
    %1576 = vrot.lane.b32.xlu0 %v1478, 24
    %v1577 = vpop.permute.xlu0 %1576
    %1578 = vrot.lane.b32.xlu0 %v1481, 24
    %v1579 = vpop.permute.xlu0 %1578
    %1580 = vrot.lane.b32.xlu0 %v1486, 24
    %v1581 = vpop.permute.xlu0 %1580
    %1582 = vrot.lane.b32.xlu0 %v1489, 24
    %v1583 = vpop.permute.xlu0 %1582
    %1584 = vrot.lane.b32.xlu0 %v1494, 24
    %v1585 = vpop.permute.xlu0 %1584
    %1586 = vrot.lane.b32.xlu0 %v1497, 24
    %v1587 = vpop.permute.xlu0 %1586
    %v1596 = vsel %vm366, %v608, %v1509
    %v1597 = vsel %vm366, %v611, %v1511
    %v1598 = vsel %vm366, %v616, %v1513
    %v1599 = vsel %vm366, %v619, %v1515
    %v1600 = vsel %vm366, %v624, %v1517
    %v1601 = vsel %vm366, %v627, %v1519
    %v1602 = vsel %vm366, %v632, %v1521
    %v1603 = vsel %vm366, %v635, %v1523
    %vm1604 = vcmask 130048
    %v1605 = vsel %vm1604, %v1596, %v1541
    %v1606 = vsel %vm1604, %v1597, %v1543
    %v1607 = vsel %vm1604, %v1598, %v1545
    %v1608 = vsel %vm1604, %v1599, %v1547
    %v1609 = vsel %vm1604, %v1600, %v1549
    %v1610 = vsel %vm1604, %v1601, %v1551
    %v1611 = vsel %vm1604, %v1602, %v1553
    %v1612 = vsel %vm1604, %v1603, %v1555
    %vm1613 = vcmask 195584
    %v1614 = vsel %vm1613, %v1605, %v1573
    %v1615 = vsel %vm1613, %v1606, %v1575
    %v1616 = vsel %vm1613, %v1607, %v1577
    %v1617 = vsel %vm1613, %v1608, %v1579
    %v1618 = vsel %vm1613, %v1609, %v1581
    %v1619 = vsel %vm1613, %v1610, %v1583
    %v1620 = vsel %vm1613, %v1611, %v1585
    %v1621 = vsel %vm1613, %v1612, %v1587
    %v1622 = vpack.c.bf16 %v1615, %v1614
    %v1623 = vpack.c.bf16 %v1617, %v1616
    %v1624 = vpack.c.bf16 %v1619, %v1618
    %v1625 = vpack.c.bf16 %v1621, %v1620
    %v1626 = vld [vmem:[%s6] sm:$0xf]
    %v1627 = vld [vmem:[%s6 + $0x4] sm:$0xf]
    %v1628 = vld [vmem:[%s6 + $0x8] sm:$0xf]
    %v1629 = vld [vmem:[%s6 + $0xc] sm:$0xf]
    %v1630 = vld [vmem:[%s7] sm:$0x1]
    %v1632 = vlaneseq
    %v1633 = vshrl.u32 %v1632, 7
    %v1634 = vsub.s32 0, %v1633
    %v1635 = vrot.slane %v1630, %v1634
    %v1641 = vunpack.c.l.b16 %v1626
    %v1642 = vunpack.c.l.b16 %v1627
    %v1643 = vunpack.c.l.b16 %v1628
    %v1644 = vunpack.c.l.b16 %v1629
    %v1645 = vpack.c.b16 %v1642, %v1641
    %v1646 = vpack.c.b16 %v1644, %v1643
    %v1650 = vsel %vm100, %v1622, 0
    %v1653 = vsel %vm100, %v1623, 0
    %v1656 = vsel %vm100, %v1624, 0
    %v1659 = vsel %vm100, %v1625, 0
    %1661 = vmatprep.subr.bf16.mxu0 0
    %1662 = vmatpush1.bf16.msra.mxu0 0
    %1663 = vmatprep.subr.bf16.mxu0 0
    %1664 = vmatpush1.bf16.msra.mxu0 0
    %1665 = vmatprep.subr.bf16.mxu0 0
    %1666 = vmatpush1.bf16.msra.mxu0 0
    %1667 = vmatprep.subr.bf16.mxu0 0
    %1668 = vmatpush1.bf16.msra.mxu0 0
    %1669 = vmatprep.subr.bf16.mxu0 0
    %1670 = vmatpush1.bf16.msra.mxu0 0
    %1671 = vmatprep.subr.bf16.mxu0 0
    %1672 = vmatpush1.bf16.msra.mxu0 0
    %1673 = vmatprep.subr.bf16.mxu0 0
    %1674 = vmatpush1.bf16.msra.mxu0 %v1646
    %1675 = vmatprep.subr.bf16.mxu0 0
    %1676 = vmatpush1.bf16.msra.mxu0 %v1645
    %1677 = vmatprep.subr.bf16.mxu0 0
    %1678 = vmatpush2.bf16.msra.mxu0 0
    %1679 = vmatprep.subr.bf16.mxu0 0
    %1680 = vmatpush2.bf16.msra.mxu0 0
    %1681 = vmatprep.subr.bf16.mxu0 0
    %1682 = vmatpush2.bf16.msra.mxu0 0
    %1683 = vmatprep.subr.bf16.mxu0 0
    %1684 = vmatpush2.bf16.msra.mxu0 0
    %1685 = vmatprep.subr.bf16.mxu0 0
    %1686 = vmatpush2.bf16.msra.mxu0 0
    %1687 = vmatprep.subr.bf16.mxu0 0
    %1688 = vmatpush2.bf16.msra.mxu0 0
    %1689 = vmatprep.subr.bf16.mxu0 0
    %1690 = vmatpush2.bf16.msra.mxu0 0
    %1691 = vmatprep.subr.bf16.mxu0 0
    %1692 = vmatpush2.bf16.msra.mxu0 0
    %1693 = vmatprep.mubr.bf16.mxu0 0
    %1694 = vmatmul.mubr.bf16.gmra.mxu0 %v1650
    %v1695 = vpop.f32.mrf.mxu0
    %v1696 = vadd.f32 %v1635, %v1695
    %v1697 = vpop.f32.mrf.mxu0
    %v1698 = vpop.f32.mrf.mxu0
    %v1699 = vadd.f32 %v1635, %v1698
    %v1700 = vpop.f32.mrf.mxu0
    %1701 = vmatprep.mubr.bf16.mxu0 0
    %1702 = vmatmul.mubr.bf16.gmra.mxu0 %v1653
    %v1703 = vpop.f32.mrf.mxu0
    %v1704 = vadd.f32 %v1635, %v1703
    %v1705 = vpop.f32.mrf.mxu0
    %v1706 = vpop.f32.mrf.mxu0
    %v1707 = vadd.f32 %v1635, %v1706
    %v1708 = vpop.f32.mrf.mxu0
    %1709 = vmatprep.mubr.bf16.mxu0 0
    %1710 = vmatmul.mubr.bf16.gmra.mxu0 %v1656
    %v1711 = vpop.f32.mrf.mxu0
    %v1712 = vadd.f32 %v1635, %v1711
    %v1713 = vpop.f32.mrf.mxu0
    %v1714 = vpop.f32.mrf.mxu0
    %v1715 = vadd.f32 %v1635, %v1714
    %v1716 = vpop.f32.mrf.mxu0
    %1717 = vmatprep.mubr.bf16.mxu0 0
    %1718 = vmatmul.mubr.bf16.gmra.mxu0 %v1659
    %v1719 = vpop.f32.mrf.mxu0
    %v1720 = vadd.f32 %v1635, %v1719
    %v1721 = vpop.f32.mrf.mxu0
    %v1722 = vpop.f32.mrf.mxu0
    %v1723 = vadd.f32 %v1635, %v1722
    %v1724 = vpop.f32.mrf.mxu0
    %1725 = vdwg.mxu0
    %v1726 = vadd.f32 %v1696, %v226
    %v1727 = vadd.f32 %v1699, %v227
    %v1728 = vadd.f32 %v1704, %v228
    %v1729 = vadd.f32 %v1707, %v229
    %v1730 = vadd.f32 %v1712, %v230
    %v1731 = vadd.f32 %v1715, %v231
    %v1732 = vadd.f32 %v1720, %v232
    %v1733 = vadd.f32 %v1723, %v233
    %v1734 = vld [vmem:[%s8] sm:$0x1]
    %v1735 = vld [vmem:[%s9] sm:$0x1]
    %v1736 = vsel %vm100, %v1726, 0.0
    %1737 = vadd.xlane.f32.xlu0 %v1736
    %v1738 = vpop.xlane.xlu0 %1737
    %v1739 = vsel %vm100, %v1727, 0.0
    %1740 = vadd.xlane.f32.xlu0 %v1739
    %v1741 = vpop.xlane.xlu0 %1740
    %v1742 = vsel %vm100, %v1728, 0.0
    %1743 = vadd.xlane.f32.xlu0 %v1742
    %v1744 = vpop.xlane.xlu0 %1743
    %v1745 = vsel %vm100, %v1729, 0.0
    %1746 = vadd.xlane.f32.xlu0 %v1745
    %v1747 = vpop.xlane.xlu0 %1746
    %v1748 = vsel %vm100, %v1730, 0.0
    %1749 = vadd.xlane.f32.xlu0 %v1748
    %v1750 = vpop.xlane.xlu0 %1749
    %v1751 = vsel %vm100, %v1731, 0.0
    %1752 = vadd.xlane.f32.xlu0 %v1751
    %v1753 = vpop.xlane.xlu0 %1752
    %v1754 = vsel %vm100, %v1732, 0.0
    %1755 = vadd.xlane.f32.xlu0 %v1754
    %v1756 = vpop.xlane.xlu0 %1755
    %v1757 = vsel %vm100, %v1733, 0.0
    %1758 = vadd.xlane.f32.xlu0 %v1757
    %v1759 = vpop.xlane.xlu0 %1758
    %v1760 = vmul.f32 %v1738, %v125
    %v1761 = vmul.f32 %v1741, %v125
    %v1762 = vmul.f32 %v1744, %v125
    %v1763 = vmul.f32 %v1747, %v125
    %v1764 = vmul.f32 %v1750, %v125
    %v1765 = vmul.f32 %v1753, %v125
    %v1766 = vmul.f32 %v1756, %v125
    %v1767 = vmul.f32 %v1759, %v125
    %v1768 = vsub.f32 %v1726, %v1760
    %v1769 = vsub.f32 %v1727, %v1761
    %v1770 = vsub.f32 %v1728, %v1762
    %v1771 = vsub.f32 %v1729, %v1763
    %v1772 = vsub.f32 %v1730, %v1764
    %v1773 = vsub.f32 %v1731, %v1765
    %v1774 = vsub.f32 %v1732, %v1766
    %v1775 = vsub.f32 %v1733, %v1767
    %v1776 = vmul.f32 %v1768, %v1768
    %v1777 = vmul.f32 %v1769, %v1769
    %v1778 = vmul.f32 %v1770, %v1770
    %v1779 = vmul.f32 %v1771, %v1771
    %v1780 = vmul.f32 %v1772, %v1772
    %v1781 = vmul.f32 %v1773, %v1773
    %v1782 = vmul.f32 %v1774, %v1774
    %v1783 = vmul.f32 %v1775, %v1775
    %v1784 = vsel %vm100, %v1776, 0.0
    %1785 = vadd.xlane.f32.xlu0 %v1784
    %v1786 = vpop.xlane.xlu0 %1785
    %v1787 = vsel %vm100, %v1777, 0.0
    %1788 = vadd.xlane.f32.xlu0 %v1787
    %v1789 = vpop.xlane.xlu0 %1788
    %v1790 = vsel %vm100, %v1778, 0.0
    %1791 = vadd.xlane.f32.xlu0 %v1790
    %v1792 = vpop.xlane.xlu0 %1791
    %v1793 = vsel %vm100, %v1779, 0.0
    %1794 = vadd.xlane.f32.xlu0 %v1793
    %v1795 = vpop.xlane.xlu0 %1794
    %v1796 = vsel %vm100, %v1780, 0.0
    %1797 = vadd.xlane.f32.xlu0 %v1796
    %v1798 = vpop.xlane.xlu0 %1797
    %v1799 = vsel %vm100, %v1781, 0.0
    %1800 = vadd.xlane.f32.xlu0 %v1799
    %v1801 = vpop.xlane.xlu0 %1800
    %v1802 = vsel %vm100, %v1782, 0.0
    %1803 = vadd.xlane.f32.xlu0 %v1802
    %v1804 = vpop.xlane.xlu0 %1803
    %v1805 = vsel %vm100, %v1783, 0.0
    %1806 = vadd.xlane.f32.xlu0 %v1805
    %v1807 = vpop.xlane.xlu0 %1806
    %v1808 = vmul.f32 %v1786, %v125
    %v1809 = vmul.f32 %v1789, %v125
    %v1810 = vmul.f32 %v1792, %v125
    %v1811 = vmul.f32 %v1795, %v125
    %v1812 = vmul.f32 %v1798, %v125
    %v1813 = vmul.f32 %v1801, %v125
    %v1814 = vmul.f32 %v1804, %v125
    %v1815 = vmul.f32 %v1807, %v125
    %v1816 = vadd.f32 %v1808, 1e-12
    %v1817 = vadd.f32 %v1809, 1e-12
    %v1818 = vadd.f32 %v1810, 1e-12
    %v1819 = vadd.f32 %v1811, 1e-12
    %v1820 = vadd.f32 %v1812, 1e-12
    %v1821 = vadd.f32 %v1813, 1e-12
    %v1822 = vadd.f32 %v1814, 1e-12
    %v1823 = vadd.f32 %v1815, 1e-12
    %v1824 = vrsqrt.pop %v1816
    %v1825 = vrsqrt.pop %v1817
    %v1826 = vrsqrt.pop %v1818
    %v1827 = vrsqrt.pop %v1819
    %v1828 = vrsqrt.pop %v1820
    %v1829 = vrsqrt.pop %v1821
    %v1830 = vrsqrt.pop %v1822
    %v1831 = vrsqrt.pop %v1823
    %v1832 = vmul.f32 %v1768, %v1824
    %v1833 = vmul.f32 %v1769, %v1825
    %v1834 = vmul.f32 %v1770, %v1826
    %v1835 = vmul.f32 %v1771, %v1827
    %v1836 = vmul.f32 %v1772, %v1828
    %v1837 = vmul.f32 %v1773, %v1829
    %v1838 = vmul.f32 %v1774, %v1830
    %v1839 = vmul.f32 %v1775, %v1831
    %v1841 = vlaneseq
    %v1842 = vshrl.u32 %v1841, 7
    %v1843 = vsub.s32 0, %v1842
    %v1844 = vrot.slane %v1734, %v1843
    %v1846 = vmul.f32 %v1832, %v1844
    %v1847 = vmul.f32 %v1833, %v1844
    %v1848 = vmul.f32 %v1834, %v1844
    %v1849 = vmul.f32 %v1835, %v1844
    %v1850 = vmul.f32 %v1836, %v1844
    %v1851 = vmul.f32 %v1837, %v1844
    %v1852 = vmul.f32 %v1838, %v1844
    %v1853 = vmul.f32 %v1839, %v1844
    %v1855 = vlaneseq
    %v1856 = vshrl.u32 %v1855, 7
    %v1857 = vsub.s32 0, %v1856
    %v1858 = vrot.slane %v1735, %v1857
    %v1860 = vadd.f32 %v1846, %v1858
    %v1861 = vadd.f32 %v1847, %v1858
    %v1862 = vadd.f32 %v1848, %v1858
    %v1863 = vadd.f32 %v1849, %v1858
    %v1864 = vadd.f32 %v1850, %v1858
    %v1865 = vadd.f32 %v1851, %v1858
    %v1866 = vadd.f32 %v1852, %v1858
    %v1867 = vadd.f32 %v1853, %v1858
    %v1868 = vpack.c.bf16 %v1861, %v1860
    %v1869 = vpack.c.bf16 %v1863, %v1862
    %v1870 = vpack.c.bf16 %v1865, %v1864
    %v1871 = vpack.c.bf16 %v1867, %v1866
    %v1872 = vld [vmem:[%s10] sm:$0xf]
    %v1873 = vld [vmem:[%s10 + $0x4] sm:$0xf]
    %v1874 = vld [vmem:[%s10 + $0x8] sm:$0xf]
    %v1875 = vld [vmem:[%s10 + $0xc] sm:$0xf]
    %v1876 = vld [vmem:[%s11] sm:$0x1]
    %v1878 = vlaneseq
    %v1879 = vshrl.u32 %v1878, 7
    %v1880 = vsub.s32 0, %v1879
    %v1881 = vrot.slane %v1876, %v1880
    %v1887 = vunpack.c.l.b16 %v1872
    %v1888 = vunpack.c.l.b16 %v1873
    %v1889 = vunpack.c.l.b16 %v1874
    %v1890 = vunpack.c.l.b16 %v1875
    %v1891 = vpack.c.b16 %v1888, %v1887
    %v1892 = vpack.c.b16 %v1890, %v1889
    %v1896 = vsel %vm100, %v1868, 0
    %v1899 = vsel %vm100, %v1869, 0
    %v1902 = vsel %vm100, %v1870, 0
    %v1905 = vsel %vm100, %v1871, 0
    %1907 = vmatprep.subr.bf16.mxu0 0
    %1908 = vmatpush1.bf16.msra.mxu0 0
    %1909 = vmatprep.subr.bf16.mxu0 0
    %1910 = vmatpush1.bf16.msra.mxu0 0
    %1911 = vmatprep.subr.bf16.mxu0 0
    %1912 = vmatpush1.bf16.msra.mxu0 0
    %1913 = vmatprep.subr.bf16.mxu0 0
    %1914 = vmatpush1.bf16.msra.mxu0 0
    %1915 = vmatprep.subr.bf16.mxu0 0
    %1916 = vmatpush1.bf16.msra.mxu0 0
    %1917 = vmatprep.subr.bf16.mxu0 0
    %1918 = vmatpush1.bf16.msra.mxu0 0
    %1919 = vmatprep.subr.bf16.mxu0 0
    %1920 = vmatpush1.bf16.msra.mxu0 %v1892
    %1921 = vmatprep.subr.bf16.mxu0 0
    %1922 = vmatpush1.bf16.msra.mxu0 %v1891
    %1923 = vmatprep.subr.bf16.mxu0 0
    %1924 = vmatpush2.bf16.msra.mxu0 0
    %1925 = vmatprep.subr.bf16.mxu0 0
    %1926 = vmatpush2.bf16.msra.mxu0 0
    %1927 = vmatprep.subr.bf16.mxu0 0
    %1928 = vmatpush2.bf16.msra.mxu0 0
    %1929 = vmatprep.subr.bf16.mxu0 0
    %1930 = vmatpush2.bf16.msra.mxu0 0
    %1931 = vmatprep.subr.bf16.mxu0 0
    %1932 = vmatpush2.bf16.msra.mxu0 0
    %1933 = vmatprep.subr.bf16.mxu0 0
    %1934 = vmatpush2.bf16.msra.mxu0 0
    %1935 = vmatprep.subr.bf16.mxu0 0
    %1936 = vmatpush2.bf16.msra.mxu0 0
    %1937 = vmatprep.subr.bf16.mxu0 0
    %1938 = vmatpush2.bf16.msra.mxu0 0
    %1939 = vmatprep.mubr.bf16.mxu0 0
    %1940 = vmatmul.mubr.bf16.gmra.mxu0 %v1896
    %v1941 = vpop.f32.mrf.mxu0
    %v1942 = vadd.f32 %v1881, %v1941
    %v1943 = vpop.f32.mrf.mxu0
    %v1944 = vpop.f32.mrf.mxu0
    %v1945 = vadd.f32 %v1881, %v1944
    %v1946 = vpop.f32.mrf.mxu0
    %1947 = vmatprep.mubr.bf16.mxu0 0
    %1948 = vmatmul.mubr.bf16.gmra.mxu0 %v1899
    %v1949 = vpop.f32.mrf.mxu0
    %v1950 = vadd.f32 %v1881, %v1949
    %v1951 = vpop.f32.mrf.mxu0
    %v1952 = vpop.f32.mrf.mxu0
    %v1953 = vadd.f32 %v1881, %v1952
    %v1954 = vpop.f32.mrf.mxu0
    %1955 = vmatprep.mubr.bf16.mxu0 0
    %1956 = vmatmul.mubr.bf16.gmra.mxu0 %v1902
    %v1957 = vpop.f32.mrf.mxu0
    %v1958 = vadd.f32 %v1881, %v1957
    %v1959 = vpop.f32.mrf.mxu0
    %v1960 = vpop.f32.mrf.mxu0
    %v1961 = vadd.f32 %v1881, %v1960
    %v1962 = vpop.f32.mrf.mxu0
    %1963 = vmatprep.mubr.bf16.mxu0 0
    %1964 = vmatmul.mubr.bf16.gmra.mxu0 %v1905
    %v1965 = vpop.f32.mrf.mxu0
    %v1966 = vadd.f32 %v1881, %v1965
    %v1967 = vpop.f32.mrf.mxu0
    %v1968 = vpop.f32.mrf.mxu0
    %v1969 = vadd.f32 %v1881, %v1968
    %v1970 = vpop.f32.mrf.mxu0
    %1971 = vdwg.mxu0
    %v1972 = vmul.f32 %v1942, 0.5
    %v1973 = vmul.f32 %v1945, 0.5
    %v1974 = vmul.f32 %v1950, 0.5
    %v1975 = vmul.f32 %v1953, 0.5
    %v1976 = vmul.f32 %v1958, 0.5
    %v1977 = vmul.f32 %v1961, 0.5
    %v1978 = vmul.f32 %v1966, 0.5
    %v1979 = vmul.f32 %v1969, 0.5
    %v1980 = vmul.f32 %v1942, 0.044715
    %v1981 = vmul.f32 %v1945, 0.044715
    %v1982 = vmul.f32 %v1950, 0.044715
    %v1983 = vmul.f32 %v1953, 0.044715
    %v1984 = vmul.f32 %v1958, 0.044715
    %v1985 = vmul.f32 %v1961, 0.044715
    %v1986 = vmul.f32 %v1966, 0.044715
    %v1987 = vmul.f32 %v1969, 0.044715
    %v1988 = vmul.f32 %v1980, %v1942
    %v1989 = vmul.f32 %v1981, %v1945
    %v1990 = vmul.f32 %v1982, %v1950
    %v1991 = vmul.f32 %v1983, %v1953
    %v1992 = vmul.f32 %v1984, %v1958
    %v1993 = vmul.f32 %v1985, %v1961
    %v1994 = vmul.f32 %v1986, %v1966
    %v1995 = vmul.f32 %v1987, %v1969
    %v1996 = vmul.f32 %v1988, %v1942
    %v1997 = vmul.f32 %v1989, %v1945
    %v1998 = vmul.f32 %v1990, %v1950
    %v1999 = vmul.f32 %v1991, %v1953
    %v2000 = vmul.f32 %v1992, %v1958
    %v2001 = vmul.f32 %v1993, %v1961
    %v2002 = vmul.f32 %v1994, %v1966
    %v2003 = vmul.f32 %v1995, %v1969
    %v2004 = vadd.f32 %v1942, %v1996
    %v2005 = vadd.f32 %v1945, %v1997
    %v2006 = vadd.f32 %v1950, %v1998
    %v2007 = vadd.f32 %v1953, %v1999
    %v2008 = vadd.f32 %v1958, %v2000
    %v2009 = vadd.f32 %v1961, %v2001
    %v2010 = vadd.f32 %v1966, %v2002
    %v2011 = vadd.f32 %v1969, %v2003
    %v2012 = vmul.f32 %v2004, 0.7978846
    %v2013 = vmul.f32 %v2005, 0.7978846
    %v2014 = vmul.f32 %v2006, 0.7978846
    %v2015 = vmul.f32 %v2007, 0.7978846
    %v2016 = vmul.f32 %v2008, 0.7978846
    %v2017 = vmul.f32 %v2009, 0.7978846
    %v2018 = vmul.f32 %v2010, 0.7978846
    %v2019 = vmul.f32 %v2011, 0.7978846
    %v2020 = vtanh.pop %v2012
    %v2021 = vtanh.pop %v2013
    %v2022 = vtanh.pop %v2014
    %v2023 = vtanh.pop %v2015
    %v2024 = vtanh.pop %v2016
    %v2025 = vtanh.pop %v2017
    %v2026 = vtanh.pop %v2018
    %v2027 = vtanh.pop %v2019
    %v2028 = vadd.f32 %v2020, 1.0
    %v2029 = vadd.f32 %v2021, 1.0
    %v2030 = vadd.f32 %v2022, 1.0
    %v2031 = vadd.f32 %v2023, 1.0
    %v2032 = vadd.f32 %v2024, 1.0
    %v2033 = vadd.f32 %v2025, 1.0
    %v2034 = vadd.f32 %v2026, 1.0
    %v2035 = vadd.f32 %v2027, 1.0
    %v2036 = vmul.f32 %v1972, %v2028
    %v2037 = vmul.f32 %v1973, %v2029
    %v2038 = vmul.f32 %v1974, %v2030
    %v2039 = vmul.f32 %v1975, %v2031
    %v2040 = vmul.f32 %v1976, %v2032
    %v2041 = vmul.f32 %v1977, %v2033
    %v2042 = vmul.f32 %v1978, %v2034
    %v2043 = vmul.f32 %v1979, %v2035
    %v2044 = vpack.c.bf16 %v2037, %v2036
    %v2045 = vpack.c.bf16 %v2039, %v2038
    %v2046 = vpack.c.bf16 %v2041, %v2040
    %v2047 = vpack.c.bf16 %v2043, %v2042
    %v2048 = vld [vmem:[%s12] sm:$0xf]
    %v2049 = vld [vmem:[%s12 + $0x4] sm:$0xf]
    %v2050 = vld [vmem:[%s12 + $0x8] sm:$0xf]
    %v2051 = vld [vmem:[%s12 + $0xc] sm:$0xf]
    %v2052 = vld [vmem:[%s12 + $0x10] sm:$0xf]
    %v2053 = vld [vmem:[%s12 + $0x14] sm:$0xf]
    %v2054 = vld [vmem:[%s12 + $0x18] sm:$0xf]
    %v2055 = vld [vmem:[%s12 + $0x1c] sm:$0xf]
    %v2056 = vld [vmem:[%s13] sm:$0x1]
    %v2058 = vlaneseq
    %v2059 = vshrl.u32 %v2058, 7
    %v2060 = vsub.s32 0, %v2059
    %v2061 = vrot.slane %v2056, %v2060
    %v2071 = vunpack.c.l.b16 %v2048
    %v2072 = vunpack.c.l.b16 %v2049
    %v2073 = vunpack.c.l.b16 %v2050
    %v2074 = vunpack.c.l.b16 %v2051
    %v2075 = vunpack.c.l.b16 %v2052
    %v2076 = vunpack.c.l.b16 %v2053
    %v2077 = vunpack.c.l.b16 %v2054
    %v2078 = vunpack.c.l.b16 %v2055
    %v2079 = vpack.c.b16 %v2072, %v2071
    %v2080 = vpack.c.b16 %v2074, %v2073
    %v2081 = vpack.c.b16 %v2076, %v2075
    %v2082 = vpack.c.b16 %v2078, %v2077
    %v2088 = vsel %vm456, %v2044, 0
    %v2091 = vsel %vm456, %v2045, 0
    %v2094 = vsel %vm456, %v2046, 0
    %v2097 = vsel %vm456, %v2047, 0
    %2099 = vmatprep.subr.bf16.mxu0 0
    %2100 = vmatpush1.bf16.msra.mxu0 0
    %2101 = vmatprep.subr.bf16.mxu0 0
    %2102 = vmatpush1.bf16.msra.mxu0 0
    %2103 = vmatprep.subr.bf16.mxu0 0
    %2104 = vmatpush1.bf16.msra.mxu0 0
    %2105 = vmatprep.subr.bf16.mxu0 0
    %2106 = vmatpush1.bf16.msra.mxu0 0
    %2107 = vmatprep.subr.bf16.mxu0 0
    %2108 = vmatpush1.bf16.msra.mxu0 %v2082
    %2109 = vmatprep.subr.bf16.mxu0 0
    %2110 = vmatpush1.bf16.msra.mxu0 %v2081
    %2111 = vmatprep.subr.bf16.mxu0 0
    %2112 = vmatpush1.bf16.msra.mxu0 %v2080
    %2113 = vmatprep.subr.bf16.mxu0 0
    %2114 = vmatpush1.bf16.msra.mxu0 %v2079
    %2115 = vmatprep.subr.bf16.mxu0 0
    %2116 = vmatpush2.bf16.msra.mxu0 0
    %2117 = vmatprep.subr.bf16.mxu0 0
    %2118 = vmatpush2.bf16.msra.mxu0 0
    %2119 = vmatprep.subr.bf16.mxu0 0
    %2120 = vmatpush2.bf16.msra.mxu0 0
    %2121 = vmatprep.subr.bf16.mxu0 0
    %2122 = vmatpush2.bf16.msra.mxu0 0
    %2123 = vmatprep.subr.bf16.mxu0 0
    %2124 = vmatpush2.bf16.msra.mxu0 0
    %2125 = vmatprep.subr.bf16.mxu0 0
    %2126 = vmatpush2.bf16.msra.mxu0 0
    %2127 = vmatprep.subr.bf16.mxu0 0
    %2128 = vmatpush2.bf16.msra.mxu0 0
    %2129 = vmatprep.subr.bf16.mxu0 0
    %2130 = vmatpush2.bf16.msra.mxu0 0
    %2131 = vmatprep.mubr.bf16.mxu0 0
    %2132 = vmatmul.mubr.bf16.gmra.mxu0 %v2088
    %v2133 = vpop.f32.mrf.mxu0
    %v2134 = vadd.f32 %v2061, %v2133
    %v2135 = vpop.f32.mrf.mxu0
    %v2136 = vpop.f32.mrf.mxu0
    %v2137 = vadd.f32 %v2061, %v2136
    %v2138 = vpop.f32.mrf.mxu0
    %2139 = vmatprep.mubr.bf16.mxu0 0
    %2140 = vmatmul.mubr.bf16.gmra.mxu0 %v2091
    %v2141 = vpop.f32.mrf.mxu0
    %v2142 = vadd.f32 %v2061, %v2141
    %v2143 = vpop.f32.mrf.mxu0
    %v2144 = vpop.f32.mrf.mxu0
    %v2145 = vadd.f32 %v2061, %v2144
    %v2146 = vpop.f32.mrf.mxu0
    %2147 = vmatprep.mubr.bf16.mxu0 0
    %2148 = vmatmul.mubr.bf16.gmra.mxu0 %v2094
    %v2149 = vpop.f32.mrf.mxu0
    %v2150 = vadd.f32 %v2061, %v2149
    %v2151 = vpop.f32.mrf.mxu0
    %v2152 = vpop.f32.mrf.mxu0
    %v2153 = vadd.f32 %v2061, %v2152
    %v2154 = vpop.f32.mrf.mxu0
    %2155 = vmatprep.mubr.bf16.mxu0 0
    %2156 = vmatmul.mubr.bf16.gmra.mxu0 %v2097
    %v2157 = vpop.f32.mrf.mxu0
    %v2158 = vadd.f32 %v2061, %v2157
    %v2159 = vpop.f32.mrf.mxu0
    %v2160 = vpop.f32.mrf.mxu0
    %v2161 = vadd.f32 %v2061, %v2160
    %v2162 = vpop.f32.mrf.mxu0
    %2163 = vdwg.mxu0
    %v2164 = vadd.f32 %v2134, %v1860
    %v2165 = vadd.f32 %v2137, %v1861
    %v2166 = vadd.f32 %v2142, %v1862
    %v2167 = vadd.f32 %v2145, %v1863
    %v2168 = vadd.f32 %v2150, %v1864
    %v2169 = vadd.f32 %v2153, %v1865
    %v2170 = vadd.f32 %v2158, %v1866
    %v2171 = vadd.f32 %v2161, %v1867
    %v2172 = vld [vmem:[%s14] sm:$0x1]
    %v2173 = vld [vmem:[%s15] sm:$0x1]
    %v2174 = vsel %vm100, %v2164, 0.0
    %2175 = vadd.xlane.f32.xlu0 %v2174
    %v2176 = vpop.xlane.xlu0 %2175
    %v2177 = vsel %vm100, %v2165, 0.0
    %2178 = vadd.xlane.f32.xlu0 %v2177
    %v2179 = vpop.xlane.xlu0 %2178
    %v2180 = vsel %vm100, %v2166, 0.0
    %2181 = vadd.xlane.f32.xlu0 %v2180
    %v2182 = vpop.xlane.xlu0 %2181
    %v2183 = vsel %vm100, %v2167, 0.0
    %2184 = vadd.xlane.f32.xlu0 %v2183
    %v2185 = vpop.xlane.xlu0 %2184
    %v2186 = vsel %vm100, %v2168, 0.0
    %2187 = vadd.xlane.f32.xlu0 %v2186
    %v2188 = vpop.xlane.xlu0 %2187
    %v2189 = vsel %vm100, %v2169, 0.0
    %2190 = vadd.xlane.f32.xlu0 %v2189
    %v2191 = vpop.xlane.xlu0 %2190
    %v2192 = vsel %vm100, %v2170, 0.0
    %2193 = vadd.xlane.f32.xlu0 %v2192
    %v2194 = vpop.xlane.xlu0 %2193
    %v2195 = vsel %vm100, %v2171, 0.0
    %2196 = vadd.xlane.f32.xlu0 %v2195
    %v2197 = vpop.xlane.xlu0 %2196
    %v2198 = vmul.f32 %v2176, %v125
    %v2199 = vmul.f32 %v2179, %v125
    %v2200 = vmul.f32 %v2182, %v125
    %v2201 = vmul.f32 %v2185, %v125
    %v2202 = vmul.f32 %v2188, %v125
    %v2203 = vmul.f32 %v2191, %v125
    %v2204 = vmul.f32 %v2194, %v125
    %v2205 = vmul.f32 %v2197, %v125
    %v2206 = vsub.f32 %v2164, %v2198
    %v2207 = vsub.f32 %v2165, %v2199
    %v2208 = vsub.f32 %v2166, %v2200
    %v2209 = vsub.f32 %v2167, %v2201
    %v2210 = vsub.f32 %v2168, %v2202
    %v2211 = vsub.f32 %v2169, %v2203
    %v2212 = vsub.f32 %v2170, %v2204
    %v2213 = vsub.f32 %v2171, %v2205
    %v2214 = vmul.f32 %v2206, %v2206
    %v2215 = vmul.f32 %v2207, %v2207
    %v2216 = vmul.f32 %v2208, %v2208
    %v2217 = vmul.f32 %v2209, %v2209
    %v2218 = vmul.f32 %v2210, %v2210
    %v2219 = vmul.f32 %v2211, %v2211
    %v2220 = vmul.f32 %v2212, %v2212
    %v2221 = vmul.f32 %v2213, %v2213
    %v2222 = vsel %vm100, %v2214, 0.0
    %2223 = vadd.xlane.f32.xlu0 %v2222
    %v2224 = vpop.xlane.xlu0 %2223
    %v2225 = vsel %vm100, %v2215, 0.0
    %2226 = vadd.xlane.f32.xlu0 %v2225
    %v2227 = vpop.xlane.xlu0 %2226
    %v2228 = vsel %vm100, %v2216, 0.0
    %2229 = vadd.xlane.f32.xlu0 %v2228
    %v2230 = vpop.xlane.xlu0 %2229
    %v2231 = vsel %vm100, %v2217, 0.0
    %2232 = vadd.xlane.f32.xlu0 %v2231
    %v2233 = vpop.xlane.xlu0 %2232
    %v2234 = vsel %vm100, %v2218, 0.0
    %2235 = vadd.xlane.f32.xlu0 %v2234
    %v2236 = vpop.xlane.xlu0 %2235
    %v2237 = vsel %vm100, %v2219, 0.0
    %2238 = vadd.xlane.f32.xlu0 %v2237
    %v2239 = vpop.xlane.xlu0 %2238
    %v2240 = vsel %vm100, %v2220, 0.0
    %2241 = vadd.xlane.f32.xlu0 %v2240
    %v2242 = vpop.xlane.xlu0 %2241
    %v2243 = vsel %vm100, %v2221, 0.0
    %2244 = vadd.xlane.f32.xlu0 %v2243
    %v2245 = vpop.xlane.xlu0 %2244
    %v2246 = vmul.f32 %v2224, %v125
    %v2247 = vmul.f32 %v2227, %v125
    %v2248 = vmul.f32 %v2230, %v125
    %v2249 = vmul.f32 %v2233, %v125
    %v2250 = vmul.f32 %v2236, %v125
    %v2251 = vmul.f32 %v2239, %v125
    %v2252 = vmul.f32 %v2242, %v125
    %v2253 = vmul.f32 %v2245, %v125
    %v2254 = vadd.f32 %v2246, 1e-12
    %v2255 = vadd.f32 %v2247, 1e-12
    %v2256 = vadd.f32 %v2248, 1e-12
    %v2257 = vadd.f32 %v2249, 1e-12
    %v2258 = vadd.f32 %v2250, 1e-12
    %v2259 = vadd.f32 %v2251, 1e-12
    %v2260 = vadd.f32 %v2252, 1e-12
    %v2261 = vadd.f32 %v2253, 1e-12
    %v2262 = vrsqrt.pop %v2254
    %v2263 = vrsqrt.pop %v2255
    %v2264 = vrsqrt.pop %v2256
    %v2265 = vrsqrt.pop %v2257
    %v2266 = vrsqrt.pop %v2258
    %v2267 = vrsqrt.pop %v2259
    %v2268 = vrsqrt.pop %v2260
    %v2269 = vrsqrt.pop %v2261
    %v2270 = vmul.f32 %v2206, %v2262
    %v2271 = vmul.f32 %v2207, %v2263
    %v2272 = vmul.f32 %v2208, %v2264
    %v2273 = vmul.f32 %v2209, %v2265
    %v2274 = vmul.f32 %v2210, %v2266
    %v2275 = vmul.f32 %v2211, %v2267
    %v2276 = vmul.f32 %v2212, %v2268
    %v2277 = vmul.f32 %v2213, %v2269
    %v2279 = vlaneseq
    %v2280 = vshrl.u32 %v2279, 7
    %v2281 = vsub.s32 0, %v2280
    %v2282 = vrot.slane %v2172, %v2281
    %v2284 = vmul.f32 %v2270, %v2282
    %v2285 = vmul.f32 %v2271, %v2282
    %v2286 = vmul.f32 %v2272, %v2282
    %v2287 = vmul.f32 %v2273, %v2282
    %v2288 = vmul.f32 %v2274, %v2282
    %v2289 = vmul.f32 %v2275, %v2282
    %v2290 = vmul.f32 %v2276, %v2282
    %v2291 = vmul.f32 %v2277, %v2282
    %v2293 = vlaneseq
    %v2294 = vshrl.u32 %v2293, 7
    %v2295 = vsub.s32 0, %v2294
    %v2296 = vrot.slane %v2173, %v2295
    %v2298 = vadd.f32 %v2284, %v2296
    %v2299 = vadd.f32 %v2285, %v2296
    %v2300 = vadd.f32 %v2286, %v2296
    %v2301 = vadd.f32 %v2287, %v2296
    %v2302 = vadd.f32 %v2288, %v2296
    %v2303 = vadd.f32 %v2289, %v2296
    %v2304 = vadd.f32 %v2290, %v2296
    %v2305 = vadd.f32 %v2291, %v2296
    %v2306 = vpack.c.bf16 %v2299, %v2298
    %v2307 = vpack.c.bf16 %v2301, %v2300
    %v2308 = vpack.c.bf16 %v2303, %v2302
    %v2309 = vpack.c.bf16 %v2305, %v2304
    %s2310 = scalar_lea.vmem %s4, 16
    %v2311 = vld [vmem:[%s2310] sm:$0xf]
    %v2312 = vld [vmem:[%s2310 + $0x4] sm:$0xf]
    %v2313 = vld [vmem:[%s2310 + $0x8] sm:$0xf]
    %v2314 = vld [vmem:[%s2310 + $0xc] sm:$0xf]
    %s2315 = scalar_lea.vmem %s5, 1
    %v2316 = vld [vmem:[%s2315] sm:$0x1]
    %v2318 = vlaneseq
    %v2319 = vshrl.u32 %v2318, 7
    %v2320 = vsub.s32 0, %v2319
    %v2321 = vrot.slane %v2316, %v2320
    %v2327 = vunpack.c.l.b16 %v2311
    %v2328 = vunpack.c.l.b16 %v2312
    %v2329 = vunpack.c.l.b16 %v2313
    %v2330 = vunpack.c.l.b16 %v2314
    %v2331 = vpack.c.b16 %v2328, %v2327
    %v2332 = vpack.c.b16 %v2330, %v2329
    %v2336 = vsel %vm100, %v2306, 0
    %v2339 = vsel %vm100, %v2307, 0
    %v2342 = vsel %vm100, %v2308, 0
    %v2345 = vsel %vm100, %v2309, 0
    %2347 = vmatprep.subr.bf16.mxu0 0
    %2348 = vmatpush1.bf16.msra.mxu0 0
    %2349 = vmatprep.subr.bf16.mxu0 0
    %2350 = vmatpush1.bf16.msra.mxu0 0
    %2351 = vmatprep.subr.bf16.mxu0 0
    %2352 = vmatpush1.bf16.msra.mxu0 0
    %2353 = vmatprep.subr.bf16.mxu0 0
    %2354 = vmatpush1.bf16.msra.mxu0 0
    %2355 = vmatprep.subr.bf16.mxu0 0
    %2356 = vmatpush1.bf16.msra.mxu0 0
    %2357 = vmatprep.subr.bf16.mxu0 0
    %2358 = vmatpush1.bf16.msra.mxu0 0
    %2359 = vmatprep.subr.bf16.mxu0 0
    %2360 = vmatpush1.bf16.msra.mxu0 %v2332
    %2361 = vmatprep.subr.bf16.mxu0 0
    %2362 = vmatpush1.bf16.msra.mxu0 %v2331
    %2363 = vmatprep.subr.bf16.mxu0 0
    %2364 = vmatpush2.bf16.msra.mxu0 0
    %2365 = vmatprep.subr.bf16.mxu0 0
    %2366 = vmatpush2.bf16.msra.mxu0 0
    %2367 = vmatprep.subr.bf16.mxu0 0
    %2368 = vmatpush2.bf16.msra.mxu0 0
    %2369 = vmatprep.subr.bf16.mxu0 0
    %2370 = vmatpush2.bf16.msra.mxu0 0
    %2371 = vmatprep.subr.bf16.mxu0 0
    %2372 = vmatpush2.bf16.msra.mxu0 0
    %2373 = vmatprep.subr.bf16.mxu0 0
    %2374 = vmatpush2.bf16.msra.mxu0 0
    %2375 = vmatprep.subr.bf16.mxu0 0
    %2376 = vmatpush2.bf16.msra.mxu0 0
    %2377 = vmatprep.subr.bf16.mxu0 0
    %2378 = vmatpush2.bf16.msra.mxu0 0
    %2379 = vmatprep.mubr.bf16.mxu0 0
    %2380 = vmatmul.mubr.bf16.gmra.mxu0 %v2336
    %v2381 = vpop.f32.mrf.mxu0
    %v2382 = vadd.f32 %v2321, %v2381
    %v2383 = vpop.f32.mrf.mxu0
    %v2384 = vpop.f32.mrf.mxu0
    %v2385 = vadd.f32 %v2321, %v2384
    %v2386 = vpop.f32.mrf.mxu0
    %2387 = vmatprep.mubr.bf16.mxu0 0
    %2388 = vmatmul.mubr.bf16.gmra.mxu0 %v2339
    %v2389 = vpop.f32.mrf.mxu0
    %v2390 = vadd.f32 %v2321, %v2389
    %v2391 = vpop.f32.mrf.mxu0
    %v2392 = vpop.f32.mrf.mxu0
    %v2393 = vadd.f32 %v2321, %v2392
    %v2394 = vpop.f32.mrf.mxu0
    %2395 = vmatprep.mubr.bf16.mxu0 0
    %2396 = vmatmul.mubr.bf16.gmra.mxu0 %v2342
    %v2397 = vpop.f32.mrf.mxu0
    %v2398 = vadd.f32 %v2321, %v2397
    %v2399 = vpop.f32.mrf.mxu0
    %v2400 = vpop.f32.mrf.mxu0
    %v2401 = vadd.f32 %v2321, %v2400
    %v2402 = vpop.f32.mrf.mxu0
    %2403 = vmatprep.mubr.bf16.mxu0 0
    %2404 = vmatmul.mubr.bf16.gmra.mxu0 %v2345
    %v2405 = vpop.f32.mrf.mxu0
    %v2406 = vadd.f32 %v2321, %v2405
    %v2407 = vpop.f32.mrf.mxu0
    %v2408 = vpop.f32.mrf.mxu0
    %v2409 = vadd.f32 %v2321, %v2408
    %v2410 = vpop.f32.mrf.mxu0
    %2411 = vdwg.mxu0
    %v2412 = vmul.f32 %v2382, 0.35355338
    %v2413 = vmul.f32 %v2385, 0.35355338
    %v2414 = vmul.f32 %v2390, 0.35355338
    %v2415 = vmul.f32 %v2393, 0.35355338
    %v2416 = vmul.f32 %v2398, 0.35355338
    %v2417 = vmul.f32 %v2401, 0.35355338
    %v2418 = vmul.f32 %v2406, 0.35355338
    %v2419 = vmul.f32 %v2409, 0.35355338
    %v2420 = vpack.c.bf16 %v2413, %v2412
    %v2421 = vpack.c.bf16 %v2415, %v2414
    %v2422 = vpack.c.bf16 %v2417, %v2416
    %v2423 = vpack.c.bf16 %v2419, %v2418
    %v2424 = vpack.c.bf16 %v2385, %v2382
    %v2425 = vpack.c.bf16 %v2393, %v2390
    %v2426 = vpack.c.bf16 %v2401, %v2398
    %v2427 = vpack.c.bf16 %v2409, %v2406
    %2432 = vrot.lane.b32.xlu0 %v2424, 96
    %v2433 = vpop.permute.xlu0 %2432
    %2434 = vrot.lane.b32.xlu0 %v2425, 96
    %v2435 = vpop.permute.xlu0 %2434
    %2436 = vrot.lane.b32.xlu0 %v2426, 96
    %v2437 = vpop.permute.xlu0 %2436
    %2438 = vrot.lane.b32.xlu0 %v2427, 96
    %v2439 = vpop.permute.xlu0 %2438
    %v2441 = vsel %vm366, %v2420, 0
    %v2444 = vsel %vm366, %v2421, 0
    %v2447 = vsel %vm366, %v2422, 0
    %v2450 = vsel %vm366, %v2423, 0
    %v2453 = vsel %vm366, %v2433, 0
    %v2456 = vsel %vm366, %v2435, 0
    %v2459 = vsel %vm366, %v2437, 0
    %v2462 = vsel %vm366, %v2439, 0
    %2464 = vmatprep.subr.bf16.mxu0 0
    %2465 = vmatpush1.bf16.xpose.msra.mxu0 0
    %2466 = vmatprep.subr.bf16.mxu0 0
    %2467 = vmatpush1.bf16.xpose.msra.mxu0 0
    %2468 = vmatprep.subr.bf16.mxu0 0
    %2469 = vmatpush1.bf16.xpose.msra.mxu0 0
    %2470 = vmatprep.subr.bf16.mxu0 0
    %2471 = vmatpush1.bf16.xpose.msra.mxu0 0
    %2472 = vmatprep.subr.bf16.mxu0 0
    %2473 = vmatpush1.bf16.xpose.msra.mxu0 %v2462
    %2474 = vmatprep.subr.bf16.mxu0 0
    %2475 = vmatpush1.bf16.xpose.msra.mxu0 %v2459
    %2476 = vmatprep.subr.bf16.mxu0 0
    %2477 = vmatpush1.bf16.xpose.msra.mxu0 %v2456
    %2478 = vmatprep.subr.bf16.mxu0 0
    %2479 = vmatpush1.bf16.xpose.msra.mxu0 %v2453
    %2480 = vmatprep.subr.bf16.mxu0 0
    %2481 = vmatpush2.bf16.xpose.msra.mxu0 0
    %2482 = vmatprep.subr.bf16.mxu0 0
    %2483 = vmatpush2.bf16.xpose.msra.mxu0 0
    %2484 = vmatprep.subr.bf16.mxu0 0
    %2485 = vmatpush2.bf16.xpose.msra.mxu0 0
    %2486 = vmatprep.subr.bf16.mxu0 0
    %2487 = vmatpush2.bf16.xpose.msra.mxu0 0
    %2488 = vmatprep.subr.bf16.mxu0 0
    %2489 = vmatpush2.bf16.xpose.msra.mxu0 0
    %2490 = vmatprep.subr.bf16.mxu0 0
    %2491 = vmatpush2.bf16.xpose.msra.mxu0 0
    %2492 = vmatprep.subr.bf16.mxu0 0
    %2493 = vmatpush2.bf16.xpose.msra.mxu0 0
    %2494 = vmatprep.subr.bf16.mxu0 0
    %2495 = vmatpush2.bf16.xpose.msra.mxu0 0
    %2496 = vmatprep.mubr.bf16.mxu0 0
    %2497 = vmatmul.mubr.bf16.gmra.mxu0 %v2441
    %v2498 = vpop.f32.mrf.mxu0
    %v2499 = vadd.f32 %v82, %v2498
    %v2500 = vpop.f32.mrf.mxu0
    %v2501 = vpop.f32.mrf.mxu0
    %v2502 = vadd.f32 %v83, %v2501
    %v2503 = vpop.f32.mrf.mxu0
    %2504 = vmatprep.mubr.bf16.mxu0 0
    %2505 = vmatmul.mubr.bf16.gmra.mxu0 %v2444
    %v2506 = vpop.f32.mrf.mxu0
    %v2507 = vadd.f32 %v84, %v2506
    %v2508 = vpop.f32.mrf.mxu0
    %v2509 = vpop.f32.mrf.mxu0
    %v2510 = vadd.f32 %v85, %v2509
    %v2511 = vpop.f32.mrf.mxu0
    %2512 = vmatprep.mubr.bf16.mxu0 0
    %2513 = vmatmul.mubr.bf16.gmra.mxu0 %v2447
    %v2514 = vpop.f32.mrf.mxu0
    %v2515 = vadd.f32 %v86, %v2514
    %v2516 = vpop.f32.mrf.mxu0
    %v2517 = vpop.f32.mrf.mxu0
    %v2518 = vadd.f32 %v87, %v2517
    %v2519 = vpop.f32.mrf.mxu0
    %2520 = vmatprep.mubr.bf16.mxu0 0
    %2521 = vmatmul.mubr.bf16.gmra.mxu0 %v2450
    %v2522 = vpop.f32.mrf.mxu0
    %v2523 = vadd.f32 %v88, %v2522
    %v2524 = vpop.f32.mrf.mxu0
    %v2525 = vpop.f32.mrf.mxu0
    %v2526 = vadd.f32 %v89, %v2525
    %v2527 = vpop.f32.mrf.mxu0
    %2528 = vdwg.mxu0
    %v2529 = vsel %vm456, %v2499, -inf
    %2530 = vmax.xlane.f32.xlu0 %v2529
    %v2531 = vpop.xlane.xlu0 %2530
    %v2532 = vsel %vm456, %v2502, -inf
    %2533 = vmax.xlane.f32.xlu0 %v2532
    %v2534 = vpop.xlane.xlu0 %2533
    %v2535 = vsel %vm456, %v2507, -inf
    %2536 = vmax.xlane.f32.xlu0 %v2535
    %v2537 = vpop.xlane.xlu0 %2536
    %v2538 = vsel %vm456, %v2510, -inf
    %2539 = vmax.xlane.f32.xlu0 %v2538
    %v2540 = vpop.xlane.xlu0 %2539
    %v2541 = vsel %vm456, %v2515, -inf
    %2542 = vmax.xlane.f32.xlu0 %v2541
    %v2543 = vpop.xlane.xlu0 %2542
    %v2544 = vsel %vm456, %v2518, -inf
    %2545 = vmax.xlane.f32.xlu0 %v2544
    %v2546 = vpop.xlane.xlu0 %2545
    %v2547 = vsel %vm456, %v2523, -inf
    %2548 = vmax.xlane.f32.xlu0 %v2547
    %v2549 = vpop.xlane.xlu0 %2548
    %v2550 = vsel %vm456, %v2526, -inf
    %2551 = vmax.xlane.f32.xlu0 %v2550
    %v2552 = vpop.xlane.xlu0 %2551
    %v2553 = vsub.f32 %v2499, %v2531
    %v2554 = vsub.f32 %v2502, %v2534
    %v2555 = vsub.f32 %v2507, %v2537
    %v2556 = vsub.f32 %v2510, %v2540
    %v2557 = vsub.f32 %v2515, %v2543
    %v2558 = vsub.f32 %v2518, %v2546
    %v2559 = vsub.f32 %v2523, %v2549
    %v2560 = vsub.f32 %v2526, %v2552
    %v2561 = vmul.f32 %v2553, 1.442695
    %v2562 = vpow.pop %v2561
    %v2563 = vmul.f32 %v2554, 1.442695
    %v2564 = vpow.pop %v2563
    %v2565 = vmul.f32 %v2555, 1.442695
    %v2566 = vpow.pop %v2565
    %v2567 = vmul.f32 %v2556, 1.442695
    %v2568 = vpow.pop %v2567
    %v2569 = vmul.f32 %v2557, 1.442695
    %v2570 = vpow.pop %v2569
    %v2571 = vmul.f32 %v2558, 1.442695
    %v2572 = vpow.pop %v2571
    %v2573 = vmul.f32 %v2559, 1.442695
    %v2574 = vpow.pop %v2573
    %v2575 = vmul.f32 %v2560, 1.442695
    %v2576 = vpow.pop %v2575
    %v2577 = vsel %vm456, %v2562, 0.0
    %2578 = vadd.xlane.f32.xlu0 %v2577
    %v2579 = vpop.xlane.xlu0 %2578
    %v2580 = vsel %vm456, %v2564, 0.0
    %2581 = vadd.xlane.f32.xlu0 %v2580
    %v2582 = vpop.xlane.xlu0 %2581
    %v2583 = vsel %vm456, %v2566, 0.0
    %2584 = vadd.xlane.f32.xlu0 %v2583
    %v2585 = vpop.xlane.xlu0 %2584
    %v2586 = vsel %vm456, %v2568, 0.0
    %2587 = vadd.xlane.f32.xlu0 %v2586
    %v2588 = vpop.xlane.xlu0 %2587
    %v2589 = vsel %vm456, %v2570, 0.0
    %2590 = vadd.xlane.f32.xlu0 %v2589
    %v2591 = vpop.xlane.xlu0 %2590
    %v2592 = vsel %vm456, %v2572, 0.0
    %2593 = vadd.xlane.f32.xlu0 %v2592
    %v2594 = vpop.xlane.xlu0 %2593
    %v2595 = vsel %vm456, %v2574, 0.0
    %2596 = vadd.xlane.f32.xlu0 %v2595
    %v2597 = vpop.xlane.xlu0 %2596
    %v2598 = vsel %vm456, %v2576, 0.0
    %2599 = vadd.xlane.f32.xlu0 %v2598
    %v2600 = vpop.xlane.xlu0 %2599
    %v2601 = vrcp.pop %v2579
    %v2602 = vrcp.pop %v2582
    %v2603 = vrcp.pop %v2585
    %v2604 = vrcp.pop %v2588
    %v2605 = vrcp.pop %v2591
    %v2606 = vrcp.pop %v2594
    %v2607 = vrcp.pop %v2597
    %v2608 = vrcp.pop %v2600
    %v2609 = vmul.f32 %v2562, %v2601
    %v2610 = vmul.f32 %v2564, %v2602
    %v2611 = vmul.f32 %v2566, %v2603
    %v2612 = vmul.f32 %v2568, %v2604
    %v2613 = vmul.f32 %v2570, %v2605
    %v2614 = vmul.f32 %v2572, %v2606
    %v2615 = vmul.f32 %v2574, %v2607
    %v2616 = vmul.f32 %v2576, %v2608
    %v2617 = vpack.c.bf16 %v2610, %v2609
    %v2618 = vpack.c.bf16 %v2612, %v2611
    %v2619 = vpack.c.bf16 %v2614, %v2613
    %v2620 = vpack.c.bf16 %v2616, %v2615
    %2621 = vrot.lane.b32.xlu0 %v2424, 64
    %v2622 = vpop.permute.xlu0 %2621
    %2623 = vrot.lane.b32.xlu0 %v2425, 64
    %v2624 = vpop.permute.xlu0 %2623
    %2625 = vrot.lane.b32.xlu0 %v2426, 64
    %v2626 = vpop.permute.xlu0 %2625
    %2627 = vrot.lane.b32.xlu0 %v2427, 64
    %v2628 = vpop.permute.xlu0 %2627
    %v2634 = vsel %vm456, %v2617, 0
    %v2637 = vsel %vm456, %v2618, 0
    %v2640 = vsel %vm456, %v2619, 0
    %v2643 = vsel %vm456, %v2620, 0
    %2645 = vmatprep.subr.bf16.mxu0 0
    %2646 = vmatpush1.bf16.msra.mxu0 0
    %2647 = vmatprep.subr.bf16.mxu0 0
    %2648 = vmatpush1.bf16.msra.mxu0 0
    %2649 = vmatprep.subr.bf16.mxu0 0
    %2650 = vmatpush1.bf16.msra.mxu0 0
    %2651 = vmatprep.subr.bf16.mxu0 0
    %2652 = vmatpush1.bf16.msra.mxu0 0
    %2653 = vmatprep.subr.bf16.mxu0 0
    %2654 = vmatpush1.bf16.msra.mxu0 %v2628
    %2655 = vmatprep.subr.bf16.mxu0 0
    %2656 = vmatpush1.bf16.msra.mxu0 %v2626
    %2657 = vmatprep.subr.bf16.mxu0 0
    %2658 = vmatpush1.bf16.msra.mxu0 %v2624
    %2659 = vmatprep.subr.bf16.mxu0 0
    %2660 = vmatpush1.bf16.msra.mxu0 %v2622
    %2661 = vmatprep.subr.bf16.mxu0 0
    %2662 = vmatpush2.bf16.msra.mxu0 0
    %2663 = vmatprep.subr.bf16.mxu0 0
    %2664 = vmatpush2.bf16.msra.mxu0 0
    %2665 = vmatprep.subr.bf16.mxu0 0
    %2666 = vmatpush2.bf16.msra.mxu0 0
    %2667 = vmatprep.subr.bf16.mxu0 0
    %2668 = vmatpush2.bf16.msra.mxu0 0
    %2669 = vmatprep.subr.bf16.mxu0 0
    %2670 = vmatpush2.bf16.msra.mxu0 0
    %2671 = vmatprep.subr.bf16.mxu0 0
    %2672 = vmatpush2.bf16.msra.mxu0 0
    %2673 = vmatprep.subr.bf16.mxu0 0
    %2674 = vmatpush2.bf16.msra.mxu0 0
    %2675 = vmatprep.subr.bf16.mxu0 0
    %2676 = vmatpush2.bf16.msra.mxu0 0
    %2677 = vmatprep.mubr.bf16.mxu0 0
    %2678 = vmatmul.mubr.bf16.gmra.mxu0 %v2634
    %v2679 = vpop.f32.mrf.mxu0
    %v2680 = vadd.f32 0.0, %v2679
    %v2681 = vpop.f32.mrf.mxu0
    %v2682 = vpop.f32.mrf.mxu0
    %v2683 = vadd.f32 0.0, %v2682
    %v2684 = vpop.f32.mrf.mxu0
    %2685 = vmatprep.mubr.bf16.mxu0 0
    %2686 = vmatmul.mubr.bf16.gmra.mxu0 %v2637
    %v2687 = vpop.f32.mrf.mxu0
    %v2688 = vadd.f32 0.0, %v2687
    %v2689 = vpop.f32.mrf.mxu0
    %v2690 = vpop.f32.mrf.mxu0
    %v2691 = vadd.f32 0.0, %v2690
    %v2692 = vpop.f32.mrf.mxu0
    %2693 = vmatprep.mubr.bf16.mxu0 0
    %2694 = vmatmul.mubr.bf16.gmra.mxu0 %v2640
    %v2695 = vpop.f32.mrf.mxu0
    %v2696 = vadd.f32 0.0, %v2695
    %v2697 = vpop.f32.mrf.mxu0
    %v2698 = vpop.f32.mrf.mxu0
    %v2699 = vadd.f32 0.0, %v2698
    %v2700 = vpop.f32.mrf.mxu0
    %2701 = vmatprep.mubr.bf16.mxu0 0
    %2702 = vmatmul.mubr.bf16.gmra.mxu0 %v2643
    %v2703 = vpop.f32.mrf.mxu0
    %v2704 = vadd.f32 0.0, %v2703
    %v2705 = vpop.f32.mrf.mxu0
    %v2706 = vpop.f32.mrf.mxu0
    %v2707 = vadd.f32 0.0, %v2706
    %v2708 = vpop.f32.mrf.mxu0
    %2709 = vdwg.mxu0
    %2714 = vrot.lane.b32.xlu0 %v2420, 120
    %v2715 = vpop.permute.xlu0 %2714
    %2716 = vrot.lane.b32.xlu0 %v2421, 120
    %v2717 = vpop.permute.xlu0 %2716
    %2718 = vrot.lane.b32.xlu0 %v2422, 120
    %v2719 = vpop.permute.xlu0 %2718
    %2720 = vrot.lane.b32.xlu0 %v2423, 120
    %v2721 = vpop.permute.xlu0 %2720
    %2722 = vrot.lane.b32.xlu0 %v2424, 88
    %v2723 = vpop.permute.xlu0 %2722
    %2724 = vrot.lane.b32.xlu0 %v2425, 88
    %v2725 = vpop.permute.xlu0 %2724
    %2726 = vrot.lane.b32.xlu0 %v2426, 88
    %v2727 = vpop.permute.xlu0 %2726
    %2728 = vrot.lane.b32.xlu0 %v2427, 88
    %v2729 = vpop.permute.xlu0 %2728
    %v2731 = vsel %vm366, %v2715, 0
    %v2734 = vsel %vm366, %v2717, 0
    %v2737 = vsel %vm366, %v2719, 0
    %v2740 = vsel %vm366, %v2721, 0
    %v2743 = vsel %vm366, %v2723, 0
    %v2746 = vsel %vm366, %v2725, 0
    %v2749 = vsel %vm366, %v2727, 0
    %v2752 = vsel %vm366, %v2729, 0
    %2754 = vmatprep.subr.bf16.mxu0 0
    %2755 = vmatpush1.bf16.xpose.msra.mxu0 0
    %2756 = vmatprep.subr.bf16.mxu0 0
    %2757 = vmatpush1.bf16.xpose.msra.mxu0 0
    %2758 = vmatprep.subr.bf16.mxu0 0
    %2759 = vmatpush1.bf16.xpose.msra.mxu0 0
    %2760 = vmatprep.subr.bf16.mxu0 0
    %2761 = vmatpush1.bf16.xpose.msra.mxu0 0
    %2762 = vmatprep.subr.bf16.mxu0 0
    %2763 = vmatpush1.bf16.xpose.msra.mxu0 %v2752
    %2764 = vmatprep.subr.bf16.mxu0 0
    %2765 = vmatpush1.bf16.xpose.msra.mxu0 %v2749
    %2766 = vmatprep.subr.bf16.mxu0 0
    %2767 = vmatpush1.bf16.xpose.msra.mxu0 %v2746
    %2768 = vmatprep.subr.bf16.mxu0 0
    %2769 = vmatpush1.bf16.xpose.msra.mxu0 %v2743
    %2770 = vmatprep.subr.bf16.mxu0 0
    %2771 = vmatpush2.bf16.xpose.msra.mxu0 0
    %2772 = vmatprep.subr.bf16.mxu0 0
    %2773 = vmatpush2.bf16.xpose.msra.mxu0 0
    %2774 = vmatprep.subr.bf16.mxu0 0
    %2775 = vmatpush2.bf16.xpose.msra.mxu0 0
    %2776 = vmatprep.subr.bf16.mxu0 0
    %2777 = vmatpush2.bf16.xpose.msra.mxu0 0
    %2778 = vmatprep.subr.bf16.mxu0 0
    %2779 = vmatpush2.bf16.xpose.msra.mxu0 0
    %2780 = vmatprep.subr.bf16.mxu0 0
    %2781 = vmatpush2.bf16.xpose.msra.mxu0 0
    %2782 = vmatprep.subr.bf16.mxu0 0
    %2783 = vmatpush2.bf16.xpose.msra.mxu0 0
    %2784 = vmatprep.subr.bf16.mxu0 0
    %2785 = vmatpush2.bf16.xpose.msra.mxu0 0
    %2786 = vmatprep.mubr.bf16.mxu0 0
    %2787 = vmatmul.mubr.bf16.gmra.mxu0 %v2731
    %v2788 = vpop.f32.mrf.mxu0
    %v2789 = vadd.f32 %v82, %v2788
    %v2790 = vpop.f32.mrf.mxu0
    %v2791 = vpop.f32.mrf.mxu0
    %v2792 = vadd.f32 %v83, %v2791
    %v2793 = vpop.f32.mrf.mxu0
    %2794 = vmatprep.mubr.bf16.mxu0 0
    %2795 = vmatmul.mubr.bf16.gmra.mxu0 %v2734
    %v2796 = vpop.f32.mrf.mxu0
    %v2797 = vadd.f32 %v84, %v2796
    %v2798 = vpop.f32.mrf.mxu0
    %v2799 = vpop.f32.mrf.mxu0
    %v2800 = vadd.f32 %v85, %v2799
    %v2801 = vpop.f32.mrf.mxu0
    %2802 = vmatprep.mubr.bf16.mxu0 0
    %2803 = vmatmul.mubr.bf16.gmra.mxu0 %v2737
    %v2804 = vpop.f32.mrf.mxu0
    %v2805 = vadd.f32 %v86, %v2804
    %v2806 = vpop.f32.mrf.mxu0
    %v2807 = vpop.f32.mrf.mxu0
    %v2808 = vadd.f32 %v87, %v2807
    %v2809 = vpop.f32.mrf.mxu0
    %2810 = vmatprep.mubr.bf16.mxu0 0
    %2811 = vmatmul.mubr.bf16.gmra.mxu0 %v2740
    %v2812 = vpop.f32.mrf.mxu0
    %v2813 = vadd.f32 %v88, %v2812
    %v2814 = vpop.f32.mrf.mxu0
    %v2815 = vpop.f32.mrf.mxu0
    %v2816 = vadd.f32 %v89, %v2815
    %v2817 = vpop.f32.mrf.mxu0
    %2818 = vdwg.mxu0
    %v2819 = vsel %vm456, %v2789, -inf
    %2820 = vmax.xlane.f32.xlu0 %v2819
    %v2821 = vpop.xlane.xlu0 %2820
    %v2822 = vsel %vm456, %v2792, -inf
    %2823 = vmax.xlane.f32.xlu0 %v2822
    %v2824 = vpop.xlane.xlu0 %2823
    %v2825 = vsel %vm456, %v2797, -inf
    %2826 = vmax.xlane.f32.xlu0 %v2825
    %v2827 = vpop.xlane.xlu0 %2826
    %v2828 = vsel %vm456, %v2800, -inf
    %2829 = vmax.xlane.f32.xlu0 %v2828
    %v2830 = vpop.xlane.xlu0 %2829
    %v2831 = vsel %vm456, %v2805, -inf
    %2832 = vmax.xlane.f32.xlu0 %v2831
    %v2833 = vpop.xlane.xlu0 %2832
    %v2834 = vsel %vm456, %v2808, -inf
    %2835 = vmax.xlane.f32.xlu0 %v2834
    %v2836 = vpop.xlane.xlu0 %2835
    %v2837 = vsel %vm456, %v2813, -inf
    %2838 = vmax.xlane.f32.xlu0 %v2837
    %v2839 = vpop.xlane.xlu0 %2838
    %v2840 = vsel %vm456, %v2816, -inf
    %2841 = vmax.xlane.f32.xlu0 %v2840
    %v2842 = vpop.xlane.xlu0 %2841
    %v2843 = vsub.f32 %v2789, %v2821
    %v2844 = vsub.f32 %v2792, %v2824
    %v2845 = vsub.f32 %v2797, %v2827
    %v2846 = vsub.f32 %v2800, %v2830
    %v2847 = vsub.f32 %v2805, %v2833
    %v2848 = vsub.f32 %v2808, %v2836
    %v2849 = vsub.f32 %v2813, %v2839
    %v2850 = vsub.f32 %v2816, %v2842
    %v2851 = vmul.f32 %v2843, 1.442695
    %v2852 = vpow.pop %v2851
    %v2853 = vmul.f32 %v2844, 1.442695
    %v2854 = vpow.pop %v2853
    %v2855 = vmul.f32 %v2845, 1.442695
    %v2856 = vpow.pop %v2855
    %v2857 = vmul.f32 %v2846, 1.442695
    %v2858 = vpow.pop %v2857
    %v2859 = vmul.f32 %v2847, 1.442695
    %v2860 = vpow.pop %v2859
    %v2861 = vmul.f32 %v2848, 1.442695
    %v2862 = vpow.pop %v2861
    %v2863 = vmul.f32 %v2849, 1.442695
    %v2864 = vpow.pop %v2863
    %v2865 = vmul.f32 %v2850, 1.442695
    %v2866 = vpow.pop %v2865
    %v2867 = vsel %vm456, %v2852, 0.0
    %2868 = vadd.xlane.f32.xlu0 %v2867
    %v2869 = vpop.xlane.xlu0 %2868
    %v2870 = vsel %vm456, %v2854, 0.0
    %2871 = vadd.xlane.f32.xlu0 %v2870
    %v2872 = vpop.xlane.xlu0 %2871
    %v2873 = vsel %vm456, %v2856, 0.0
    %2874 = vadd.xlane.f32.xlu0 %v2873
    %v2875 = vpop.xlane.xlu0 %2874
    %v2876 = vsel %vm456, %v2858, 0.0
    %2877 = vadd.xlane.f32.xlu0 %v2876
    %v2878 = vpop.xlane.xlu0 %2877
    %v2879 = vsel %vm456, %v2860, 0.0
    %2880 = vadd.xlane.f32.xlu0 %v2879
    %v2881 = vpop.xlane.xlu0 %2880
    %v2882 = vsel %vm456, %v2862, 0.0
    %2883 = vadd.xlane.f32.xlu0 %v2882
    %v2884 = vpop.xlane.xlu0 %2883
    %v2885 = vsel %vm456, %v2864, 0.0
    %2886 = vadd.xlane.f32.xlu0 %v2885
    %v2887 = vpop.xlane.xlu0 %2886
    %v2888 = vsel %vm456, %v2866, 0.0
    %2889 = vadd.xlane.f32.xlu0 %v2888
    %v2890 = vpop.xlane.xlu0 %2889
    %v2891 = vrcp.pop %v2869
    %v2892 = vrcp.pop %v2872
    %v2893 = vrcp.pop %v2875
    %v2894 = vrcp.pop %v2878
    %v2895 = vrcp.pop %v2881
    %v2896 = vrcp.pop %v2884
    %v2897 = vrcp.pop %v2887
    %v2898 = vrcp.pop %v2890
    %v2899 = vmul.f32 %v2852, %v2891
    %v2900 = vmul.f32 %v2854, %v2892
    %v2901 = vmul.f32 %v2856, %v2893
    %v2902 = vmul.f32 %v2858, %v2894
    %v2903 = vmul.f32 %v2860, %v2895
    %v2904 = vmul.f32 %v2862, %v2896
    %v2905 = vmul.f32 %v2864, %v2897
    %v2906 = vmul.f32 %v2866, %v2898
    %v2907 = vpack.c.bf16 %v2900, %v2899
    %v2908 = vpack.c.bf16 %v2902, %v2901
    %v2909 = vpack.c.bf16 %v2904, %v2903
    %v2910 = vpack.c.bf16 %v2906, %v2905
    %2911 = vrot.lane.b32.xlu0 %v2424, 56
    %v2912 = vpop.permute.xlu0 %2911
    %2913 = vrot.lane.b32.xlu0 %v2425, 56
    %v2914 = vpop.permute.xlu0 %2913
    %2915 = vrot.lane.b32.xlu0 %v2426, 56
    %v2916 = vpop.permute.xlu0 %2915
    %2917 = vrot.lane.b32.xlu0 %v2427, 56
    %v2918 = vpop.permute.xlu0 %2917
    %v2924 = vsel %vm456, %v2907, 0
    %v2927 = vsel %vm456, %v2908, 0
    %v2930 = vsel %vm456, %v2909, 0
    %v2933 = vsel %vm456, %v2910, 0
    %2935 = vmatprep.subr.bf16.mxu0 0
    %2936 = vmatpush1.bf16.msra.mxu0 0
    %2937 = vmatprep.subr.bf16.mxu0 0
    %2938 = vmatpush1.bf16.msra.mxu0 0
    %2939 = vmatprep.subr.bf16.mxu0 0
    %2940 = vmatpush1.bf16.msra.mxu0 0
    %2941 = vmatprep.subr.bf16.mxu0 0
    %2942 = vmatpush1.bf16.msra.mxu0 0
    %2943 = vmatprep.subr.bf16.mxu0 0
    %2944 = vmatpush1.bf16.msra.mxu0 %v2918
    %2945 = vmatprep.subr.bf16.mxu0 0
    %2946 = vmatpush1.bf16.msra.mxu0 %v2916
    %2947 = vmatprep.subr.bf16.mxu0 0
    %2948 = vmatpush1.bf16.msra.mxu0 %v2914
    %2949 = vmatprep.subr.bf16.mxu0 0
    %2950 = vmatpush1.bf16.msra.mxu0 %v2912
    %2951 = vmatprep.subr.bf16.mxu0 0
    %2952 = vmatpush2.bf16.msra.mxu0 0
    %2953 = vmatprep.subr.bf16.mxu0 0
    %2954 = vmatpush2.bf16.msra.mxu0 0
    %2955 = vmatprep.subr.bf16.mxu0 0
    %2956 = vmatpush2.bf16.msra.mxu0 0
    %2957 = vmatprep.subr.bf16.mxu0 0
    %2958 = vmatpush2.bf16.msra.mxu0 0
    %2959 = vmatprep.subr.bf16.mxu0 0
    %2960 = vmatpush2.bf16.msra.mxu0 0
    %2961 = vmatprep.subr.bf16.mxu0 0
    %2962 = vmatpush2.bf16.msra.mxu0 0
    %2963 = vmatprep.subr.bf16.mxu0 0
    %2964 = vmatpush2.bf16.msra.mxu0 0
    %2965 = vmatprep.subr.bf16.mxu0 0
    %2966 = vmatpush2.bf16.msra.mxu0 0
    %2967 = vmatprep.mubr.bf16.mxu0 0
    %2968 = vmatmul.mubr.bf16.gmra.mxu0 %v2924
    %v2969 = vpop.f32.mrf.mxu0
    %v2970 = vadd.f32 0.0, %v2969
    %v2971 = vpop.f32.mrf.mxu0
    %v2972 = vpop.f32.mrf.mxu0
    %v2973 = vadd.f32 0.0, %v2972
    %v2974 = vpop.f32.mrf.mxu0
    %2975 = vmatprep.mubr.bf16.mxu0 0
    %2976 = vmatmul.mubr.bf16.gmra.mxu0 %v2927
    %v2977 = vpop.f32.mrf.mxu0
    %v2978 = vadd.f32 0.0, %v2977
    %v2979 = vpop.f32.mrf.mxu0
    %v2980 = vpop.f32.mrf.mxu0
    %v2981 = vadd.f32 0.0, %v2980
    %v2982 = vpop.f32.mrf.mxu0
    %2983 = vmatprep.mubr.bf16.mxu0 0
    %2984 = vmatmul.mubr.bf16.gmra.mxu0 %v2930
    %v2985 = vpop.f32.mrf.mxu0
    %v2986 = vadd.f32 0.0, %v2985
    %v2987 = vpop.f32.mrf.mxu0
    %v2988 = vpop.f32.mrf.mxu0
    %v2989 = vadd.f32 0.0, %v2988
    %v2990 = vpop.f32.mrf.mxu0
    %2991 = vmatprep.mubr.bf16.mxu0 0
    %2992 = vmatmul.mubr.bf16.gmra.mxu0 %v2933
    %v2993 = vpop.f32.mrf.mxu0
    %v2994 = vadd.f32 0.0, %v2993
    %v2995 = vpop.f32.mrf.mxu0
    %v2996 = vpop.f32.mrf.mxu0
    %v2997 = vadd.f32 0.0, %v2996
    %v2998 = vpop.f32.mrf.mxu0
    %2999 = vdwg.mxu0
    %3000 = vrot.lane.b32.xlu0 %v2420, 112
    %v3001 = vpop.permute.xlu0 %3000
    %3002 = vrot.lane.b32.xlu0 %v2421, 112
    %v3003 = vpop.permute.xlu0 %3002
    %3004 = vrot.lane.b32.xlu0 %v2422, 112
    %v3005 = vpop.permute.xlu0 %3004
    %3006 = vrot.lane.b32.xlu0 %v2423, 112
    %v3007 = vpop.permute.xlu0 %3006
    %3008 = vrot.lane.b32.xlu0 %v2424, 80
    %v3009 = vpop.permute.xlu0 %3008
    %3010 = vrot.lane.b32.xlu0 %v2425, 80
    %v3011 = vpop.permute.xlu0 %3010
    %3012 = vrot.lane.b32.xlu0 %v2426, 80
    %v3013 = vpop.permute.xlu0 %3012
    %3014 = vrot.lane.b32.xlu0 %v2427, 80
    %v3015 = vpop.permute.xlu0 %3014
    %v3017 = vsel %vm366, %v3001, 0
    %v3020 = vsel %vm366, %v3003, 0
    %v3023 = vsel %vm366, %v3005, 0
    %v3026 = vsel %vm366, %v3007, 0
    %v3029 = vsel %vm366, %v3009, 0
    %v3032 = vsel %vm366, %v3011, 0
    %v3035 = vsel %vm366, %v3013, 0
    %v3038 = vsel %vm366, %v3015, 0
    %3040 = vmatprep.subr.bf16.mxu0 0
    %3041 = vmatpush1.bf16.xpose.msra.mxu0 0
    %3042 = vmatprep.subr.bf16.mxu0 0
    %3043 = vmatpush1.bf16.xpose.msra.mxu0 0
    %3044 = vmatprep.subr.bf16.mxu0 0
    %3045 = vmatpush1.bf16.xpose.msra.mxu0 0
    %3046 = vmatprep.subr.bf16.mxu0 0
    %3047 = vmatpush1.bf16.xpose.msra.mxu0 0
    %3048 = vmatprep.subr.bf16.mxu0 0
    %3049 = vmatpush1.bf16.xpose.msra.mxu0 %v3038
    %3050 = vmatprep.subr.bf16.mxu0 0
    %3051 = vmatpush1.bf16.xpose.msra.mxu0 %v3035
    %3052 = vmatprep.subr.bf16.mxu0 0
    %3053 = vmatpush1.bf16.xpose.msra.mxu0 %v3032
    %3054 = vmatprep.subr.bf16.mxu0 0
    %3055 = vmatpush1.bf16.xpose.msra.mxu0 %v3029
    %3056 = vmatprep.subr.bf16.mxu0 0
    %3057 = vmatpush2.bf16.xpose.msra.mxu0 0
    %3058 = vmatprep.subr.bf16.mxu0 0
    %3059 = vmatpush2.bf16.xpose.msra.mxu0 0
    %3060 = vmatprep.subr.bf16.mxu0 0
    %3061 = vmatpush2.bf16.xpose.msra.mxu0 0
    %3062 = vmatprep.subr.bf16.mxu0 0
    %3063 = vmatpush2.bf16.xpose.msra.mxu0 0
    %3064 = vmatprep.subr.bf16.mxu0 0
    %3065 = vmatpush2.bf16.xpose.msra.mxu0 0
    %3066 = vmatprep.subr.bf16.mxu0 0
    %3067 = vmatpush2.bf16.xpose.msra.mxu0 0
    %3068 = vmatprep.subr.bf16.mxu0 0
    %3069 = vmatpush2.bf16.xpose.msra.mxu0 0
    %3070 = vmatprep.subr.bf16.mxu0 0
    %3071 = vmatpush2.bf16.xpose.msra.mxu0 0
    %3072 = vmatprep.mubr.bf16.mxu0 0
    %3073 = vmatmul.mubr.bf16.gmra.mxu0 %v3017
    %v3074 = vpop.f32.mrf.mxu0
    %v3075 = vadd.f32 %v82, %v3074
    %v3076 = vpop.f32.mrf.mxu0
    %v3077 = vpop.f32.mrf.mxu0
    %v3078 = vadd.f32 %v83, %v3077
    %v3079 = vpop.f32.mrf.mxu0
    %3080 = vmatprep.mubr.bf16.mxu0 0
    %3081 = vmatmul.mubr.bf16.gmra.mxu0 %v3020
    %v3082 = vpop.f32.mrf.mxu0
    %v3083 = vadd.f32 %v84, %v3082
    %v3084 = vpop.f32.mrf.mxu0
    %v3085 = vpop.f32.mrf.mxu0
    %v3086 = vadd.f32 %v85, %v3085
    %v3087 = vpop.f32.mrf.mxu0
    %3088 = vmatprep.mubr.bf16.mxu0 0
    %3089 = vmatmul.mubr.bf16.gmra.mxu0 %v3023
    %v3090 = vpop.f32.mrf.mxu0
    %v3091 = vadd.f32 %v86, %v3090
    %v3092 = vpop.f32.mrf.mxu0
    %v3093 = vpop.f32.mrf.mxu0
    %v3094 = vadd.f32 %v87, %v3093
    %v3095 = vpop.f32.mrf.mxu0
    %3096 = vmatprep.mubr.bf16.mxu0 0
    %3097 = vmatmul.mubr.bf16.gmra.mxu0 %v3026
    %v3098 = vpop.f32.mrf.mxu0
    %v3099 = vadd.f32 %v88, %v3098
    %v3100 = vpop.f32.mrf.mxu0
    %v3101 = vpop.f32.mrf.mxu0
    %v3102 = vadd.f32 %v89, %v3101
    %v3103 = vpop.f32.mrf.mxu0
    %3104 = vdwg.mxu0
    %v3105 = vsel %vm456, %v3075, -inf
    %3106 = vmax.xlane.f32.xlu0 %v3105
    %v3107 = vpop.xlane.xlu0 %3106
    %v3108 = vsel %vm456, %v3078, -inf
    %3109 = vmax.xlane.f32.xlu0 %v3108
    %v3110 = vpop.xlane.xlu0 %3109
    %v3111 = vsel %vm456, %v3083, -inf
    %3112 = vmax.xlane.f32.xlu0 %v3111
    %v3113 = vpop.xlane.xlu0 %3112
    %v3114 = vsel %vm456, %v3086, -inf
    %3115 = vmax.xlane.f32.xlu0 %v3114
    %v3116 = vpop.xlane.xlu0 %3115
    %v3117 = vsel %vm456, %v3091, -inf
    %3118 = vmax.xlane.f32.xlu0 %v3117
    %v3119 = vpop.xlane.xlu0 %3118
    %v3120 = vsel %vm456, %v3094, -inf
    %3121 = vmax.xlane.f32.xlu0 %v3120
    %v3122 = vpop.xlane.xlu0 %3121
    %v3123 = vsel %vm456, %v3099, -inf
    %3124 = vmax.xlane.f32.xlu0 %v3123
    %v3125 = vpop.xlane.xlu0 %3124
    %v3126 = vsel %vm456, %v3102, -inf
    %3127 = vmax.xlane.f32.xlu0 %v3126
    %v3128 = vpop.xlane.xlu0 %3127
    %v3129 = vsub.f32 %v3075, %v3107
    %v3130 = vsub.f32 %v3078, %v3110
    %v3131 = vsub.f32 %v3083, %v3113
    %v3132 = vsub.f32 %v3086, %v3116
    %v3133 = vsub.f32 %v3091, %v3119
    %v3134 = vsub.f32 %v3094, %v3122
    %v3135 = vsub.f32 %v3099, %v3125
    %v3136 = vsub.f32 %v3102, %v3128
    %v3137 = vmul.f32 %v3129, 1.442695
    %v3138 = vpow.pop %v3137
    %v3139 = vmul.f32 %v3130, 1.442695
    %v3140 = vpow.pop %v3139
    %v3141 = vmul.f32 %v3131, 1.442695
    %v3142 = vpow.pop %v3141
    %v3143 = vmul.f32 %v3132, 1.442695
    %v3144 = vpow.pop %v3143
    %v3145 = vmul.f32 %v3133, 1.442695
    %v3146 = vpow.pop %v3145
    %v3147 = vmul.f32 %v3134, 1.442695
    %v3148 = vpow.pop %v3147
    %v3149 = vmul.f32 %v3135, 1.442695
    %v3150 = vpow.pop %v3149
    %v3151 = vmul.f32 %v3136, 1.442695
    %v3152 = vpow.pop %v3151
    %v3153 = vsel %vm456, %v3138, 0.0
    %3154 = vadd.xlane.f32.xlu0 %v3153
    %v3155 = vpop.xlane.xlu0 %3154
    %v3156 = vsel %vm456, %v3140, 0.0
    %3157 = vadd.xlane.f32.xlu0 %v3156
    %v3158 = vpop.xlane.xlu0 %3157
    %v3159 = vsel %vm456, %v3142, 0.0
    %3160 = vadd.xlane.f32.xlu0 %v3159
    %v3161 = vpop.xlane.xlu0 %3160
    %v3162 = vsel %vm456, %v3144, 0.0
    %3163 = vadd.xlane.f32.xlu0 %v3162
    %v3164 = vpop.xlane.xlu0 %3163
    %v3165 = vsel %vm456, %v3146, 0.0
    %3166 = vadd.xlane.f32.xlu0 %v3165
    %v3167 = vpop.xlane.xlu0 %3166
    %v3168 = vsel %vm456, %v3148, 0.0
    %3169 = vadd.xlane.f32.xlu0 %v3168
    %v3170 = vpop.xlane.xlu0 %3169
    %v3171 = vsel %vm456, %v3150, 0.0
    %3172 = vadd.xlane.f32.xlu0 %v3171
    %v3173 = vpop.xlane.xlu0 %3172
    %v3174 = vsel %vm456, %v3152, 0.0
    %3175 = vadd.xlane.f32.xlu0 %v3174
    %v3176 = vpop.xlane.xlu0 %3175
    %v3177 = vrcp.pop %v3155
    %v3178 = vrcp.pop %v3158
    %v3179 = vrcp.pop %v3161
    %v3180 = vrcp.pop %v3164
    %v3181 = vrcp.pop %v3167
    %v3182 = vrcp.pop %v3170
    %v3183 = vrcp.pop %v3173
    %v3184 = vrcp.pop %v3176
    %v3185 = vmul.f32 %v3138, %v3177
    %v3186 = vmul.f32 %v3140, %v3178
    %v3187 = vmul.f32 %v3142, %v3179
    %v3188 = vmul.f32 %v3144, %v3180
    %v3189 = vmul.f32 %v3146, %v3181
    %v3190 = vmul.f32 %v3148, %v3182
    %v3191 = vmul.f32 %v3150, %v3183
    %v3192 = vmul.f32 %v3152, %v3184
    %v3193 = vpack.c.bf16 %v3186, %v3185
    %v3194 = vpack.c.bf16 %v3188, %v3187
    %v3195 = vpack.c.bf16 %v3190, %v3189
    %v3196 = vpack.c.bf16 %v3192, %v3191
    %3197 = vrot.lane.b32.xlu0 %v2424, 48
    %v3198 = vpop.permute.xlu0 %3197
    %3199 = vrot.lane.b32.xlu0 %v2425, 48
    %v3200 = vpop.permute.xlu0 %3199
    %3201 = vrot.lane.b32.xlu0 %v2426, 48
    %v3202 = vpop.permute.xlu0 %3201
    %3203 = vrot.lane.b32.xlu0 %v2427, 48
    %v3204 = vpop.permute.xlu0 %3203
    %v3210 = vsel %vm456, %v3193, 0
    %v3213 = vsel %vm456, %v3194, 0
    %v3216 = vsel %vm456, %v3195, 0
    %v3219 = vsel %vm456, %v3196, 0
    %3221 = vmatprep.subr.bf16.mxu0 0
    %3222 = vmatpush1.bf16.msra.mxu0 0
    %3223 = vmatprep.subr.bf16.mxu0 0
    %3224 = vmatpush1.bf16.msra.mxu0 0
    %3225 = vmatprep.subr.bf16.mxu0 0
    %3226 = vmatpush1.bf16.msra.mxu0 0
    %3227 = vmatprep.subr.bf16.mxu0 0
    %3228 = vmatpush1.bf16.msra.mxu0 0
    %3229 = vmatprep.subr.bf16.mxu0 0
    %3230 = vmatpush1.bf16.msra.mxu0 %v3204
    %3231 = vmatprep.subr.bf16.mxu0 0
    %3232 = vmatpush1.bf16.msra.mxu0 %v3202
    %3233 = vmatprep.subr.bf16.mxu0 0
    %3234 = vmatpush1.bf16.msra.mxu0 %v3200
    %3235 = vmatprep.subr.bf16.mxu0 0
    %3236 = vmatpush1.bf16.msra.mxu0 %v3198
    %3237 = vmatprep.subr.bf16.mxu0 0
    %3238 = vmatpush2.bf16.msra.mxu0 0
    %3239 = vmatprep.subr.bf16.mxu0 0
    %3240 = vmatpush2.bf16.msra.mxu0 0
    %3241 = vmatprep.subr.bf16.mxu0 0
    %3242 = vmatpush2.bf16.msra.mxu0 0
    %3243 = vmatprep.subr.bf16.mxu0 0
    %3244 = vmatpush2.bf16.msra.mxu0 0
    %3245 = vmatprep.subr.bf16.mxu0 0
    %3246 = vmatpush2.bf16.msra.mxu0 0
    %3247 = vmatprep.subr.bf16.mxu0 0
    %3248 = vmatpush2.bf16.msra.mxu0 0
    %3249 = vmatprep.subr.bf16.mxu0 0
    %3250 = vmatpush2.bf16.msra.mxu0 0
    %3251 = vmatprep.subr.bf16.mxu0 0
    %3252 = vmatpush2.bf16.msra.mxu0 0
    %3253 = vmatprep.mubr.bf16.mxu0 0
    %3254 = vmatmul.mubr.bf16.gmra.mxu0 %v3210
    %v3255 = vpop.f32.mrf.mxu0
    %v3256 = vadd.f32 0.0, %v3255
    %v3257 = vpop.f32.mrf.mxu0
    %v3258 = vpop.f32.mrf.mxu0
    %v3259 = vadd.f32 0.0, %v3258
    %v3260 = vpop.f32.mrf.mxu0
    %3261 = vmatprep.mubr.bf16.mxu0 0
    %3262 = vmatmul.mubr.bf16.gmra.mxu0 %v3213
    %v3263 = vpop.f32.mrf.mxu0
    %v3264 = vadd.f32 0.0, %v3263
    %v3265 = vpop.f32.mrf.mxu0
    %v3266 = vpop.f32.mrf.mxu0
    %v3267 = vadd.f32 0.0, %v3266
    %v3268 = vpop.f32.mrf.mxu0
    %3269 = vmatprep.mubr.bf16.mxu0 0
    %3270 = vmatmul.mubr.bf16.gmra.mxu0 %v3216
    %v3271 = vpop.f32.mrf.mxu0
    %v3272 = vadd.f32 0.0, %v3271
    %v3273 = vpop.f32.mrf.mxu0
    %v3274 = vpop.f32.mrf.mxu0
    %v3275 = vadd.f32 0.0, %v3274
    %v3276 = vpop.f32.mrf.mxu0
    %3277 = vmatprep.mubr.bf16.mxu0 0
    %3278 = vmatmul.mubr.bf16.gmra.mxu0 %v3219
    %v3279 = vpop.f32.mrf.mxu0
    %v3280 = vadd.f32 0.0, %v3279
    %v3281 = vpop.f32.mrf.mxu0
    %v3282 = vpop.f32.mrf.mxu0
    %v3283 = vadd.f32 0.0, %v3282
    %v3284 = vpop.f32.mrf.mxu0
    %3285 = vdwg.mxu0
    %3286 = vrot.lane.b32.xlu0 %v2420, 104
    %v3287 = vpop.permute.xlu0 %3286
    %3288 = vrot.lane.b32.xlu0 %v2421, 104
    %v3289 = vpop.permute.xlu0 %3288
    %3290 = vrot.lane.b32.xlu0 %v2422, 104
    %v3291 = vpop.permute.xlu0 %3290
    %3292 = vrot.lane.b32.xlu0 %v2423, 104
    %v3293 = vpop.permute.xlu0 %3292
    %3294 = vrot.lane.b32.xlu0 %v2424, 72
    %v3295 = vpop.permute.xlu0 %3294
    %3296 = vrot.lane.b32.xlu0 %v2425, 72
    %v3297 = vpop.permute.xlu0 %3296
    %3298 = vrot.lane.b32.xlu0 %v2426, 72
    %v3299 = vpop.permute.xlu0 %3298
    %3300 = vrot.lane.b32.xlu0 %v2427, 72
    %v3301 = vpop.permute.xlu0 %3300
    %v3303 = vsel %vm366, %v3287, 0
    %v3306 = vsel %vm366, %v3289, 0
    %v3309 = vsel %vm366, %v3291, 0
    %v3312 = vsel %vm366, %v3293, 0
    %v3315 = vsel %vm366, %v3295, 0
    %v3318 = vsel %vm366, %v3297, 0
    %v3321 = vsel %vm366, %v3299, 0
    %v3324 = vsel %vm366, %v3301, 0
    %3326 = vmatprep.subr.bf16.mxu0 0
    %3327 = vmatpush1.bf16.xpose.msra.mxu0 0
    %3328 = vmatprep.subr.bf16.mxu0 0
    %3329 = vmatpush1.bf16.xpose.msra.mxu0 0
    %3330 = vmatprep.subr.bf16.mxu0 0
    %3331 = vmatpush1.bf16.xpose.msra.mxu0 0
    %3332 = vmatprep.subr.bf16.mxu0 0
    %3333 = vmatpush1.bf16.xpose.msra.mxu0 0
    %3334 = vmatprep.subr.bf16.mxu0 0
    %3335 = vmatpush1.bf16.xpose.msra.mxu0 %v3324
    %3336 = vmatprep.subr.bf16.mxu0 0
    %3337 = vmatpush1.bf16.xpose.msra.mxu0 %v3321
    %3338 = vmatprep.subr.bf16.mxu0 0
    %3339 = vmatpush1.bf16.xpose.msra.mxu0 %v3318
    %3340 = vmatprep.subr.bf16.mxu0 0
    %3341 = vmatpush1.bf16.xpose.msra.mxu0 %v3315
    %3342 = vmatprep.subr.bf16.mxu0 0
    %3343 = vmatpush2.bf16.xpose.msra.mxu0 0
    %3344 = vmatprep.subr.bf16.mxu0 0
    %3345 = vmatpush2.bf16.xpose.msra.mxu0 0
    %3346 = vmatprep.subr.bf16.mxu0 0
    %3347 = vmatpush2.bf16.xpose.msra.mxu0 0
    %3348 = vmatprep.subr.bf16.mxu0 0
    %3349 = vmatpush2.bf16.xpose.msra.mxu0 0
    %3350 = vmatprep.subr.bf16.mxu0 0
    %3351 = vmatpush2.bf16.xpose.msra.mxu0 0
    %3352 = vmatprep.subr.bf16.mxu0 0
    %3353 = vmatpush2.bf16.xpose.msra.mxu0 0
    %3354 = vmatprep.subr.bf16.mxu0 0
    %3355 = vmatpush2.bf16.xpose.msra.mxu0 0
    %3356 = vmatprep.subr.bf16.mxu0 0
    %3357 = vmatpush2.bf16.xpose.msra.mxu0 0
    %3358 = vmatprep.mubr.bf16.mxu0 0
    %3359 = vmatmul.mubr.bf16.gmra.mxu0 %v3303
    %v3360 = vpop.f32.mrf.mxu0
    %v3361 = vadd.f32 %v82, %v3360
    %v3362 = vpop.f32.mrf.mxu0
    %v3363 = vpop.f32.mrf.mxu0
    %v3364 = vadd.f32 %v83, %v3363
    %v3365 = vpop.f32.mrf.mxu0
    %3366 = vmatprep.mubr.bf16.mxu0 0
    %3367 = vmatmul.mubr.bf16.gmra.mxu0 %v3306
    %v3368 = vpop.f32.mrf.mxu0
    %v3369 = vadd.f32 %v84, %v3368
    %v3370 = vpop.f32.mrf.mxu0
    %v3371 = vpop.f32.mrf.mxu0
    %v3372 = vadd.f32 %v85, %v3371
    %v3373 = vpop.f32.mrf.mxu0
    %3374 = vmatprep.mubr.bf16.mxu0 0
    %3375 = vmatmul.mubr.bf16.gmra.mxu0 %v3309
    %v3376 = vpop.f32.mrf.mxu0
    %v3377 = vadd.f32 %v86, %v3376
    %v3378 = vpop.f32.mrf.mxu0
    %v3379 = vpop.f32.mrf.mxu0
    %v3380 = vadd.f32 %v87, %v3379
    %v3381 = vpop.f32.mrf.mxu0
    %3382 = vmatprep.mubr.bf16.mxu0 0
    %3383 = vmatmul.mubr.bf16.gmra.mxu0 %v3312
    %v3384 = vpop.f32.mrf.mxu0
    %v3385 = vadd.f32 %v88, %v3384
    %v3386 = vpop.f32.mrf.mxu0
    %v3387 = vpop.f32.mrf.mxu0
    %v3388 = vadd.f32 %v89, %v3387
    %v3389 = vpop.f32.mrf.mxu0
    %3390 = vdwg.mxu0
    %v3391 = vsel %vm456, %v3361, -inf
    %3392 = vmax.xlane.f32.xlu0 %v3391
    %v3393 = vpop.xlane.xlu0 %3392
    %v3394 = vsel %vm456, %v3364, -inf
    %3395 = vmax.xlane.f32.xlu0 %v3394
    %v3396 = vpop.xlane.xlu0 %3395
    %v3397 = vsel %vm456, %v3369, -inf
    %3398 = vmax.xlane.f32.xlu0 %v3397
    %v3399 = vpop.xlane.xlu0 %3398
    %v3400 = vsel %vm456, %v3372, -inf
    %3401 = vmax.xlane.f32.xlu0 %v3400
    %v3402 = vpop.xlane.xlu0 %3401
    %v3403 = vsel %vm456, %v3377, -inf
    %3404 = vmax.xlane.f32.xlu0 %v3403
    %v3405 = vpop.xlane.xlu0 %3404
    %v3406 = vsel %vm456, %v3380, -inf
    %3407 = vmax.xlane.f32.xlu0 %v3406
    %v3408 = vpop.xlane.xlu0 %3407
    %v3409 = vsel %vm456, %v3385, -inf
    %3410 = vmax.xlane.f32.xlu0 %v3409
    %v3411 = vpop.xlane.xlu0 %3410
    %v3412 = vsel %vm456, %v3388, -inf
    %3413 = vmax.xlane.f32.xlu0 %v3412
    %v3414 = vpop.xlane.xlu0 %3413
    %v3415 = vsub.f32 %v3361, %v3393
    %v3416 = vsub.f32 %v3364, %v3396
    %v3417 = vsub.f32 %v3369, %v3399
    %v3418 = vsub.f32 %v3372, %v3402
    %v3419 = vsub.f32 %v3377, %v3405
    %v3420 = vsub.f32 %v3380, %v3408
    %v3421 = vsub.f32 %v3385, %v3411
    %v3422 = vsub.f32 %v3388, %v3414
    %v3423 = vmul.f32 %v3415, 1.442695
    %v3424 = vpow.pop %v3423
    %v3425 = vmul.f32 %v3416, 1.442695
    %v3426 = vpow.pop %v3425
    %v3427 = vmul.f32 %v3417, 1.442695
    %v3428 = vpow.pop %v3427
    %v3429 = vmul.f32 %v3418, 1.442695
    %v3430 = vpow.pop %v3429
    %v3431 = vmul.f32 %v3419, 1.442695
    %v3432 = vpow.pop %v3431
    %v3433 = vmul.f32 %v3420, 1.442695
    %v3434 = vpow.pop %v3433
    %v3435 = vmul.f32 %v3421, 1.442695
    %v3436 = vpow.pop %v3435
    %v3437 = vmul.f32 %v3422, 1.442695
    %v3438 = vpow.pop %v3437
    %v3439 = vsel %vm456, %v3424, 0.0
    %3440 = vadd.xlane.f32.xlu0 %v3439
    %v3441 = vpop.xlane.xlu0 %3440
    %v3442 = vsel %vm456, %v3426, 0.0
    %3443 = vadd.xlane.f32.xlu0 %v3442
    %v3444 = vpop.xlane.xlu0 %3443
    %v3445 = vsel %vm456, %v3428, 0.0
    %3446 = vadd.xlane.f32.xlu0 %v3445
    %v3447 = vpop.xlane.xlu0 %3446
    %v3448 = vsel %vm456, %v3430, 0.0
    %3449 = vadd.xlane.f32.xlu0 %v3448
    %v3450 = vpop.xlane.xlu0 %3449
    %v3451 = vsel %vm456, %v3432, 0.0
    %3452 = vadd.xlane.f32.xlu0 %v3451
    %v3453 = vpop.xlane.xlu0 %3452
    %v3454 = vsel %vm456, %v3434, 0.0
    %3455 = vadd.xlane.f32.xlu0 %v3454
    %v3456 = vpop.xlane.xlu0 %3455
    %v3457 = vsel %vm456, %v3436, 0.0
    %3458 = vadd.xlane.f32.xlu0 %v3457
    %v3459 = vpop.xlane.xlu0 %3458
    %v3460 = vsel %vm456, %v3438, 0.0
    %3461 = vadd.xlane.f32.xlu0 %v3460
    %v3462 = vpop.xlane.xlu0 %3461
    %v3463 = vrcp.pop %v3441
    %v3464 = vrcp.pop %v3444
    %v3465 = vrcp.pop %v3447
    %v3466 = vrcp.pop %v3450
    %v3467 = vrcp.pop %v3453
    %v3468 = vrcp.pop %v3456
    %v3469 = vrcp.pop %v3459
    %v3470 = vrcp.pop %v3462
    %v3471 = vmul.f32 %v3424, %v3463
    %v3472 = vmul.f32 %v3426, %v3464
    %v3473 = vmul.f32 %v3428, %v3465
    %v3474 = vmul.f32 %v3430, %v3466
    %v3475 = vmul.f32 %v3432, %v3467
    %v3476 = vmul.f32 %v3434, %v3468
    %v3477 = vmul.f32 %v3436, %v3469
    %v3478 = vmul.f32 %v3438, %v3470
    %v3479 = vpack.c.bf16 %v3472, %v3471
    %v3480 = vpack.c.bf16 %v3474, %v3473
    %v3481 = vpack.c.bf16 %v3476, %v3475
    %v3482 = vpack.c.bf16 %v3478, %v3477
    %3483 = vrot.lane.b32.xlu0 %v2424, 40
    %v3484 = vpop.permute.xlu0 %3483
    %3485 = vrot.lane.b32.xlu0 %v2425, 40
    %v3486 = vpop.permute.xlu0 %3485
    %3487 = vrot.lane.b32.xlu0 %v2426, 40
    %v3488 = vpop.permute.xlu0 %3487
    %3489 = vrot.lane.b32.xlu0 %v2427, 40
    %v3490 = vpop.permute.xlu0 %3489
    %v3496 = vsel %vm456, %v3479, 0
    %v3499 = vsel %vm456, %v3480, 0
    %v3502 = vsel %vm456, %v3481, 0
    %v3505 = vsel %vm456, %v3482, 0
    %3507 = vmatprep.subr.bf16.mxu0 0
    %3508 = vmatpush1.bf16.msra.mxu0 0
    %3509 = vmatprep.subr.bf16.mxu0 0
    %3510 = vmatpush1.bf16.msra.mxu0 0
    %3511 = vmatprep.subr.bf16.mxu0 0
    %3512 = vmatpush1.bf16.msra.mxu0 0
    %3513 = vmatprep.subr.bf16.mxu0 0
    %3514 = vmatpush1.bf16.msra.mxu0 0
    %3515 = vmatprep.subr.bf16.mxu0 0
    %3516 = vmatpush1.bf16.msra.mxu0 %v3490
    %3517 = vmatprep.subr.bf16.mxu0 0
    %3518 = vmatpush1.bf16.msra.mxu0 %v3488
    %3519 = vmatprep.subr.bf16.mxu0 0
    %3520 = vmatpush1.bf16.msra.mxu0 %v3486
    %3521 = vmatprep.subr.bf16.mxu0 0
    %3522 = vmatpush1.bf16.msra.mxu0 %v3484
    %3523 = vmatprep.subr.bf16.mxu0 0
    %3524 = vmatpush2.bf16.msra.mxu0 0
    %3525 = vmatprep.subr.bf16.mxu0 0
    %3526 = vmatpush2.bf16.msra.mxu0 0
    %3527 = vmatprep.subr.bf16.mxu0 0
    %3528 = vmatpush2.bf16.msra.mxu0 0
    %3529 = vmatprep.subr.bf16.mxu0 0
    %3530 = vmatpush2.bf16.msra.mxu0 0
    %3531 = vmatprep.subr.bf16.mxu0 0
    %3532 = vmatpush2.bf16.msra.mxu0 0
    %3533 = vmatprep.subr.bf16.mxu0 0
    %3534 = vmatpush2.bf16.msra.mxu0 0
    %3535 = vmatprep.subr.bf16.mxu0 0
    %3536 = vmatpush2.bf16.msra.mxu0 0
    %3537 = vmatprep.subr.bf16.mxu0 0
    %3538 = vmatpush2.bf16.msra.mxu0 0
    %3539 = vmatprep.mubr.bf16.mxu0 0
    %3540 = vmatmul.mubr.bf16.gmra.mxu0 %v3496
    %v3541 = vpop.f32.mrf.mxu0
    %v3542 = vadd.f32 0.0, %v3541
    %v3543 = vpop.f32.mrf.mxu0
    %v3544 = vpop.f32.mrf.mxu0
    %v3545 = vadd.f32 0.0, %v3544
    %v3546 = vpop.f32.mrf.mxu0
    %3547 = vmatprep.mubr.bf16.mxu0 0
    %3548 = vmatmul.mubr.bf16.gmra.mxu0 %v3499
    %v3549 = vpop.f32.mrf.mxu0
    %v3550 = vadd.f32 0.0, %v3549
    %v3551 = vpop.f32.mrf.mxu0
    %v3552 = vpop.f32.mrf.mxu0
    %v3553 = vadd.f32 0.0, %v3552
    %v3554 = vpop.f32.mrf.mxu0
    %3555 = vmatprep.mubr.bf16.mxu0 0
    %3556 = vmatmul.mubr.bf16.gmra.mxu0 %v3502
    %v3557 = vpop.f32.mrf.mxu0
    %v3558 = vadd.f32 0.0, %v3557
    %v3559 = vpop.f32.mrf.mxu0
    %v3560 = vpop.f32.mrf.mxu0
    %v3561 = vadd.f32 0.0, %v3560
    %v3562 = vpop.f32.mrf.mxu0
    %3563 = vmatprep.mubr.bf16.mxu0 0
    %3564 = vmatmul.mubr.bf16.gmra.mxu0 %v3505
    %v3565 = vpop.f32.mrf.mxu0
    %v3566 = vadd.f32 0.0, %v3565
    %v3567 = vpop.f32.mrf.mxu0
    %v3568 = vpop.f32.mrf.mxu0
    %v3569 = vadd.f32 0.0, %v3568
    %v3570 = vpop.f32.mrf.mxu0
    %3571 = vdwg.mxu0
    %3580 = vrot.lane.b32.xlu0 %v2970, 8
    %v3581 = vpop.permute.xlu0 %3580
    %3582 = vrot.lane.b32.xlu0 %v2973, 8
    %v3583 = vpop.permute.xlu0 %3582
    %3584 = vrot.lane.b32.xlu0 %v2978, 8
    %v3585 = vpop.permute.xlu0 %3584
    %3586 = vrot.lane.b32.xlu0 %v2981, 8
    %v3587 = vpop.permute.xlu0 %3586
    %3588 = vrot.lane.b32.xlu0 %v2986, 8
    %v3589 = vpop.permute.xlu0 %3588
    %3590 = vrot.lane.b32.xlu0 %v2989, 8
    %v3591 = vpop.permute.xlu0 %3590
    %3592 = vrot.lane.b32.xlu0 %v2994, 8
    %v3593 = vpop.permute.xlu0 %3592
    %3594 = vrot.lane.b32.xlu0 %v2997, 8
    %v3595 = vpop.permute.xlu0 %3594
    %3612 = vrot.lane.b32.xlu0 %v3256, 16
    %v3613 = vpop.permute.xlu0 %3612
    %3614 = vrot.lane.b32.xlu0 %v3259, 16
    %v3615 = vpop.permute.xlu0 %3614
    %3616 = vrot.lane.b32.xlu0 %v3264, 16
    %v3617 = vpop.permute.xlu0 %3616
    %3618 = vrot.lane.b32.xlu0 %v3267, 16
    %v3619 = vpop.permute.xlu0 %3618
    %3620 = vrot.lane.b32.xlu0 %v3272, 16
    %v3621 = vpop.permute.xlu0 %3620
    %3622 = vrot.lane.b32.xlu0 %v3275, 16
    %v3623 = vpop.permute.xlu0 %3622
    %3624 = vrot.lane.b32.xlu0 %v3280, 16
    %v3625 = vpop.permute.xlu0 %3624
    %3626 = vrot.lane.b32.xlu0 %v3283, 16
    %v3627 = vpop.permute.xlu0 %3626
    %3644 = vrot.lane.b32.xlu0 %v3542, 24
    %v3645 = vpop.permute.xlu0 %3644
    %3646 = vrot.lane.b32.xlu0 %v3545, 24
    %v3647 = vpop.permute.xlu0 %3646
    %3648 = vrot.lane.b32.xlu0 %v3550, 24
    %v3649 = vpop.permute.xlu0 %3648
    %3650 = vrot.lane.b32.xlu0 %v3553, 24
    %v3651 = vpop.permute.xlu0 %3650
    %3652 = vrot.lane.b32.xlu0 %v3558, 24
    %v3653 = vpop.permute.xlu0 %3652
    %3654 = vrot.lane.b32.xlu0 %v3561, 24
    %v3655 = vpop.permute.xlu0 %3654
    %3656 = vrot.lane.b32.xlu0 %v3566, 24
    %v3657 = vpop.permute.xlu0 %3656
    %3658 = vrot.lane.b32.xlu0 %v3569, 24
    %v3659 = vpop.permute.xlu0 %3658
    %v3668 = vsel %vm366, %v2680, %v3581
    %v3669 = vsel %vm366, %v2683, %v3583
    %v3670 = vsel %vm366, %v2688, %v3585
    %v3671 = vsel %vm366, %v2691, %v3587
    %v3672 = vsel %vm366, %v2696, %v3589
    %v3673 = vsel %vm366, %v2699, %v3591
    %v3674 = vsel %vm366, %v2704, %v3593
    %v3675 = vsel %vm366, %v2707, %v3595
    %v3676 = vsel %vm1604, %v3668, %v3613
    %v3677 = vsel %vm1604, %v3669, %v3615
    %v3678 = vsel %vm1604, %v3670, %v3617
    %v3679 = vsel %vm1604, %v3671, %v3619
    %v3680 = vsel %vm1604, %v3672, %v3621
    %v3681 = vsel %vm1604, %v3673, %v3623
    %v3682 = vsel %vm1604, %v3674, %v3625
    %v3683 = vsel %vm1604, %v3675, %v3627
    %v3684 = vsel %vm1613, %v3676, %v3645
    %v3685 = vsel %vm1613, %v3677, %v3647
    %v3686 = vsel %vm1613, %v3678, %v3649
    %v3687 = vsel %vm1613, %v3679, %v3651
    %v3688 = vsel %vm1613, %v3680, %v3653
    %v3689 = vsel %vm1613, %v3681, %v3655
    %v3690 = vsel %vm1613, %v3682, %v3657
    %v3691 = vsel %vm1613, %v3683, %v3659
    %v3692 = vpack.c.bf16 %v3685, %v3684
    %v3693 = vpack.c.bf16 %v3687, %v3686
    %v3694 = vpack.c.bf16 %v3689, %v3688
    %v3695 = vpack.c.bf16 %v3691, %v3690
    %s3696 = scalar_lea.vmem %s6, 16
    %v3697 = vld [vmem:[%s3696] sm:$0xf]
    %v3698 = vld [vmem:[%s3696 + $0x4] sm:$0xf]
    %v3699 = vld [vmem:[%s3696 + $0x8] sm:$0xf]
    %v3700 = vld [vmem:[%s3696 + $0xc] sm:$0xf]
    %s3701 = scalar_lea.vmem %s7, 1
    %v3702 = vld [vmem:[%s3701] sm:$0x1]
    %v3704 = vlaneseq
    %v3705 = vshrl.u32 %v3704, 7
    %v3706 = vsub.s32 0, %v3705
    %v3707 = vrot.slane %v3702, %v3706
    %v3713 = vunpack.c.l.b16 %v3697
    %v3714 = vunpack.c.l.b16 %v3698
    %v3715 = vunpack.c.l.b16 %v3699
    %v3716 = vunpack.c.l.b16 %v3700
    %v3717 = vpack.c.b16 %v3714, %v3713
    %v3718 = vpack.c.b16 %v3716, %v3715
    %v3722 = vsel %vm100, %v3692, 0
    %v3725 = vsel %vm100, %v3693, 0
    %v3728 = vsel %vm100, %v3694, 0
    %v3731 = vsel %vm100, %v3695, 0
    %3733 = vmatprep.subr.bf16.mxu0 0
    %3734 = vmatpush1.bf16.msra.mxu0 0
    %3735 = vmatprep.subr.bf16.mxu0 0
    %3736 = vmatpush1.bf16.msra.mxu0 0
    %3737 = vmatprep.subr.bf16.mxu0 0
    %3738 = vmatpush1.bf16.msra.mxu0 0
    %3739 = vmatprep.subr.bf16.mxu0 0
    %3740 = vmatpush1.bf16.msra.mxu0 0
    %3741 = vmatprep.subr.bf16.mxu0 0
    %3742 = vmatpush1.bf16.msra.mxu0 0
    %3743 = vmatprep.subr.bf16.mxu0 0
    %3744 = vmatpush1.bf16.msra.mxu0 0
    %3745 = vmatprep.subr.bf16.mxu0 0
    %3746 = vmatpush1.bf16.msra.mxu0 %v3718
    %3747 = vmatprep.subr.bf16.mxu0 0
    %3748 = vmatpush1.bf16.msra.mxu0 %v3717
    %3749 = vmatprep.subr.bf16.mxu0 0
    %3750 = vmatpush2.bf16.msra.mxu0 0
    %3751 = vmatprep.subr.bf16.mxu0 0
    %3752 = vmatpush2.bf16.msra.mxu0 0
    %3753 = vmatprep.subr.bf16.mxu0 0
    %3754 = vmatpush2.bf16.msra.mxu0 0
    %3755 = vmatprep.subr.bf16.mxu0 0
    %3756 = vmatpush2.bf16.msra.mxu0 0
    %3757 = vmatprep.subr.bf16.mxu0 0
    %3758 = vmatpush2.bf16.msra.mxu0 0
    %3759 = vmatprep.subr.bf16.mxu0 0
    %3760 = vmatpush2.bf16.msra.mxu0 0
    %3761 = vmatprep.subr.bf16.mxu0 0
    %3762 = vmatpush2.bf16.msra.mxu0 0
    %3763 = vmatprep.subr.bf16.mxu0 0
    %3764 = vmatpush2.bf16.msra.mxu0 0
    %3765 = vmatprep.mubr.bf16.mxu0 0
    %3766 = vmatmul.mubr.bf16.gmra.mxu0 %v3722
    %v3767 = vpop.f32.mrf.mxu0
    %v3768 = vadd.f32 %v3707, %v3767
    %v3769 = vpop.f32.mrf.mxu0
    %v3770 = vpop.f32.mrf.mxu0
    %v3771 = vadd.f32 %v3707, %v3770
    %v3772 = vpop.f32.mrf.mxu0
    %3773 = vmatprep.mubr.bf16.mxu0 0
    %3774 = vmatmul.mubr.bf16.gmra.mxu0 %v3725
    %v3775 = vpop.f32.mrf.mxu0
    %v3776 = vadd.f32 %v3707, %v3775
    %v3777 = vpop.f32.mrf.mxu0
    %v3778 = vpop.f32.mrf.mxu0
    %v3779 = vadd.f32 %v3707, %v3778
    %v3780 = vpop.f32.mrf.mxu0
    %3781 = vmatprep.mubr.bf16.mxu0 0
    %3782 = vmatmul.mubr.bf16.gmra.mxu0 %v3728
    %v3783 = vpop.f32.mrf.mxu0
    %v3784 = vadd.f32 %v3707, %v3783
    %v3785 = vpop.f32.mrf.mxu0
    %v3786 = vpop.f32.mrf.mxu0
    %v3787 = vadd.f32 %v3707, %v3786
    %v3788 = vpop.f32.mrf.mxu0
    %3789 = vmatprep.mubr.bf16.mxu0 0
    %3790 = vmatmul.mubr.bf16.gmra.mxu0 %v3731
    %v3791 = vpop.f32.mrf.mxu0
    %v3792 = vadd.f32 %v3707, %v3791
    %v3793 = vpop.f32.mrf.mxu0
    %v3794 = vpop.f32.mrf.mxu0
    %v3795 = vadd.f32 %v3707, %v3794
    %v3796 = vpop.f32.mrf.mxu0
    %3797 = vdwg.mxu0
    %v3798 = vadd.f32 %v3768, %v2298
    %v3799 = vadd.f32 %v3771, %v2299
    %v3800 = vadd.f32 %v3776, %v2300
    %v3801 = vadd.f32 %v3779, %v2301
    %v3802 = vadd.f32 %v3784, %v2302
    %v3803 = vadd.f32 %v3787, %v2303
    %v3804 = vadd.f32 %v3792, %v2304
    %v3805 = vadd.f32 %v3795, %v2305
    %s3806 = scalar_lea.vmem %s8, 1
    %v3807 = vld [vmem:[%s3806] sm:$0x1]
    %s3808 = scalar_lea.vmem %s9, 1
    %v3809 = vld [vmem:[%s3808] sm:$0x1]
    %v3810 = vsel %vm100, %v3798, 0.0
    %3811 = vadd.xlane.f32.xlu0 %v3810
    %v3812 = vpop.xlane.xlu0 %3811
    %v3813 = vsel %vm100, %v3799, 0.0
    %3814 = vadd.xlane.f32.xlu0 %v3813
    %v3815 = vpop.xlane.xlu0 %3814
    %v3816 = vsel %vm100, %v3800, 0.0
    %3817 = vadd.xlane.f32.xlu0 %v3816
    %v3818 = vpop.xlane.xlu0 %3817
    %v3819 = vsel %vm100, %v3801, 0.0
    %3820 = vadd.xlane.f32.xlu0 %v3819
    %v3821 = vpop.xlane.xlu0 %3820
    %v3822 = vsel %vm100, %v3802, 0.0
    %3823 = vadd.xlane.f32.xlu0 %v3822
    %v3824 = vpop.xlane.xlu0 %3823
    %v3825 = vsel %vm100, %v3803, 0.0
    %3826 = vadd.xlane.f32.xlu0 %v3825
    %v3827 = vpop.xlane.xlu0 %3826
    %v3828 = vsel %vm100, %v3804, 0.0
    %3829 = vadd.xlane.f32.xlu0 %v3828
    %v3830 = vpop.xlane.xlu0 %3829
    %v3831 = vsel %vm100, %v3805, 0.0
    %3832 = vadd.xlane.f32.xlu0 %v3831
    %v3833 = vpop.xlane.xlu0 %3832
    %v3834 = vmul.f32 %v3812, %v125
    %v3835 = vmul.f32 %v3815, %v125
    %v3836 = vmul.f32 %v3818, %v125
    %v3837 = vmul.f32 %v3821, %v125
    %v3838 = vmul.f32 %v3824, %v125
    %v3839 = vmul.f32 %v3827, %v125
    %v3840 = vmul.f32 %v3830, %v125
    %v3841 = vmul.f32 %v3833, %v125
    %v3842 = vsub.f32 %v3798, %v3834
    %v3843 = vsub.f32 %v3799, %v3835
    %v3844 = vsub.f32 %v3800, %v3836
    %v3845 = vsub.f32 %v3801, %v3837
    %v3846 = vsub.f32 %v3802, %v3838
    %v3847 = vsub.f32 %v3803, %v3839
    %v3848 = vsub.f32 %v3804, %v3840
    %v3849 = vsub.f32 %v3805, %v3841
    %v3850 = vmul.f32 %v3842, %v3842
    %v3851 = vmul.f32 %v3843, %v3843
    %v3852 = vmul.f32 %v3844, %v3844
    %v3853 = vmul.f32 %v3845, %v3845
    %v3854 = vmul.f32 %v3846, %v3846
    %v3855 = vmul.f32 %v3847, %v3847
    %v3856 = vmul.f32 %v3848, %v3848
    %v3857 = vmul.f32 %v3849, %v3849
    %v3858 = vsel %vm100, %v3850, 0.0
    %3859 = vadd.xlane.f32.xlu0 %v3858
    %v3860 = vpop.xlane.xlu0 %3859
    %v3861 = vsel %vm100, %v3851, 0.0
    %3862 = vadd.xlane.f32.xlu0 %v3861
    %v3863 = vpop.xlane.xlu0 %3862
    %v3864 = vsel %vm100, %v3852, 0.0
    %3865 = vadd.xlane.f32.xlu0 %v3864
    %v3866 = vpop.xlane.xlu0 %3865
    %v3867 = vsel %vm100, %v3853, 0.0
    %3868 = vadd.xlane.f32.xlu0 %v3867
    %v3869 = vpop.xlane.xlu0 %3868
    %v3870 = vsel %vm100, %v3854, 0.0
    %3871 = vadd.xlane.f32.xlu0 %v3870
    %v3872 = vpop.xlane.xlu0 %3871
    %v3873 = vsel %vm100, %v3855, 0.0
    %3874 = vadd.xlane.f32.xlu0 %v3873
    %v3875 = vpop.xlane.xlu0 %3874
    %v3876 = vsel %vm100, %v3856, 0.0
    %3877 = vadd.xlane.f32.xlu0 %v3876
    %v3878 = vpop.xlane.xlu0 %3877
    %v3879 = vsel %vm100, %v3857, 0.0
    %3880 = vadd.xlane.f32.xlu0 %v3879
    %v3881 = vpop.xlane.xlu0 %3880
    %v3882 = vmul.f32 %v3860, %v125
    %v3883 = vmul.f32 %v3863, %v125
    %v3884 = vmul.f32 %v3866, %v125
    %v3885 = vmul.f32 %v3869, %v125
    %v3886 = vmul.f32 %v3872, %v125
    %v3887 = vmul.f32 %v3875, %v125
    %v3888 = vmul.f32 %v3878, %v125
    %v3889 = vmul.f32 %v3881, %v125
    %v3890 = vadd.f32 %v3882, 1e-12
    %v3891 = vadd.f32 %v3883, 1e-12
    %v3892 = vadd.f32 %v3884, 1e-12
    %v3893 = vadd.f32 %v3885, 1e-12
    %v3894 = vadd.f32 %v3886, 1e-12
    %v3895 = vadd.f32 %v3887, 1e-12
    %v3896 = vadd.f32 %v3888, 1e-12
    %v3897 = vadd.f32 %v3889, 1e-12
    %v3898 = vrsqrt.pop %v3890
    %v3899 = vrsqrt.pop %v3891
    %v3900 = vrsqrt.pop %v3892
    %v3901 = vrsqrt.pop %v3893
    %v3902 = vrsqrt.pop %v3894
    %v3903 = vrsqrt.pop %v3895
    %v3904 = vrsqrt.pop %v3896
    %v3905 = vrsqrt.pop %v3897
    %v3906 = vmul.f32 %v3842, %v3898
    %v3907 = vmul.f32 %v3843, %v3899
    %v3908 = vmul.f32 %v3844, %v3900
    %v3909 = vmul.f32 %v3845, %v3901
    %v3910 = vmul.f32 %v3846, %v3902
    %v3911 = vmul.f32 %v3847, %v3903
    %v3912 = vmul.f32 %v3848, %v3904
    %v3913 = vmul.f32 %v3849, %v3905
    %v3915 = vlaneseq
    %v3916 = vshrl.u32 %v3915, 7
    %v3917 = vsub.s32 0, %v3916
    %v3918 = vrot.slane %v3807, %v3917
    %v3920 = vmul.f32 %v3906, %v3918
    %v3921 = vmul.f32 %v3907, %v3918
    %v3922 = vmul.f32 %v3908, %v3918
    %v3923 = vmul.f32 %v3909, %v3918
    %v3924 = vmul.f32 %v3910, %v3918
    %v3925 = vmul.f32 %v3911, %v3918
    %v3926 = vmul.f32 %v3912, %v3918
    %v3927 = vmul.f32 %v3913, %v3918
    %v3929 = vlaneseq
    %v3930 = vshrl.u32 %v3929, 7
    %v3931 = vsub.s32 0, %v3930
    %v3932 = vrot.slane %v3809, %v3931
    %v3934 = vadd.f32 %v3920, %v3932
    %v3935 = vadd.f32 %v3921, %v3932
    %v3936 = vadd.f32 %v3922, %v3932
    %v3937 = vadd.f32 %v3923, %v3932
    %v3938 = vadd.f32 %v3924, %v3932
    %v3939 = vadd.f32 %v3925, %v3932
    %v3940 = vadd.f32 %v3926, %v3932
    %v3941 = vadd.f32 %v3927, %v3932
    %v3942 = vpack.c.bf16 %v3935, %v3934
    %v3943 = vpack.c.bf16 %v3937, %v3936
    %v3944 = vpack.c.bf16 %v3939, %v3938
    %v3945 = vpack.c.bf16 %v3941, %v3940
    %s3946 = scalar_lea.vmem %s10, 16
    %v3947 = vld [vmem:[%s3946] sm:$0xf]
    %v3948 = vld [vmem:[%s3946 + $0x4] sm:$0xf]
    %v3949 = vld [vmem:[%s3946 + $0x8] sm:$0xf]
    %v3950 = vld [vmem:[%s3946 + $0xc] sm:$0xf]
    %s3951 = scalar_lea.vmem %s11, 1
    %v3952 = vld [vmem:[%s3951] sm:$0x1]
    %v3954 = vlaneseq
    %v3955 = vshrl.u32 %v3954, 7
    %v3956 = vsub.s32 0, %v3955
    %v3957 = vrot.slane %v3952, %v3956
    %v3963 = vunpack.c.l.b16 %v3947
    %v3964 = vunpack.c.l.b16 %v3948
    %v3965 = vunpack.c.l.b16 %v3949
    %v3966 = vunpack.c.l.b16 %v3950
    %v3967 = vpack.c.b16 %v3964, %v3963
    %v3968 = vpack.c.b16 %v3966, %v3965
    %v3972 = vsel %vm100, %v3942, 0
    %v3975 = vsel %vm100, %v3943, 0
    %v3978 = vsel %vm100, %v3944, 0
    %v3981 = vsel %vm100, %v3945, 0
    %3983 = vmatprep.subr.bf16.mxu0 0
    %3984 = vmatpush1.bf16.msra.mxu0 0
    %3985 = vmatprep.subr.bf16.mxu0 0
    %3986 = vmatpush1.bf16.msra.mxu0 0
    %3987 = vmatprep.subr.bf16.mxu0 0
    %3988 = vmatpush1.bf16.msra.mxu0 0
    %3989 = vmatprep.subr.bf16.mxu0 0
    %3990 = vmatpush1.bf16.msra.mxu0 0
    %3991 = vmatprep.subr.bf16.mxu0 0
    %3992 = vmatpush1.bf16.msra.mxu0 0
    %3993 = vmatprep.subr.bf16.mxu0 0
    %3994 = vmatpush1.bf16.msra.mxu0 0
    %3995 = vmatprep.subr.bf16.mxu0 0
    %3996 = vmatpush1.bf16.msra.mxu0 %v3968
    %3997 = vmatprep.subr.bf16.mxu0 0
    %3998 = vmatpush1.bf16.msra.mxu0 %v3967
    %3999 = vmatprep.subr.bf16.mxu0 0
    %4000 = vmatpush2.bf16.msra.mxu0 0
    %4001 = vmatprep.subr.bf16.mxu0 0
    %4002 = vmatpush2.bf16.msra.mxu0 0
    %4003 = vmatprep.subr.bf16.mxu0 0
    %4004 = vmatpush2.bf16.msra.mxu0 0
    %4005 = vmatprep.subr.bf16.mxu0 0
    %4006 = vmatpush2.bf16.msra.mxu0 0
    %4007 = vmatprep.subr.bf16.mxu0 0
    %4008 = vmatpush2.bf16.msra.mxu0 0
    %4009 = vmatprep.subr.bf16.mxu0 0
    %4010 = vmatpush2.bf16.msra.mxu0 0
    %4011 = vmatprep.subr.bf16.mxu0 0
    %4012 = vmatpush2.bf16.msra.mxu0 0
    %4013 = vmatprep.subr.bf16.mxu0 0
    %4014 = vmatpush2.bf16.msra.mxu0 0
    %4015 = vmatprep.mubr.bf16.mxu0 0
    %4016 = vmatmul.mubr.bf16.gmra.mxu0 %v3972
    %v4017 = vpop.f32.mrf.mxu0
    %v4018 = vadd.f32 %v3957, %v4017
    %v4019 = vpop.f32.mrf.mxu0
    %v4020 = vpop.f32.mrf.mxu0
    %v4021 = vadd.f32 %v3957, %v4020
    %v4022 = vpop.f32.mrf.mxu0
    %4023 = vmatprep.mubr.bf16.mxu0 0
    %4024 = vmatmul.mubr.bf16.gmra.mxu0 %v3975
    %v4025 = vpop.f32.mrf.mxu0
    %v4026 = vadd.f32 %v3957, %v4025
    %v4027 = vpop.f32.mrf.mxu0
    %v4028 = vpop.f32.mrf.mxu0
    %v4029 = vadd.f32 %v3957, %v4028
    %v4030 = vpop.f32.mrf.mxu0
    %4031 = vmatprep.mubr.bf16.mxu0 0
    %4032 = vmatmul.mubr.bf16.gmra.mxu0 %v3978
    %v4033 = vpop.f32.mrf.mxu0
    %v4034 = vadd.f32 %v3957, %v4033
    %v4035 = vpop.f32.mrf.mxu0
    %v4036 = vpop.f32.mrf.mxu0
    %v4037 = vadd.f32 %v3957, %v4036
    %v4038 = vpop.f32.mrf.mxu0
    %4039 = vmatprep.mubr.bf16.mxu0 0
    %4040 = vmatmul.mubr.bf16.gmra.mxu0 %v3981
    %v4041 = vpop.f32.mrf.mxu0
    %v4042 = vadd.f32 %v3957, %v4041
    %v4043 = vpop.f32.mrf.mxu0
    %v4044 = vpop.f32.mrf.mxu0
    %v4045 = vadd.f32 %v3957, %v4044
    %v4046 = vpop.f32.mrf.mxu0
    %4047 = vdwg.mxu0
    %v4048 = vmul.f32 %v4018, 0.5
    %v4049 = vmul.f32 %v4021, 0.5
    %v4050 = vmul.f32 %v4026, 0.5
    %v4051 = vmul.f32 %v4029, 0.5
    %v4052 = vmul.f32 %v4034, 0.5
    %v4053 = vmul.f32 %v4037, 0.5
    %v4054 = vmul.f32 %v4042, 0.5
    %v4055 = vmul.f32 %v4045, 0.5
    %v4056 = vmul.f32 %v4018, 0.044715
    %v4057 = vmul.f32 %v4021, 0.044715
    %v4058 = vmul.f32 %v4026, 0.044715
    %v4059 = vmul.f32 %v4029, 0.044715
    %v4060 = vmul.f32 %v4034, 0.044715
    %v4061 = vmul.f32 %v4037, 0.044715
    %v4062 = vmul.f32 %v4042, 0.044715
    %v4063 = vmul.f32 %v4045, 0.044715
    %v4064 = vmul.f32 %v4056, %v4018
    %v4065 = vmul.f32 %v4057, %v4021
    %v4066 = vmul.f32 %v4058, %v4026
    %v4067 = vmul.f32 %v4059, %v4029
    %v4068 = vmul.f32 %v4060, %v4034
    %v4069 = vmul.f32 %v4061, %v4037
    %v4070 = vmul.f32 %v4062, %v4042
    %v4071 = vmul.f32 %v4063, %v4045
    %v4072 = vmul.f32 %v4064, %v4018
    %v4073 = vmul.f32 %v4065, %v4021
    %v4074 = vmul.f32 %v4066, %v4026
    %v4075 = vmul.f32 %v4067, %v4029
    %v4076 = vmul.f32 %v4068, %v4034
    %v4077 = vmul.f32 %v4069, %v4037
    %v4078 = vmul.f32 %v4070, %v4042
    %v4079 = vmul.f32 %v4071, %v4045
    %v4080 = vadd.f32 %v4018, %v4072
    %v4081 = vadd.f32 %v4021, %v4073
    %v4082 = vadd.f32 %v4026, %v4074
    %v4083 = vadd.f32 %v4029, %v4075
    %v4084 = vadd.f32 %v4034, %v4076
    %v4085 = vadd.f32 %v4037, %v4077
    %v4086 = vadd.f32 %v4042, %v4078
    %v4087 = vadd.f32 %v4045, %v4079
    %v4088 = vmul.f32 %v4080, 0.7978846
    %v4089 = vmul.f32 %v4081, 0.7978846
    %v4090 = vmul.f32 %v4082, 0.7978846
    %v4091 = vmul.f32 %v4083, 0.7978846
    %v4092 = vmul.f32 %v4084, 0.7978846
    %v4093 = vmul.f32 %v4085, 0.7978846
    %v4094 = vmul.f32 %v4086, 0.7978846
    %v4095 = vmul.f32 %v4087, 0.7978846
    %v4096 = vtanh.pop %v4088
    %v4097 = vtanh.pop %v4089
    %v4098 = vtanh.pop %v4090
    %v4099 = vtanh.pop %v4091
    %v4100 = vtanh.pop %v4092
    %v4101 = vtanh.pop %v4093
    %v4102 = vtanh.pop %v4094
    %v4103 = vtanh.pop %v4095
    %v4104 = vadd.f32 %v4096, 1.0
    %v4105 = vadd.f32 %v4097, 1.0
    %v4106 = vadd.f32 %v4098, 1.0
    %v4107 = vadd.f32 %v4099, 1.0
    %v4108 = vadd.f32 %v4100, 1.0
    %v4109 = vadd.f32 %v4101, 1.0
    %v4110 = vadd.f32 %v4102, 1.0
    %v4111 = vadd.f32 %v4103, 1.0
    %v4112 = vmul.f32 %v4048, %v4104
    %v4113 = vmul.f32 %v4049, %v4105
    %v4114 = vmul.f32 %v4050, %v4106
    %v4115 = vmul.f32 %v4051, %v4107
    %v4116 = vmul.f32 %v4052, %v4108
    %v4117 = vmul.f32 %v4053, %v4109
    %v4118 = vmul.f32 %v4054, %v4110
    %v4119 = vmul.f32 %v4055, %v4111
    %v4120 = vpack.c.bf16 %v4113, %v4112
    %v4121 = vpack.c.bf16 %v4115, %v4114
    %v4122 = vpack.c.bf16 %v4117, %v4116
    %v4123 = vpack.c.bf16 %v4119, %v4118
    %s4124 = scalar_lea.vmem %s12, 32
    %v4125 = vld [vmem:[%s4124] sm:$0xf]
    %v4126 = vld [vmem:[%s4124 + $0x4] sm:$0xf]
    %v4127 = vld [vmem:[%s4124 + $0x8] sm:$0xf]
    %v4128 = vld [vmem:[%s4124 + $0xc] sm:$0xf]
    %v4129 = vld [vmem:[%s4124 + $0x10] sm:$0xf]
    %v4130 = vld [vmem:[%s4124 + $0x14] sm:$0xf]
    %v4131 = vld [vmem:[%s4124 + $0x18] sm:$0xf]
    %v4132 = vld [vmem:[%s4124 + $0x1c] sm:$0xf]
    %s4133 = scalar_lea.vmem %s13, 1
    %v4134 = vld [vmem:[%s4133] sm:$0x1]
    %v4136 = vlaneseq
    %v4137 = vshrl.u32 %v4136, 7
    %v4138 = vsub.s32 0, %v4137
    %v4139 = vrot.slane %v4134, %v4138
    %v4149 = vunpack.c.l.b16 %v4125
    %v4150 = vunpack.c.l.b16 %v4126
    %v4151 = vunpack.c.l.b16 %v4127
    %v4152 = vunpack.c.l.b16 %v4128
    %v4153 = vunpack.c.l.b16 %v4129
    %v4154 = vunpack.c.l.b16 %v4130
    %v4155 = vunpack.c.l.b16 %v4131
    %v4156 = vunpack.c.l.b16 %v4132
    %v4157 = vpack.c.b16 %v4150, %v4149
    %v4158 = vpack.c.b16 %v4152, %v4151
    %v4159 = vpack.c.b16 %v4154, %v4153
    %v4160 = vpack.c.b16 %v4156, %v4155
    %v4166 = vsel %vm456, %v4120, 0
    %v4169 = vsel %vm456, %v4121, 0
    %v4172 = vsel %vm456, %v4122, 0
    %v4175 = vsel %vm456, %v4123, 0
    %4177 = vmatprep.subr.bf16.mxu0 0
    %4178 = vmatpush1.bf16.msra.mxu0 0
    %4179 = vmatprep.subr.bf16.mxu0 0
    %4180 = vmatpush1.bf16.msra.mxu0 0
    %4181 = vmatprep.subr.bf16.mxu0 0
    %4182 = vmatpush1.bf16.msra.mxu0 0
    %4183 = vmatprep.subr.bf16.mxu0 0
    %4184 = vmatpush1.bf16.msra.mxu0 0
    %4185 = vmatprep.subr.bf16.mxu0 0
    %4186 = vmatpush1.bf16.msra.mxu0 %v4160
    %4187 = vmatprep.subr.bf16.mxu0 0
    %4188 = vmatpush1.bf16.msra.mxu0 %v4159
    %4189 = vmatprep.subr.bf16.mxu0 0
    %4190 = vmatpush1.bf16.msra.mxu0 %v4158
    %4191 = vmatprep.subr.bf16.mxu0 0
    %4192 = vmatpush1.bf16.msra.mxu0 %v4157
    %4193 = vmatprep.subr.bf16.mxu0 0
    %4194 = vmatpush2.bf16.msra.mxu0 0
    %4195 = vmatprep.subr.bf16.mxu0 0
    %4196 = vmatpush2.bf16.msra.mxu0 0
    %4197 = vmatprep.subr.bf16.mxu0 0
    %4198 = vmatpush2.bf16.msra.mxu0 0
    %4199 = vmatprep.subr.bf16.mxu0 0
    %4200 = vmatpush2.bf16.msra.mxu0 0
    %4201 = vmatprep.subr.bf16.mxu0 0
    %4202 = vmatpush2.bf16.msra.mxu0 0
    %4203 = vmatprep.subr.bf16.mxu0 0
    %4204 = vmatpush2.bf16.msra.mxu0 0
    %4205 = vmatprep.subr.bf16.mxu0 0
    %4206 = vmatpush2.bf16.msra.mxu0 0
    %4207 = vmatprep.subr.bf16.mxu0 0
    %4208 = vmatpush2.bf16.msra.mxu0 0
    %4209 = vmatprep.mubr.bf16.mxu0 0
    %4210 = vmatmul.mubr.bf16.gmra.mxu0 %v4166
    %v4211 = vpop.f32.mrf.mxu0
    %v4212 = vadd.f32 %v4139, %v4211
    %v4213 = vpop.f32.mrf.mxu0
    %v4214 = vpop.f32.mrf.mxu0
    %v4215 = vadd.f32 %v4139, %v4214
    %v4216 = vpop.f32.mrf.mxu0
    %4217 = vmatprep.mubr.bf16.mxu0 0
    %4218 = vmatmul.mubr.bf16.gmra.mxu0 %v4169
    %v4219 = vpop.f32.mrf.mxu0
    %v4220 = vadd.f32 %v4139, %v4219
    %v4221 = vpop.f32.mrf.mxu0
    %v4222 = vpop.f32.mrf.mxu0
    %v4223 = vadd.f32 %v4139, %v4222
    %v4224 = vpop.f32.mrf.mxu0
    %4225 = vmatprep.mubr.bf16.mxu0 0
    %4226 = vmatmul.mubr.bf16.gmra.mxu0 %v4172
    %v4227 = vpop.f32.mrf.mxu0
    %v4228 = vadd.f32 %v4139, %v4227
    %v4229 = vpop.f32.mrf.mxu0
    %v4230 = vpop.f32.mrf.mxu0
    %v4231 = vadd.f32 %v4139, %v4230
    %v4232 = vpop.f32.mrf.mxu0
    %4233 = vmatprep.mubr.bf16.mxu0 0
    %4234 = vmatmul.mubr.bf16.gmra.mxu0 %v4175
    %v4235 = vpop.f32.mrf.mxu0
    %v4236 = vadd.f32 %v4139, %v4235
    %v4237 = vpop.f32.mrf.mxu0
    %v4238 = vpop.f32.mrf.mxu0
    %v4239 = vadd.f32 %v4139, %v4238
    %v4240 = vpop.f32.mrf.mxu0
    %4241 = vdwg.mxu0
    %v4242 = vadd.f32 %v4212, %v3934
    %v4243 = vadd.f32 %v4215, %v3935
    %v4244 = vadd.f32 %v4220, %v3936
    %v4245 = vadd.f32 %v4223, %v3937
    %v4246 = vadd.f32 %v4228, %v3938
    %v4247 = vadd.f32 %v4231, %v3939
    %v4248 = vadd.f32 %v4236, %v3940
    %v4249 = vadd.f32 %v4239, %v3941
    %s4250 = scalar_lea.vmem %s14, 1
    %v4251 = vld [vmem:[%s4250] sm:$0x1]
    %s4252 = scalar_lea.vmem %s15, 1
    %v4253 = vld [vmem:[%s4252] sm:$0x1]
    %v4254 = vsel %vm100, %v4242, 0.0
    %4255 = vadd.xlane.f32.xlu0 %v4254
    %v4256 = vpop.xlane.xlu0 %4255
    %v4257 = vsel %vm100, %v4243, 0.0
    %4258 = vadd.xlane.f32.xlu0 %v4257
    %v4259 = vpop.xlane.xlu0 %4258
    %v4260 = vsel %vm100, %v4244, 0.0
    %4261 = vadd.xlane.f32.xlu0 %v4260
    %v4262 = vpop.xlane.xlu0 %4261
    %v4263 = vsel %vm100, %v4245, 0.0
    %4264 = vadd.xlane.f32.xlu0 %v4263
    %v4265 = vpop.xlane.xlu0 %4264
    %v4266 = vsel %vm100, %v4246, 0.0
    %4267 = vadd.xlane.f32.xlu0 %v4266
    %v4268 = vpop.xlane.xlu0 %4267
    %v4269 = vsel %vm100, %v4247, 0.0
    %4270 = vadd.xlane.f32.xlu0 %v4269
    %v4271 = vpop.xlane.xlu0 %4270
    %v4272 = vsel %vm100, %v4248, 0.0
    %4273 = vadd.xlane.f32.xlu0 %v4272
    %v4274 = vpop.xlane.xlu0 %4273
    %v4275 = vsel %vm100, %v4249, 0.0
    %4276 = vadd.xlane.f32.xlu0 %v4275
    %v4277 = vpop.xlane.xlu0 %4276
    %v4278 = vmul.f32 %v4256, %v125
    %v4279 = vmul.f32 %v4259, %v125
    %v4280 = vmul.f32 %v4262, %v125
    %v4281 = vmul.f32 %v4265, %v125
    %v4282 = vmul.f32 %v4268, %v125
    %v4283 = vmul.f32 %v4271, %v125
    %v4284 = vmul.f32 %v4274, %v125
    %v4285 = vmul.f32 %v4277, %v125
    %v4286 = vsub.f32 %v4242, %v4278
    %v4287 = vsub.f32 %v4243, %v4279
    %v4288 = vsub.f32 %v4244, %v4280
    %v4289 = vsub.f32 %v4245, %v4281
    %v4290 = vsub.f32 %v4246, %v4282
    %v4291 = vsub.f32 %v4247, %v4283
    %v4292 = vsub.f32 %v4248, %v4284
    %v4293 = vsub.f32 %v4249, %v4285
    %v4294 = vmul.f32 %v4286, %v4286
    %v4295 = vmul.f32 %v4287, %v4287
    %v4296 = vmul.f32 %v4288, %v4288
    %v4297 = vmul.f32 %v4289, %v4289
    %v4298 = vmul.f32 %v4290, %v4290
    %v4299 = vmul.f32 %v4291, %v4291
    %v4300 = vmul.f32 %v4292, %v4292
    %v4301 = vmul.f32 %v4293, %v4293
    %v4302 = vsel %vm100, %v4294, 0.0
    %4303 = vadd.xlane.f32.xlu0 %v4302
    %v4304 = vpop.xlane.xlu0 %4303
    %v4305 = vsel %vm100, %v4295, 0.0
    %4306 = vadd.xlane.f32.xlu0 %v4305
    %v4307 = vpop.xlane.xlu0 %4306
    %v4308 = vsel %vm100, %v4296, 0.0
    %4309 = vadd.xlane.f32.xlu0 %v4308
    %v4310 = vpop.xlane.xlu0 %4309
    %v4311 = vsel %vm100, %v4297, 0.0
    %4312 = vadd.xlane.f32.xlu0 %v4311
    %v4313 = vpop.xlane.xlu0 %4312
    %v4314 = vsel %vm100, %v4298, 0.0
    %4315 = vadd.xlane.f32.xlu0 %v4314
    %v4316 = vpop.xlane.xlu0 %4315
    %v4317 = vsel %vm100, %v4299, 0.0
    %4318 = vadd.xlane.f32.xlu0 %v4317
    %v4319 = vpop.xlane.xlu0 %4318
    %v4320 = vsel %vm100, %v4300, 0.0
    %4321 = vadd.xlane.f32.xlu0 %v4320
    %v4322 = vpop.xlane.xlu0 %4321
    %v4323 = vsel %vm100, %v4301, 0.0
    %4324 = vadd.xlane.f32.xlu0 %v4323
    %v4325 = vpop.xlane.xlu0 %4324
    %v4326 = vmul.f32 %v4304, %v125
    %v4327 = vmul.f32 %v4307, %v125
    %v4328 = vmul.f32 %v4310, %v125
    %v4329 = vmul.f32 %v4313, %v125
    %v4330 = vmul.f32 %v4316, %v125
    %v4331 = vmul.f32 %v4319, %v125
    %v4332 = vmul.f32 %v4322, %v125
    %v4333 = vmul.f32 %v4325, %v125
    %v4334 = vadd.f32 %v4326, 1e-12
    %v4335 = vadd.f32 %v4327, 1e-12
    %v4336 = vadd.f32 %v4328, 1e-12
    %v4337 = vadd.f32 %v4329, 1e-12
    %v4338 = vadd.f32 %v4330, 1e-12
    %v4339 = vadd.f32 %v4331, 1e-12
    %v4340 = vadd.f32 %v4332, 1e-12
    %v4341 = vadd.f32 %v4333, 1e-12
    %v4342 = vrsqrt.pop %v4334
    %v4343 = vrsqrt.pop %v4335
    %v4344 = vrsqrt.pop %v4336
    %v4345 = vrsqrt.pop %v4337
    %v4346 = vrsqrt.pop %v4338
    %v4347 = vrsqrt.pop %v4339
    %v4348 = vrsqrt.pop %v4340
    %v4349 = vrsqrt.pop %v4341
    %v4350 = vmul.f32 %v4286, %v4342
    %v4351 = vmul.f32 %v4287, %v4343
    %v4352 = vmul.f32 %v4288, %v4344
    %v4353 = vmul.f32 %v4289, %v4345
    %v4354 = vmul.f32 %v4290, %v4346
    %v4355 = vmul.f32 %v4291, %v4347
    %v4356 = vmul.f32 %v4292, %v4348
    %v4357 = vmul.f32 %v4293, %v4349
    %v4359 = vlaneseq
    %v4360 = vshrl.u32 %v4359, 7
    %v4361 = vsub.s32 0, %v4360
    %v4362 = vrot.slane %v4251, %v4361
    %v4364 = vmul.f32 %v4350, %v4362
    %v4365 = vmul.f32 %v4351, %v4362
    %v4366 = vmul.f32 %v4352, %v4362
    %v4367 = vmul.f32 %v4353, %v4362
    %v4368 = vmul.f32 %v4354, %v4362
    %v4369 = vmul.f32 %v4355, %v4362
    %v4370 = vmul.f32 %v4356, %v4362
    %v4371 = vmul.f32 %v4357, %v4362
    %v4373 = vlaneseq
    %v4374 = vshrl.u32 %v4373, 7
    %v4375 = vsub.s32 0, %v4374
    %v4376 = vrot.slane %v4253, %v4375
    %v4378 = vadd.f32 %v4364, %v4376
    %v4379 = vadd.f32 %v4365, %v4376
    %v4380 = vadd.f32 %v4366, %v4376
    %v4381 = vadd.f32 %v4367, %v4376
    %v4382 = vadd.f32 %v4368, %v4376
    %v4383 = vadd.f32 %v4369, %v4376
    %v4384 = vadd.f32 %v4370, %v4376
    %v4385 = vadd.f32 %v4371, %v4376
    %v4386 = vld [vmem:[%s16] sm:$0xff]
    %v4388 = vsel %vm456, %v4386, 0
    %4390 = vmatprep.subr.mxu0 0.0
    %4391 = vmatpush1.msra.mxu0 0.0
    %4392 = vmatprep.subr.mxu0 0.0
    %4393 = vmatpush1.msra.mxu0 0.0
    %4394 = vmatprep.subr.mxu0 0.0
    %4395 = vmatpush1.msra.mxu0 0.0
    %4396 = vmatprep.subr.mxu0 0.0
    %4397 = vmatpush1.msra.mxu0 0.0
    %4398 = vmatprep.subr.mxu0 0.0
    %4399 = vmatpush1.msra.mxu0 0.0
    %4400 = vmatprep.subr.mxu0 0.0
    %4401 = vmatpush1.msra.mxu0 0.0
    %4402 = vmatprep.subr.mxu0 0.0
    %4403 = vmatpush1.msra.mxu0 0.0
    %4404 = vmatprep.subr.mxu0 0.0
    %4405 = vmatpush1.msra.mxu0 0.0
    %4406 = vmatprep.subr.mxu0 0.0
    %4407 = vmatpush1.msra.mxu0 %v4385
    %4408 = vmatprep.subr.mxu0 0.0
    %4409 = vmatpush1.msra.mxu0 %v4384
    %4410 = vmatprep.subr.mxu0 0.0
    %4411 = vmatpush1.msra.mxu0 %v4383
    %4412 = vmatprep.subr.mxu0 0.0
    %4413 = vmatpush1.msra.mxu0 %v4382
    %4414 = vmatprep.subr.mxu0 0.0
    %4415 = vmatpush1.msra.mxu0 %v4381
    %4416 = vmatprep.subr.mxu0 0.0
    %4417 = vmatpush1.msra.mxu0 %v4380
    %4418 = vmatprep.subr.mxu0 0.0
    %4419 = vmatpush1.msra.mxu0 %v4379
    %4420 = vmatprep.subr.mxu0 0.0
    %4421 = vmatpush1.msra.mxu0 %v4378
    %4422 = vmatprep.subr.mxu0 0.0
    %4423 = vmatpush2.msra.mxu0 0.0
    %4424 = vmatprep.subr.mxu0 0.0
    %4425 = vmatpush2.msra.mxu0 0.0
    %4426 = vmatprep.subr.mxu0 0.0
    %4427 = vmatpush2.msra.mxu0 0.0
    %4428 = vmatprep.subr.mxu0 0.0
    %4429 = vmatpush2.msra.mxu0 0.0
    %4430 = vmatprep.subr.mxu0 0.0
    %4431 = vmatpush2.msra.mxu0 0.0
    %4432 = vmatprep.subr.mxu0 0.0
    %4433 = vmatpush2.msra.mxu0 0.0
    %4434 = vmatprep.subr.mxu0 0.0
    %4435 = vmatpush2.msra.mxu0 0.0
    %4436 = vmatprep.subr.mxu0 0.0
    %4437 = vmatpush2.msra.mxu0 0.0
    %4438 = vmatprep.subr.mxu0 0.0
    %4439 = vmatpush2.msra.mxu0 0.0
    %4440 = vmatprep.subr.mxu0 0.0
    %4441 = vmatpush2.msra.mxu0 0.0
    %4442 = vmatprep.subr.mxu0 0.0
    %4443 = vmatpush2.msra.mxu0 0.0
    %4444 = vmatprep.subr.mxu0 0.0
    %4445 = vmatpush2.msra.mxu0 0.0
    %4446 = vmatprep.subr.mxu0 0.0
    %4447 = vmatpush2.msra.mxu0 0.0
    %4448 = vmatprep.subr.mxu0 0.0
    %4449 = vmatpush2.msra.mxu0 0.0
    %4450 = vmatprep.subr.mxu0 0.0
    %4451 = vmatpush2.msra.mxu0 0.0
    %4452 = vmatprep.subr.mxu0 0.0
    %4453 = vmatpush2.msra.mxu0 0.0
    %4454 = vmatprep.mubr.f32.mxu0 0.0
    %4455 = vmatmul.mubr.f32.gmra.mxu0 %v4388
    %v4456 = vpop.f32.mrf.mxu0
    %v4457 = vadd.f32 0.0, %v4456
    %v4458 = vpop.f32.mrf.mxu0
    %4459 = vdwg.mxu0
    %v4460 = vpack.c.bf16 %v4457, %v4457
    %v4461 = vld [vmem:[%s17] sm:$0xf]
    %v4462 = vld [vmem:[%s17 + $0x4] sm:$0xf]
    %v4463 = vld [vmem:[%s17 + $0x8] sm:$0xf]
    %v4464 = vld [vmem:[%s17 + $0xc] sm:$0xf]
    %v4465 = vld [vmem:[%s18] sm:$0x1]
    %v4467 = vlaneseq
    %v4468 = vshrl.u32 %v4467, 7
    %v4469 = vsub.s32 0, %v4468
    %v4470 = vrot.slane %v4465, %v4469
    %v4476 = vunpack.c.l.b16 %v4461
    %v4477 = vunpack.c.l.b16 %v4462
    %v4478 = vunpack.c.l.b16 %v4463
    %v4479 = vunpack.c.l.b16 %v4464
    %v4480 = vpack.c.b16 %v4477, %v4476
    %v4481 = vpack.c.b16 %v4479, %v4478
    %v4485 = vsel %vm100, %v4460, 0
    %4487 = vmatprep.subr.bf16.mxu0 0
    %4488 = vmatpush1.bf16.msra.mxu0 0
    %4489 = vmatprep.subr.bf16.mxu0 0
    %4490 = vmatpush1.bf16.msra.mxu0 0
    %4491 = vmatprep.subr.bf16.mxu0 0
    %4492 = vmatpush1.bf16.msra.mxu0 0
    %4493 = vmatprep.subr.bf16.mxu0 0
    %4494 = vmatpush1.bf16.msra.mxu0 0
    %4495 = vmatprep.subr.bf16.mxu0 0
    %4496 = vmatpush1.bf16.msra.mxu0 0
    %4497 = vmatprep.subr.bf16.mxu0 0
    %4498 = vmatpush1.bf16.msra.mxu0 0
    %4499 = vmatprep.subr.bf16.mxu0 0
    %4500 = vmatpush1.bf16.msra.mxu0 %v4481
    %4501 = vmatprep.subr.bf16.mxu0 0
    %4502 = vmatpush1.bf16.msra.mxu0 %v4480
    %4503 = vmatprep.subr.bf16.mxu0 0
    %4504 = vmatpush2.bf16.msra.mxu0 0
    %4505 = vmatprep.subr.bf16.mxu0 0
    %4506 = vmatpush2.bf16.msra.mxu0 0
    %4507 = vmatprep.subr.bf16.mxu0 0
    %4508 = vmatpush2.bf16.msra.mxu0 0
    %4509 = vmatprep.subr.bf16.mxu0 0
    %4510 = vmatpush2.bf16.msra.mxu0 0
    %4511 = vmatprep.subr.bf16.mxu0 0
    %4512 = vmatpush2.bf16.msra.mxu0 0
    %4513 = vmatprep.subr.bf16.mxu0 0
    %4514 = vmatpush2.bf16.msra.mxu0 0
    %4515 = vmatprep.subr.bf16.mxu0 0
    %4516 = vmatpush2.bf16.msra.mxu0 0
    %4517 = vmatprep.subr.bf16.mxu0 0
    %4518 = vmatpush2.bf16.msra.mxu0 0
    %4519 = vmatprep.mubr.bf16.mxu0 0
    %4520 = vmatmul.mubr.bf16.gmra.mxu0 %v4485
    %v4521 = vpop.f32.mrf.mxu0
    %v4522 = vadd.f32 %v4470, %v4521
    %v4523 = vpop.f32.mrf.mxu0
    %v4524 = vpop.f32.mrf.mxu0
    %v4525 = vpop.f32.mrf.mxu0
    %4526 = vdwg.mxu0
    %v4527 = vmul.f32 %v4522, 0.5
    %v4528 = vmul.f32 %v4522, 0.044715
    %v4529 = vmul.f32 %v4528, %v4522
    %v4530 = vmul.f32 %v4529, %v4522
    %v4531 = vadd.f32 %v4522, %v4530
    %v4532 = vmul.f32 %v4531, 0.7978846
    %v4533 = vtanh.pop %v4532
    %v4534 = vadd.f32 %v4533, 1.0
    %v4535 = vmul.f32 %v4527, %v4534
    %v4536 = vld [vmem:[%s19] sm:$0x1]
    %v4537 = vld [vmem:[%s20] sm:$0x1]
    %v4538 = vsel %vm100, %v4535, 0.0
    %4539 = vadd.xlane.f32.xlu0 %v4538
    %v4540 = vpop.xlane.xlu0 %4539
    %v4541 = vmul.f32 %v4540, %v125
    %v4542 = vsub.f32 %v4535, %v4541
    %v4543 = vmul.f32 %v4542, %v4542
    %v4544 = vsel %vm100, %v4543, 0.0
    %4545 = vadd.xlane.f32.xlu0 %v4544
    %v4546 = vpop.xlane.xlu0 %4545
    %v4547 = vmul.f32 %v4546, %v125
    %v4548 = vadd.f32 %v4547, 1e-12
    %v4549 = vrsqrt.pop %v4548
    %v4550 = vmul.f32 %v4542, %v4549
    %v4552 = vlaneseq
    %v4553 = vshrl.u32 %v4552, 7
    %v4554 = vsub.s32 0, %v4553
    %v4555 = vrot.slane %v4536, %v4554
    %v4557 = vmul.f32 %v4550, %v4555
    %v4559 = vlaneseq
    %v4560 = vshrl.u32 %v4559, 7
    %v4561 = vsub.s32 0, %v4560
    %v4562 = vrot.slane %v4537, %v4561
    %v4564 = vadd.f32 %v4557, %v4562
    %v4565 = vpack.c.bf16 %v4564, %v4564
    %v4566 = vld [vmem:[%s21] sm:$0xf]
    %v4567 = vld [vmem:[%s21 + $0x4] sm:$0xf]
    %v4568 = vld [vmem:[%s21 + $0x8] sm:$0xf]
    %v4569 = vld [vmem:[%s21 + $0xc] sm:$0xf]
    %v4570 = vld [vmem:[%s22] sm:$0x1]
    %v4572 = vlaneseq
    %v4573 = vshrl.u32 %v4572, 7
    %v4574 = vsub.s32 0, %v4573
    %v4575 = vrot.slane %v4570, %v4574
    %v4581 = vunpack.c.l.b16 %v4566
    %v4582 = vunpack.c.l.b16 %v4567
    %v4583 = vunpack.c.l.b16 %v4568
    %v4584 = vunpack.c.l.b16 %v4569
    %v4585 = vpack.c.b16 %v4582, %v4581
    %v4586 = vpack.c.b16 %v4584, %v4583
    %v4590 = vsel %vm100, %v4565, 0
    %4592 = vmatprep.subr.bf16.mxu0 0
    %4593 = vmatpush1.bf16.msra.mxu0 0
    %4594 = vmatprep.subr.bf16.mxu0 0
    %4595 = vmatpush1.bf16.msra.mxu0 0
    %4596 = vmatprep.subr.bf16.mxu0 0
    %4597 = vmatpush1.bf16.msra.mxu0 0
    %4598 = vmatprep.subr.bf16.mxu0 0
    %4599 = vmatpush1.bf16.msra.mxu0 0
    %4600 = vmatprep.subr.bf16.mxu0 0
    %4601 = vmatpush1.bf16.msra.mxu0 0
    %4602 = vmatprep.subr.bf16.mxu0 0
    %4603 = vmatpush1.bf16.msra.mxu0 0
    %4604 = vmatprep.subr.bf16.mxu0 0
    %4605 = vmatpush1.bf16.msra.mxu0 %v4586
    %4606 = vmatprep.subr.bf16.mxu0 0
    %4607 = vmatpush1.bf16.msra.mxu0 %v4585
    %4608 = vmatprep.subr.bf16.mxu0 0
    %4609 = vmatpush2.bf16.msra.mxu0 0
    %4610 = vmatprep.subr.bf16.mxu0 0
    %4611 = vmatpush2.bf16.msra.mxu0 0
    %4612 = vmatprep.subr.bf16.mxu0 0
    %4613 = vmatpush2.bf16.msra.mxu0 0
    %4614 = vmatprep.subr.bf16.mxu0 0
    %4615 = vmatpush2.bf16.msra.mxu0 0
    %4616 = vmatprep.subr.bf16.mxu0 0
    %4617 = vmatpush2.bf16.msra.mxu0 0
    %4618 = vmatprep.subr.bf16.mxu0 0
    %4619 = vmatpush2.bf16.msra.mxu0 0
    %4620 = vmatprep.subr.bf16.mxu0 0
    %4621 = vmatpush2.bf16.msra.mxu0 0
    %4622 = vmatprep.subr.bf16.mxu0 0
    %4623 = vmatpush2.bf16.msra.mxu0 0
    %4624 = vmatprep.mubr.bf16.mxu0 0
    %4625 = vmatmul.mubr.bf16.gmra.mxu0 %v4590
    %v4626 = vpop.f32.mrf.mxu0
    %v4627 = vadd.f32 %v4575, %v4626
    %v4628 = vpop.f32.mrf.mxu0
    %v4629 = vpop.f32.mrf.mxu0
    %v4630 = vpop.f32.mrf.mxu0
    %4631 = vdwg.mxu0
    %v4632 = vsel %vm456, %v4627, -inf
    %4633 = vmax.xlane.f32.xlu0 %v4632
    %v4634 = vpop.xlane.xlu0 %4633
    %v4635 = vsub.f32 %v4627, %v4634
    %v4636 = vmul.f32 %v4635, 1.442695
    %v4637 = vpow.pop %v4636
    %v4638 = vsel %vm456, %v4637, 0.0
    %4639 = vadd.xlane.f32.xlu0 %v4638
    %v4640 = vpop.xlane.xlu0 %4639
    %v4641 = vrcp.pop %v4640
    %v4642 = vmul.f32 %v4637, %v4641
    %v4643 = vlaneseq
    %v4644 = vand.u32 %v4643, 127
    %v4645 = vld [vmem:[%s23] sm:$0xff]
    %4646 = vset.pattern.permute.xlu0 0
    %4647 = vperm.xlu0 %4646, %v4645
    %v4648 = vpop.permute.xlu0 %4647
    %vm4649 = vcmp.eq.s32.totalorder %v4644, %v4648
    %v4650 = vsel %vm4649, 1, 0
    %v4651 = vcvt.s32.f32 %v4650
    %v4652 = vmul.f32 %v4642, %v4651
    %v4653 = vsel %vm456, %v4652, 0.0
    %4654 = vadd.xlane.f32.xlu0 %v4653
    %v4655 = vpop.xlane.xlu0 %4654
    %v4656 = vld [vmem:[%s24] sm:$0xff]
    %v4657 = vmul.f32 %v4655, %v4656
    %vm4658 = vcmask 7168
    %v4659 = vsel %vm4658, %v4657, 0.0
    %v4660 = vrot.slane %v4659, 4
    %v4661 = vadd.f32 %v4659, %v4660
    %v4662 = vrot.slane %v4661, 2
    %v4663 = vadd.f32 %v4661, %v4662
    %v4664 = vrot.slane %v4663, 1
    %v4665 = vadd.f32 %v4663, %v4664
    %vm4666 = vcmask 0
    %4667 = vst.msk [vmem:[#allocation2] sm:$0x1] %vm4666, %v4665
    // Predicated region
    $region102: #{sequence_probability.1} parent=1 // pred_check
      _
    $region103: #{sequence_probability.1} parent=1 // pred_check_branch
      %4669 = sbr.rel (0) target = $region105
    $region104: #{sequence_probability.1} parent=1 // pred_region
      %s4671 = ssub.s32 16, 16
      %4672 = vsyncadd [#allocation3], %s4671
      %s4674 = sshll.u32 [#allocation2], 4
      %s4675 = int_to_ptr.vmem [resolvable:$true] %s4674
      %4677 = dma.vmem_to_hbm [thread:$0]  %s4675, 16, %s25, [#allocation3]
    $region105: #{sequence_probability.1} parent=1 // pred_fallthru
      _
    // Predicated region
    $region106: #{sequence_probability.1} parent=1 // pred_check
      _
    $region107: #{sequence_probability.1} parent=1 // pred_check_branch
      %4679 = sbr.rel (0) target = $region109
    $region108: #{sequence_probability.1} parent=1 // pred_region
      %4680 = dma.done [#allocation3], 16
    $region109: #{sequence_probability.1} parent=1 // pred_fallthru
      _
    %4681 = vsyncpa [#allocation3], 1

</llo_original>
